<compile_context>
chip_gen: v7x
topology: tpu7x:2x2x1
jax: 0.10.0
libtpu: 0.0.40
codegen_flags: <defaults>
</compile_context>

<pallas_src>
from functools import partial

import jax
import jax.numpy as jnp
from jax.experimental import pallas as pl
from jax.experimental.pallas import tpu as pltpu


# ----------------------------------------------------------------------------
# Fused kernel: 5x(Linear+ReLU) + folded tril Linear + batched Gram + postproc
# ----------------------------------------------------------------------------
def _fused_kernel(x_ref,
                  w1, b1, w2, b2, w3, b3, w4, b4, w5, b5,
                  w6p, b6p, diag_ref,
                  out_ref, l_scratch,
                  *, n, sparse_tol, use_tanh, use_sig):
    # Zero the lane-dense L buffer once; rows >= n are never written afterwards
    # so they stay zero across grid steps.  (Even if a second core skips this,
    # stale pad rows only feed output lanes the wrapper slices away.)
    @pl.when(pl.program_id(0) == 0)
    def _init():
        l_scratch[...] = jnp.zeros_like(l_scratch)

    def lin_relu(h, w_ref, b_ref):
        y = jnp.dot(h, w_ref[...], preferred_element_type=jnp.float32) + b_ref[...]
        return jnp.maximum(y, 0.0).astype(jnp.bfloat16)

    h = x_ref[...]                      # (tm, K1) bf16
    h = lin_relu(h, w1, b1)
    h = lin_relu(h, w2, b2)
    h = lin_relu(h, w3, b3)
    h = lin_relu(h, w4, b4)
    h = lin_relu(h, w5, b5)             # (tm, H) bf16

    # Last Linear with the lower-triangular scatter folded into ONE lane-padded
    # matmul: row i of L occupies lanes [i*128, i*128+n) of the result.
    lf = jnp.dot(h, w6p[...], preferred_element_type=jnp.float32) + b6p[...]   # (tm, n*128) f32

    # Move the n lane-group-aligned row slabs into the lane-dense 3-D buffer
    # (pure aligned copies; no reshape, no masked stores, no extra matmuls).
    for i in range(n):
        l_scratch[:, i, :] = lf[:, i * 128:(i + 1) * 128]

    l_all = l_scratch[...].astype(jnp.bfloat16)     # (tm, 128, 128); rows >= n are zero
    l_n = l_all[:, :n, :]                           # (tm, n, 128)

    # Batched Gram L @ L^T with the second operand row-padded to 128 rows ->
    # result is directly lane-dense (tm, n, 128); columns >= n are zero.
    g = jnp.einsum("bik,bjk->bij", l_n, l_all,
                   preferred_element_type=jnp.float32)
    g = g + diag_ref[...]                           # (1, n, 128) padded diagonal bias
    g = jnp.where(jnp.abs(g) < sparse_tol, jnp.zeros_like(g), g)
    if use_tanh:
        g = jnp.tanh(g)
    if use_sig:
        g = jax.nn.sigmoid(g)
    out_ref[...] = g                                # unmasked lane-dense store


# ----------------------------------------------------------------------------
# Tiling / VMEM helpers
# ----------------------------------------------------------------------------
def _batch_tile(B):
    """Generation-aware batch tile.

    v5e/v6e have one TensorCore per chip -> a single batch tile is best.
    v7x has two TCs, but splitting only pays when each half keeps >= 64 rows
    feeding the MXU; below that a single tile wins on every generation.
    """
    if B % 8 != 0:
        return B                        # single full-batch tile (still legal)
    if B >= 128 and (B // 2) % 8 == 0:
        return B // 2                   # exactly two tiles, >= 64 rows each
    return B


def _vmem_limit_bytes(tm, k1, hidden, n):
    """Explicit scoped-VMEM limit: footprint estimate, clamped to a safe range."""
    weights = 2 * ((k1 * hidden + 4 * hidden * hidden + hidden * n * 128) * 2
                   + (5 * hidden + 2 * n * 128) * 4)          # double-buffered consts
    x_tile = 2 * tm * k1 * 2
    out_tile = 2 * tm * n * 128 * 4
    scratch = tm * 128 * 128 * 4
    temps = 8 * tm * max(hidden, n * 128) * 4                 # live activation values
    est = weights + x_tile + out_tile + scratch + temps + (4 << 20)
    return int(min(max(est, 32 << 20), 56 << 20))


# ----------------------------------------------------------------------------
# One-time constant preparation (hoisted out of the per-call forward)
# ----------------------------------------------------------------------------
def prepare_params(params, *, n, diagonal_bias=None):
    assert n <= 128, "lane-dense layout assumes n <= 128"
    (w1, b1), (w2, b2), (w3, b3), (w4, b4), (w5, b5), (w6, b6) = params
    hidden = w1.shape[1]
    nn = n * n
    k1 = ((nn + 127) // 128) * 128                 # lane-pad first-layer K dim

    w1p = jnp.pad(w1, ((0, k1 - nn), (0, 0))).astype(jnp.bfloat16)

    # Fold the torch.tril_indices scatter into the last Linear's weight/bias:
    # column (i*128 + j) of w6p produces L[:, i, j] (zero above the diagonal).
    rows, cols = jnp.tril_indices(n)               # row-major, same as torch
    col_idx = rows * 128 + cols
    w6p = (jnp.zeros((hidden, n * 128), jnp.float32)
           .at[:, col_idx].set(w6).astype(jnp.bfloat16))
    b6p = jnp.zeros((n * 128,), jnp.float32).at[col_idx].set(b6).reshape(1, -1)

    db = 0.0 if diagonal_bias is None else float(diagonal_bias)
    diag = jnp.pad(db * jnp.eye(n, dtype=jnp.float32),
                   ((0, 0), (0, 128 - n)))[None]   # (1, n, 128)

    return {
        "w1p": w1p, "b1": b1.reshape(1, -1).astype(jnp.float32),
        "w2": w2.astype(jnp.bfloat16), "b2": b2.reshape(1, -1).astype(jnp.float32),
        "w3": w3.astype(jnp.bfloat16), "b3": b3.reshape(1, -1).astype(jnp.float32),
        "w4": w4.astype(jnp.bfloat16), "b4": b4.reshape(1, -1).astype(jnp.float32),
        "w5": w5.astype(jnp.bfloat16), "b5": b5.reshape(1, -1).astype(jnp.float32),
        "w6p": w6p, "b6p": b6p, "diag": diag,
    }


# ----------------------------------------------------------------------------
# Full CholeskyFCN forward (one pallas_call per forward)
# ----------------------------------------------------------------------------
def cholesky_fcn_forward(x, prep, *, n, sparse_tol=1e-5, tanh=False, sig=False):
    B, nn_in = x.shape
    k1, hidden = prep["w1p"].shape

    x_pad = x if k1 == nn_in else jnp.pad(x, ((0, 0), (0, k1 - nn_in)))
    x_pad = x_pad.astype(jnp.bfloat16)

    tm = _batch_tile(B)
    grid = (B // tm,)

    flat = [x_pad,
            prep["w1p"], prep["b1"], prep["w2"], prep["b2"], prep["w3"], prep["b3"],
            prep["w4"], prep["b4"], prep["w5"], prep["b5"],
            prep["w6p"], prep["b6p"], prep["diag"]]

    x_spec = pl.BlockSpec((tm, k1), lambda i: (i, 0))
    const_specs = [
        pl.BlockSpec(p.shape, (lambda nd: (lambda i: (0,) * nd))(p.ndim))
        for p in flat[1:]
    ]
    out_spec = pl.BlockSpec((tm, n, 128), lambda i: (i, 0, 0))

    kernel = partial(_fused_kernel, n=n, sparse_tol=sparse_tol,
                     use_tanh=tanh, use_sig=sig)

    out_pad = pl.pallas_call(
        kernel,
        out_shape=jax.ShapeDtypeStruct((B, n, 128), jnp.float32),
        grid_spec=pltpu.PrefetchScalarGridSpec(
            num_scalar_prefetch=0,
            grid=grid,
            in_specs=[x_spec] + const_specs,
            out_specs=out_spec,
            scratch_shapes=[pltpu.VMEM((tm, 128, 128), jnp.float32)],
        ),
        compiler_params=pltpu.CompilerParams(
            dimension_semantics=("parallel",),
            vmem_limit_bytes=_vmem_limit_bytes(tm, k1, hidden, n)),
    )(*flat)

    return out_pad[:, :, :n]           # drop the lane padding in the wrapper


# ----------------------------------------------------------------------------
# Deterministic parameter init (matches nn.Linear shapes; synthetic values)
# ----------------------------------------------------------------------------
def init_params(key, n, hidden):
    tri_size = n * (n + 1) // 2
    dims = [(n * n, hidden), (hidden, hidden), (hidden, hidden),
            (hidden, hidden), (hidden, hidden), (hidden, tri_size)]
    params = []
    for (fan_in, fan_out) in dims:
        key, kw, kb = jax.random.split(key, 3)
        bound = 1.0 / jnp.sqrt(fan_in)
        w = jax.random.uniform(kw, (fan_in, fan_out), jnp.float32, -bound, bound)
        b = jax.random.uniform(kb, (fan_out,), jnp.float32, -bound, bound)
        params.append((w, b))
    return params


# Pure-JAX reference mirroring the kernel's numerics (bf16 weights/activations,
# bf16 Gram operands, f32 accumulation) for a tight sanity check.
def reference_forward(x, params, *, n, sparse_tol=1e-5, diagonal_bias=None,
                      tanh=False, sig=False):
    h = x.astype(jnp.bfloat16)
    for w, b in params[:-1]:
        y = jnp.dot(h, w.astype(jnp.bfloat16),
                    preferred_element_type=jnp.float32) + b
        h = jnp.maximum(y, 0.0).astype(jnp.bfloat16)
    w6, b6 = params[-1]
    tri = jnp.dot(h, w6.astype(jnp.bfloat16),
                  preferred_element_type=jnp.float32) + b6
    B = x.shape[0]
    rows, cols = jnp.tril_indices(n)
    L = (jnp.zeros((B, n, n), jnp.float32)
         .at[:, rows, cols].set(tri).astype(jnp.bfloat16))
    G = jnp.einsum("bik,bjk->bij", L, L, preferred_element_type=jnp.float32)
    if diagonal_bias is not None:
        G = G + diagonal_bias * jnp.eye(n, dtype=jnp.float32)
    G = jnp.where(jnp.abs(G) < sparse_tol, jnp.zeros_like(G), G)
    if tanh:
        G = jnp.tanh(G)
    if sig:
        G = jax.nn.sigmoid(G)
    return G


if __name__ == "__main__":
    # Small shapes consistent with the module (defaults n=25, hidden=256, batch=64).
    n = 8
    hidden = 32
    batch = 16

    key = jax.random.PRNGKey(0)
    key, kx = jax.random.split(key)
    x = jax.random.normal(kx, (batch, n * n), jnp.float32)
    params = init_params(key, n, hidden)

    configs = [
        dict(diagonal_bias=None, tanh=False, sig=False),
        dict(diagonal_bias=0.5, tanh=True, sig=False),
        dict(diagonal_bias=None, tanh=False, sig=True),
    ]
    for cfg in configs:
        prep = prepare_params(params, n=n, diagonal_bias=cfg["diagonal_bias"])
        fwd = jax.jit(partial(cholesky_fcn_forward, n=n, sparse_tol=1e-5,
                              tanh=cfg["tanh"], sig=cfg["sig"]))
        out = jax.block_until_ready(fwd(x, prep))
        ref = reference_forward(x, params, n=n, sparse_tol=1e-5, **cfg)
        assert out.shape == (batch, n, n)
        assert jnp.allclose(out, ref, atol=1e-2, rtol=1e-2), "mismatch vs reference"

    print("KERNEL_OK")
</pallas_src>

<mosaic_0001>
module attributes {stable_mosaic.version = 11 : i64} {
  func.func @_fused_kernel(%arg0: i32, %arg1: memref<16x128xbf16, #tpu.memory_space<vmem>>, %arg2: memref<128x32xbf16, #tpu.memory_space<vmem>>, %arg3: memref<1x32xf32, #tpu.memory_space<vmem>>, %arg4: memref<32x32xbf16, #tpu.memory_space<vmem>>, %arg5: memref<1x32xf32, #tpu.memory_space<vmem>>, %arg6: memref<32x32xbf16, #tpu.memory_space<vmem>>, %arg7: memref<1x32xf32, #tpu.memory_space<vmem>>, %arg8: memref<32x32xbf16, #tpu.memory_space<vmem>>, %arg9: memref<1x32xf32, #tpu.memory_space<vmem>>, %arg10: memref<32x32xbf16, #tpu.memory_space<vmem>>, %arg11: memref<1x32xf32, #tpu.memory_space<vmem>>, %arg12: memref<32x1024xbf16, #tpu.memory_space<vmem>>, %arg13: memref<1x1024xf32, #tpu.memory_space<vmem>>, %arg14: memref<1x8x128xf32, #tpu.memory_space<vmem>>, %arg15: memref<16x8x128xf32, #tpu.memory_space<vmem>>, %arg16: memref<16x128x128xf32, #tpu.memory_space<vmem>>) attributes {dimension_semantics = [#tpu.dimension_semantics<parallel>], iteration_bounds = array<i64: 1>, scalar_prefetch = 0 : i64, scratch_operands = 1 : i64, tpu.core_type = #tpu.core_type<tc>, window_params = [{transform_indices = @transform_0, window_bounds = array<i64: 16, 128>}, {pipeline_mode = #tpu.pipeline_mode<synchronous>, transform_indices = @transform_1, window_bounds = array<i64: 128, 32>}, {pipeline_mode = #tpu.pipeline_mode<synchronous>, transform_indices = @transform_2, window_bounds = array<i64: 1, 32>}, {pipeline_mode = #tpu.pipeline_mode<synchronous>, transform_indices = @transform_3, window_bounds = array<i64: 32, 32>}, {pipeline_mode = #tpu.pipeline_mode<synchronous>, transform_indices = @transform_4, window_bounds = array<i64: 1, 32>}, {pipeline_mode = #tpu.pipeline_mode<synchronous>, transform_indices = @transform_5, window_bounds = array<i64: 32, 32>}, {pipeline_mode = #tpu.pipeline_mode<synchronous>, transform_indices = @transform_6, window_bounds = array<i64: 1, 32>}, {pipeline_mode = #tpu.pipeline_mode<synchronous>, transform_indices = @transform_7, window_bounds = array<i64: 32, 32>}, {pipeline_mode = #tpu.pipeline_mode<synchronous>, transform_indices = @transform_8, window_bounds = array<i64: 1, 32>}, {pipeline_mode = #tpu.pipeline_mode<synchronous>, transform_indices = @transform_9, window_bounds = array<i64: 32, 32>}, {pipeline_mode = #tpu.pipeline_mode<synchronous>, transform_indices = @transform_10, window_bounds = array<i64: 1, 32>}, {pipeline_mode = #tpu.pipeline_mode<synchronous>, transform_indices = @transform_11, window_bounds = array<i64: 32, 1024>}, {pipeline_mode = #tpu.pipeline_mode<synchronous>, transform_indices = @transform_12, window_bounds = array<i64: 1, 1024>}, {pipeline_mode = #tpu.pipeline_mode<synchronous>, transform_indices = @transform_13, window_bounds = array<i64: 1, 8, 128>}, {transform_indices = @transform_14, window_bounds = array<i64: 16, 8, 128>}]} {
    %c0_i32 = arith.constant 0 : i32
    %0 = arith.cmpi eq, %arg0, %c0_i32 : i32
    %1 = arith.extui %0 : i1 to i32
    %c0_i32_0 = arith.constant 0 : i32
    %2 = arith.cmpi ne, %1, %c0_i32_0 : i32
    scf.if %2 {
      %cst_65 = arith.constant 0.000000e+00 : f32
      %94 = vector.broadcast %cst_65 : f32 to vector<16x128x128xf32>
      %c0_66 = arith.constant 0 : index
      %c0_67 = arith.constant 0 : index
      %c0_68 = arith.constant 0 : index
      %95 = vector.load %arg16[%c0_66, %c0_67, %c0_68] : memref<16x128x128xf32, #tpu.memory_space<vmem>>, vector<16x128x128xf32>
      tpu.vector_store %arg16[%c0_66, %c0_67, %c0_68], %94 {strides = array<i32>} : memref<16x128x128xf32, #tpu.memory_space<vmem>>, vector<16x128x128xf32>,
    } else {
    }
    %c0 = arith.constant 0 : index
    %c0_1 = arith.constant 0 : index
    %3 = vector.load %arg1[%c0, %c0_1] : memref<16x128xbf16, #tpu.memory_space<vmem>>, vector<16x128xbf16>
    %c0_2 = arith.constant 0 : index
    %c0_3 = arith.constant 0 : index
    %4 = vector.load %arg2[%c0_2, %c0_3] : memref<128x32xbf16, #tpu.memory_space<vmem>>, vector<128x32xbf16>
    %cst = arith.constant dense<0.000000e+00> : vector<16x32xf32>
    %5 = tpu.matmul %3, %4, %cst {dimension_numbers = #tpu.dot_dimension_numbers<[1], [0], [0], [1], [0, 0, 1, 1], [], []>} : vector<16x128xbf16>, vector<128x32xbf16>, vector<16x32xf32> -> vector<16x32xf32>
    %c0_4 = arith.constant 0 : index
    %c0_5 = arith.constant 0 : index
    %6 = vector.load %arg3[%c0_4, %c0_5] : memref<1x32xf32, #tpu.memory_space<vmem>>, vector<1x32xf32>
    %7 = vector.broadcast %6 : vector<1x32xf32> to vector<16x32xf32>
    %8 = arith.addf %5, %7 : vector<16x32xf32>
    %cst_6 = arith.constant 0.000000e+00 : f32
    %9 = vector.broadcast %cst_6 : f32 to vector<16x32xf32>
    %10 = arith.maximumf %8, %9 : vector<16x32xf32>
    %11 = arith.truncf %10 : vector<16x32xf32> to vector<16x32xbf16>
    %c0_7 = arith.constant 0 : index
    %c0_8 = arith.constant 0 : index
    %12 = vector.load %arg4[%c0_7, %c0_8] : memref<32x32xbf16, #tpu.memory_space<vmem>>, vector<32x32xbf16>
    %cst_9 = arith.constant dense<0.000000e+00> : vector<16x32xf32>
    %13 = tpu.matmul %11, %12, %cst_9 {dimension_numbers = #tpu.dot_dimension_numbers<[1], [0], [0], [1], [0, 0, 1, 1], [], []>} : vector<16x32xbf16>, vector<32x32xbf16>, vector<16x32xf32> -> vector<16x32xf32>
    %c0_10 = arith.constant 0 : index
    %c0_11 = arith.constant 0 : index
    %14 = vector.load %arg5[%c0_10, %c0_11] : memref<1x32xf32, #tpu.memory_space<vmem>>, vector<1x32xf32>
    %15 = vector.broadcast %14 : vector<1x32xf32> to vector<16x32xf32>
    %16 = arith.addf %13, %15 : vector<16x32xf32>
    %cst_12 = arith.constant 0.000000e+00 : f32
    %17 = vector.broadcast %cst_12 : f32 to vector<16x32xf32>
    %18 = arith.maximumf %16, %17 : vector<16x32xf32>
    %19 = arith.truncf %18 : vector<16x32xf32> to vector<16x32xbf16>
    %c0_13 = arith.constant 0 : index
    %c0_14 = arith.constant 0 : index
    %20 = vector.load %arg6[%c0_13, %c0_14] : memref<32x32xbf16, #tpu.memory_space<vmem>>, vector<32x32xbf16>
    %cst_15 = arith.constant dense<0.000000e+00> : vector<16x32xf32>
    %21 = tpu.matmul %19, %20, %cst_15 {dimension_numbers = #tpu.dot_dimension_numbers<[1], [0], [0], [1], [0, 0, 1, 1], [], []>} : vector<16x32xbf16>, vector<32x32xbf16>, vector<16x32xf32> -> vector<16x32xf32>
    %c0_16 = arith.constant 0 : index
    %c0_17 = arith.constant 0 : index
    %22 = vector.load %arg7[%c0_16, %c0_17] : memref<1x32xf32, #tpu.memory_space<vmem>>, vector<1x32xf32>
    %23 = vector.broadcast %22 : vector<1x32xf32> to vector<16x32xf32>
    %24 = arith.addf %21, %23 : vector<16x32xf32>
    %cst_18 = arith.constant 0.000000e+00 : f32
    %25 = vector.broadcast %cst_18 : f32 to vector<16x32xf32>
    %26 = arith.maximumf %24, %25 : vector<16x32xf32>
    %27 = arith.truncf %26 : vector<16x32xf32> to vector<16x32xbf16>
    %c0_19 = arith.constant 0 : index
    %c0_20 = arith.constant 0 : index
    %28 = vector.load %arg8[%c0_19, %c0_20] : memref<32x32xbf16, #tpu.memory_space<vmem>>, vector<32x32xbf16>
    %cst_21 = arith.constant dense<0.000000e+00> : vector<16x32xf32>
    %29 = tpu.matmul %27, %28, %cst_21 {dimension_numbers = #tpu.dot_dimension_numbers<[1], [0], [0], [1], [0, 0, 1, 1], [], []>} : vector<16x32xbf16>, vector<32x32xbf16>, vector<16x32xf32> -> vector<16x32xf32>
    %c0_22 = arith.constant 0 : index
    %c0_23 = arith.constant 0 : index
    %30 = vector.load %arg9[%c0_22, %c0_23] : memref<1x32xf32, #tpu.memory_space<vmem>>, vector<1x32xf32>
    %31 = vector.broadcast %30 : vector<1x32xf32> to vector<16x32xf32>
    %32 = arith.addf %29, %31 : vector<16x32xf32>
    %cst_24 = arith.constant 0.000000e+00 : f32
    %33 = vector.broadcast %cst_24 : f32 to vector<16x32xf32>
    %34 = arith.maximumf %32, %33 : vector<16x32xf32>
    %35 = arith.truncf %34 : vector<16x32xf32> to vector<16x32xbf16>
    %c0_25 = arith.constant 0 : index
    %c0_26 = arith.constant 0 : index
    %36 = vector.load %arg10[%c0_25, %c0_26] : memref<32x32xbf16, #tpu.memory_space<vmem>>, vector<32x32xbf16>
    %cst_27 = arith.constant dense<0.000000e+00> : vector<16x32xf32>
    %37 = tpu.matmul %35, %36, %cst_27 {dimension_numbers = #tpu.dot_dimension_numbers<[1], [0], [0], [1], [0, 0, 1, 1], [], []>} : vector<16x32xbf16>, vector<32x32xbf16>, vector<16x32xf32> -> vector<16x32xf32>
    %c0_28 = arith.constant 0 : index
    %c0_29 = arith.constant 0 : index
    %38 = vector.load %arg11[%c0_28, %c0_29] : memref<1x32xf32, #tpu.memory_space<vmem>>, vector<1x32xf32>
    %39 = vector.broadcast %38 : vector<1x32xf32> to vector<16x32xf32>
    %40 = arith.addf %37, %39 : vector<16x32xf32>
    %cst_30 = arith.constant 0.000000e+00 : f32
    %41 = vector.broadcast %cst_30 : f32 to vector<16x32xf32>
    %42 = arith.maximumf %40, %41 : vector<16x32xf32>
    %43 = arith.truncf %42 : vector<16x32xf32> to vector<16x32xbf16>
    %c0_31 = arith.constant 0 : index
    %c0_32 = arith.constant 0 : index
    %44 = vector.load %arg12[%c0_31, %c0_32] : memref<32x1024xbf16, #tpu.memory_space<vmem>>, vector<32x1024xbf16>
    %cst_33 = arith.constant dense<0.000000e+00> : vector<16x1024xf32>
    %45 = tpu.matmul %43, %44, %cst_33 {dimension_numbers = #tpu.dot_dimension_numbers<[1], [0], [0], [1], [0, 0, 1, 1], [], []>} : vector<16x32xbf16>, vector<32x1024xbf16>, vector<16x1024xf32> -> vector<16x1024xf32>
    %c0_34 = arith.constant 0 : index
    %c0_35 = arith.constant 0 : index
    %46 = vector.load %arg13[%c0_34, %c0_35] : memref<1x1024xf32, #tpu.memory_space<vmem>>, vector<1x1024xf32>
    %47 = vector.broadcast %46 : vector<1x1024xf32> to vector<16x1024xf32>
    %48 = arith.addf %45, %47 : vector<16x1024xf32>
    %49 = vector.extract_strided_slice %48 {offsets = [0, 0], sizes = [16, 128], strides = [1, 1]} : vector<16x1024xf32> to vector<16x128xf32>
    %c0_36 = arith.constant 0 : index
    %c0_37 = arith.constant 0 : index
    %c0_38 = arith.constant 0 : index
    %50 = vector.load %arg16[%c0_36, %c0_37, %c0_38] : memref<16x128x128xf32, #tpu.memory_space<vmem>>, vector<16x1x128xf32>
    %51 = vector.shape_cast %50 : vector<16x1x128xf32> to vector<16x128xf32>
    %52 = vector.shape_cast %49 : vector<16x128xf32> to vector<16x1x128xf32>
    tpu.vector_store %arg16[%c0_36, %c0_37, %c0_38], %52 {strides = array<i32>} : memref<16x128x128xf32, #tpu.memory_space<vmem>>, vector<16x1x128xf32>,
    %53 = vector.extract_strided_slice %48 {offsets = [0, 128], sizes = [16, 128], strides = [1, 1]} : vector<16x1024xf32> to vector<16x128xf32>
    %c0_39 = arith.constant 0 : index
    %c1 = arith.constant 1 : index
    %c0_40 = arith.constant 0 : index
    %54 = vector.load %arg16[%c0_39, %c1, %c0_40] : memref<16x128x128xf32, #tpu.memory_space<vmem>>, vector<16x1x128xf32>
    %55 = vector.shape_cast %54 : vector<16x1x128xf32> to vector<16x128xf32>
    %56 = vector.shape_cast %53 : vector<16x128xf32> to vector<16x1x128xf32>
    tpu.vector_store %arg16[%c0_39, %c1, %c0_40], %56 {strides = array<i32>} : memref<16x128x128xf32, #tpu.memory_space<vmem>>, vector<16x1x128xf32>,
    %57 = vector.extract_strided_slice %48 {offsets = [0, 256], sizes = [16, 128], strides = [1, 1]} : vector<16x1024xf32> to vector<16x128xf32>
    %c0_41 = arith.constant 0 : index
    %c2 = arith.constant 2 : index
    %c0_42 = arith.constant 0 : index
    %58 = vector.load %arg16[%c0_41, %c2, %c0_42] : memref<16x128x128xf32, #tpu.memory_space<vmem>>, vector<16x1x128xf32>
    %59 = vector.shape_cast %58 : vector<16x1x128xf32> to vector<16x128xf32>
    %60 = vector.shape_cast %57 : vector<16x128xf32> to vector<16x1x128xf32>
    tpu.vector_store %arg16[%c0_41, %c2, %c0_42], %60 {strides = array<i32>} : memref<16x128x128xf32, #tpu.memory_space<vmem>>, vector<16x1x128xf32>,
    %61 = vector.extract_strided_slice %48 {offsets = [0, 384], sizes = [16, 128], strides = [1, 1]} : vector<16x1024xf32> to vector<16x128xf32>
    %c0_43 = arith.constant 0 : index
    %c3 = arith.constant 3 : index
    %c0_44 = arith.constant 0 : index
    %62 = vector.load %arg16[%c0_43, %c3, %c0_44] : memref<16x128x128xf32, #tpu.memory_space<vmem>>, vector<16x1x128xf32>
    %63 = vector.shape_cast %62 : vector<16x1x128xf32> to vector<16x128xf32>
    %64 = vector.shape_cast %61 : vector<16x128xf32> to vector<16x1x128xf32>
    tpu.vector_store %arg16[%c0_43, %c3, %c0_44], %64 {strides = array<i32>} : memref<16x128x128xf32, #tpu.memory_space<vmem>>, vector<16x1x128xf32>,
    %65 = vector.extract_strided_slice %48 {offsets = [0, 512], sizes = [16, 128], strides = [1, 1]} : vector<16x1024xf32> to vector<16x128xf32>
    %c0_45 = arith.constant 0 : index
    %c4 = arith.constant 4 : index
    %c0_46 = arith.constant 0 : index
    %66 = vector.load %arg16[%c0_45, %c4, %c0_46] : memref<16x128x128xf32, #tpu.memory_space<vmem>>, vector<16x1x128xf32>
    %67 = vector.shape_cast %66 : vector<16x1x128xf32> to vector<16x128xf32>
    %68 = vector.shape_cast %65 : vector<16x128xf32> to vector<16x1x128xf32>
    tpu.vector_store %arg16[%c0_45, %c4, %c0_46], %68 {strides = array<i32>} : memref<16x128x128xf32, #tpu.memory_space<vmem>>, vector<16x1x128xf32>,
    %69 = vector.extract_strided_slice %48 {offsets = [0, 640], sizes = [16, 128], strides = [1, 1]} : vector<16x1024xf32> to vector<16x128xf32>
    %c0_47 = arith.constant 0 : index
    %c5 = arith.constant 5 : index
    %c0_48 = arith.constant 0 : index
    %70 = vector.load %arg16[%c0_47, %c5, %c0_48] : memref<16x128x128xf32, #tpu.memory_space<vmem>>, vector<16x1x128xf32>
    %71 = vector.shape_cast %70 : vector<16x1x128xf32> to vector<16x128xf32>
    %72 = vector.shape_cast %69 : vector<16x128xf32> to vector<16x1x128xf32>
    tpu.vector_store %arg16[%c0_47, %c5, %c0_48], %72 {strides = array<i32>} : memref<16x128x128xf32, #tpu.memory_space<vmem>>, vector<16x1x128xf32>,
    %73 = vector.extract_strided_slice %48 {offsets = [0, 768], sizes = [16, 128], strides = [1, 1]} : vector<16x1024xf32> to vector<16x128xf32>
    %c0_49 = arith.constant 0 : index
    %c6 = arith.constant 6 : index
    %c0_50 = arith.constant 0 : index
    %74 = vector.load %arg16[%c0_49, %c6, %c0_50] : memref<16x128x128xf32, #tpu.memory_space<vmem>>, vector<16x1x128xf32>
    %75 = vector.shape_cast %74 : vector<16x1x128xf32> to vector<16x128xf32>
    %76 = vector.shape_cast %73 : vector<16x128xf32> to vector<16x1x128xf32>
    tpu.vector_store %arg16[%c0_49, %c6, %c0_50], %76 {strides = array<i32>} : memref<16x128x128xf32, #tpu.memory_space<vmem>>, vector<16x1x128xf32>,
    %77 = vector.extract_strided_slice %48 {offsets = [0, 896], sizes = [16, 128], strides = [1, 1]} : vector<16x1024xf32> to vector<16x128xf32>
    %c0_51 = arith.constant 0 : index
    %c7 = arith.constant 7 : index
    %c0_52 = arith.constant 0 : index
    %78 = vector.load %arg16[%c0_51, %c7, %c0_52] : memref<16x128x128xf32, #tpu.memory_space<vmem>>, vector<16x1x128xf32>
    %79 = vector.shape_cast %78 : vector<16x1x128xf32> to vector<16x128xf32>
    %80 = vector.shape_cast %77 : vector<16x128xf32> to vector<16x1x128xf32>
    tpu.vector_store %arg16[%c0_51, %c7, %c0_52], %80 {strides = array<i32>} : memref<16x128x128xf32, #tpu.memory_space<vmem>>, vector<16x1x128xf32>,
    %c0_53 = arith.constant 0 : index
    %c0_54 = arith.constant 0 : index
    %c0_55 = arith.constant 0 : index
    %81 = vector.load %arg16[%c0_53, %c0_54, %c0_55] : memref<16x128x128xf32, #tpu.memory_space<vmem>>, vector<16x128x128xf32>
    %82 = arith.truncf %81 : vector<16x128x128xf32> to vector<16x128x128xbf16>
    %83 = vector.extract_strided_slice %82 {offsets = [0, 0, 0], sizes = [16, 8, 128], strides = [1, 1, 1]} : vector<16x128x128xbf16> to vector<16x8x128xbf16>
    "tpu.trace_start"() <{level = 10 : i32, message = "bik,bjk->bij"}> : () -> ()
    %cst_56 = arith.constant dense<0.000000e+00> : vector<16x8x128xf32>
    %84 = tpu.matmul %83, %82, %cst_56 {dimension_numbers = #tpu.dot_dimension_numbers<[2], [2], [1], [1], [0, 0, 0, 1, 1, 1], [0], [0]>} : vector<16x8x128xbf16>, vector<16x128x128xbf16>, vector<16x8x128xf32> -> vector<16x8x128xf32>
    "tpu.trace_stop"() : () -> ()
    %c0_57 = arith.constant 0 : index
    %c0_58 = arith.constant 0 : index
    %c0_59 = arith.constant 0 : index
    %85 = vector.load %arg14[%c0_57, %c0_58, %c0_59] : memref<1x8x128xf32, #tpu.memory_space<vmem>>, vector<1x8x128xf32>
    %86 = vector.broadcast %85 : vector<1x8x128xf32> to vector<16x8x128xf32>
    %87 = arith.addf %84, %86 : vector<16x8x128xf32>
    %88 = math.absf %87 : vector<16x8x128xf32>
    %cst_60 = arith.constant 9.99999974E-6 : f32
    %89 = vector.broadcast %cst_60 : f32 to vector<16x8x128xf32>
    %90 = arith.cmpf olt, %88, %89 : vector<16x8x128xf32>
    %cst_61 = arith.constant 0.000000e+00 : f32
    %91 = vector.broadcast %cst_61 : f32 to vector<16x8x128xf32>
    %92 = arith.select %90, %91, %87 : vector<16x8x128xi1>, vector<16x8x128xf32>
    %c0_62 = arith.constant 0 : index
    %c0_63 = arith.constant 0 : index
    %c0_64 = arith.constant 0 : index
    %93 = vector.load %arg15[%c0_62, %c0_63, %c0_64] : memref<16x8x128xf32, #tpu.memory_space<vmem>>, vector<16x8x128xf32>
    tpu.vector_store %arg15[%c0_62, %c0_63, %c0_64], %92 {strides = array<i32>} : memref<16x8x128xf32, #tpu.memory_space<vmem>>, vector<16x8x128xf32>,
    return
  }
  func.func @transform_0(%arg0: i32) -> (i32, i32) {
    %c0_i32 = arith.constant 0 : i32
    %c0_i32_0 = arith.constant 0 : i32
    return %arg0, %c0_i32 : i32, i32
  }
  func.func @transform_1(%arg0: i32) -> (i32, i32) {
    %c0_i32 = arith.constant 0 : i32
    %c0_i32_0 = arith.constant 0 : i32
    %c0_i32_1 = arith.constant 0 : i32
    return %c0_i32, %c0_i32_0 : i32, i32
  }
  func.func @transform_2(%arg0: i32) -> (i32, i32) {
    %c0_i32 = arith.constant 0 : i32
    %c0_i32_0 = arith.constant 0 : i32
    %c0_i32_1 = arith.constant 0 : i32
    return %c0_i32, %c0_i32_0 : i32, i32
  }
  func.func @transform_3(%arg0: i32) -> (i32, i32) {
    %c0_i32 = arith.constant 0 : i32
    %c0_i32_0 = arith.constant 0 : i32
    %c0_i32_1 = arith.constant 0 : i32
    return %c0_i32, %c0_i32_0 : i32, i32
  }
  func.func @transform_4(%arg0: i32) -> (i32, i32) {
    %c0_i32 = arith.constant 0 : i32
    %c0_i32_0 = arith.constant 0 : i32
    %c0_i32_1 = arith.constant 0 : i32
    return %c0_i32, %c0_i32_0 : i32, i32
  }
  func.func @transform_5(%arg0: i32) -> (i32, i32) {
    %c0_i32 = arith.constant 0 : i32
    %c0_i32_0 = arith.constant 0 : i32
    %c0_i32_1 = arith.constant 0 : i32
    return %c0_i32, %c0_i32_0 : i32, i32
  }
  func.func @transform_6(%arg0: i32) -> (i32, i32) {
    %c0_i32 = arith.constant 0 : i32
    %c0_i32_0 = arith.constant 0 : i32
    %c0_i32_1 = arith.constant 0 : i32
    return %c0_i32, %c0_i32_0 : i32, i32
  }
  func.func @transform_7(%arg0: i32) -> (i32, i32) {
    %c0_i32 = arith.constant 0 : i32
    %c0_i32_0 = arith.constant 0 : i32
    %c0_i32_1 = arith.constant 0 : i32
    return %c0_i32, %c0_i32_0 : i32, i32
  }
  func.func @transform_8(%arg0: i32) -> (i32, i32) {
    %c0_i32 = arith.constant 0 : i32
    %c0_i32_0 = arith.constant 0 : i32
    %c0_i32_1 = arith.constant 0 : i32
    return %c0_i32, %c0_i32_0 : i32, i32
  }
  func.func @transform_9(%arg0: i32) -> (i32, i32) {
    %c0_i32 = arith.constant 0 : i32
    %c0_i32_0 = arith.constant 0 : i32
    %c0_i32_1 = arith.constant 0 : i32
    return %c0_i32, %c0_i32_0 : i32, i32
  }
  func.func @transform_10(%arg0: i32) -> (i32, i32) {
    %c0_i32 = arith.constant 0 : i32
    %c0_i32_0 = arith.constant 0 : i32
    %c0_i32_1 = arith.constant 0 : i32
    return %c0_i32, %c0_i32_0 : i32, i32
  }
  func.func @transform_11(%arg0: i32) -> (i32, i32) {
    %c0_i32 = arith.constant 0 : i32
    %c0_i32_0 = arith.constant 0 : i32
    %c0_i32_1 = arith.constant 0 : i32
    return %c0_i32, %c0_i32_0 : i32, i32
  }
  func.func @transform_12(%arg0: i32) -> (i32, i32) {
    %c0_i32 = arith.constant 0 : i32
    %c0_i32_0 = arith.constant 0 : i32
    %c0_i32_1 = arith.constant 0 : i32
    return %c0_i32, %c0_i32_0 : i32, i32
  }
  func.func @transform_13(%arg0: i32) -> (i32, i32, i32) {
    %c0_i32 = arith.constant 0 : i32
    %c0_i32_0 = arith.constant 0 : i32
    %c0_i32_1 = arith.constant 0 : i32
    %c0_i32_2 = arith.constant 0 : i32
    return %c0_i32, %c0_i32_0, %c0_i32_1 : i32, i32, i32
  }
  func.func @transform_14(%arg0: i32) -> (i32, i32, i32) {
    %c0_i32 = arith.constant 0 : i32
    %c0_i32_0 = arith.constant 0 : i32
    %c0_i32_1 = arith.constant 0 : i32
    return %arg0, %c0_i32, %c0_i32_0 : i32, i32, i32
  }
}

</mosaic_0001>

<llo_original>
// kernel: cholesky_fcn_forward.1
$region0: #{cholesky_fcn_forward.1}
  #allocation0 [shape = 'u32[]', space=smem, size = 0x4, offset = 0x4, fixed_abs, tag = 'smem constant byte address 0x4 - core index']
  #allocation1 [shape = 'u32[144,128]{1,0:T(1,128)}', space=vmem, size = 0x12000, scoped, tag = 'internal scratch']
  #allocation2 [shape = 'f32[16,128,128]{2,1,0:T(8,128)}', space=vmem, size = 0x100000, scoped, tag = 'scratch operand']
  %s0 = inlined_call_operand.vmem [shape: bf16[16,128], index: 0, kind: input, shape index: {}]
  %s1 = inlined_call_operand.vmem [shape: bf16[128,32], index: 1, kind: input, shape index: {}]
  %s2 = inlined_call_operand.vmem [shape: f32[1,32], index: 2, kind: input, shape index: {}]
  %s3 = inlined_call_operand.vmem [shape: bf16[32,32], index: 3, kind: input, shape index: {}]
  %s4 = inlined_call_operand.vmem [shape: f32[1,32], index: 4, kind: input, shape index: {}]
  %s5 = inlined_call_operand.vmem [shape: bf16[32,32], index: 5, kind: input, shape index: {}]
  %s6 = inlined_call_operand.hbm [shape: f32[1,32], index: 6, kind: input, shape index: {}]
  %s7 = inlined_call_operand.hbm [shape: bf16[32,32], index: 7, kind: input, shape index: {}]
  %s8 = inlined_call_operand.hbm [shape: f32[1,32], index: 8, kind: input, shape index: {}]
  %s9 = inlined_call_operand.hbm [shape: bf16[32,32], index: 9, kind: input, shape index: {}]
  %s10 = inlined_call_operand.hbm [shape: f32[1,32], index: 10, kind: input, shape index: {}]
  %s11 = inlined_call_operand.vmem [shape: bf16[32,1024], index: 11, kind: input, shape index: {}]
  %s12 = inlined_call_operand.vmem [shape: f32[1,1024], index: 12, kind: input, shape index: {}]
  %s13 = inlined_call_operand.hbm [shape: f32[1,8,128], index: 13, kind: input, shape index: {}]
  %s14 = inlined_call_operand.vmem [shape: f32[16,8,128], index: 14, kind: output, shape index: {}]
  %s15 = sld [smem:[#allocation0]]
  $region94: #{cholesky_fcn_forward.1} parent=0
    _
  %s17 = ssub.s32 1, %s15
  %s18 = scalar_select 0, %s17, %s15
  $region1: #{cholesky_fcn_forward.1} parent=0
    #allocation3 [shape = 'u8[512]{0}', space=vmem, size = 0x400, scoped, tag = 'input window, operand 6, single buffered']
    #allocation4 [shape = 's32[1]{0}', space=sflag, size = 0x4, scoped, tag = 'scoped memory for cholesky_fcn_forward.1']
    #allocation5 [shape = 'u8[8192]{0}', space=vmem, size = 0x2000, scoped, tag = 'input window, operand 7, single buffered']
    #allocation6 [shape = 's32[1]{0}', space=sflag, size = 0x4, scoped, tag = 'scoped memory for cholesky_fcn_forward.1']
    #allocation7 [shape = 'u8[512]{0}', space=vmem, size = 0x400, scoped, tag = 'input window, operand 8, single buffered']
    #allocation8 [shape = 'u8[8192]{0}', space=vmem, size = 0x2000, scoped, tag = 'input window, operand 9, single buffered']
    #allocation9 [shape = 's32[1]{0}', space=sflag, size = 0x4, scoped, tag = 'scoped memory for cholesky_fcn_forward.1']
    #allocation10 [shape = 'u8[512]{0}', space=vmem, size = 0x400, scoped, tag = 'input window, operand 10, single buffered']
    #allocation11 [shape = 'u8[4096]{0}', space=vmem, size = 0x1000, scoped, tag = 'input window, operand 13, single buffered']
    #allocation12 [shape = 's32[1]{0}', space=sflag, size = 0x4, scoped, tag = 'scoped memory for cholesky_fcn_forward.1']
    %19 = vsyncpa [#allocation4], 0
    %20 = vsyncpa [#allocation6], 0
    %21 = vsyncpa [#allocation9], 0
    %22 = vsyncpa [#allocation12], 0
    // Predicated region
    $region2: #{cholesky_fcn_forward.1} parent=1 // pred_check
      _
    $region3: #{cholesky_fcn_forward.1} parent=1 // pred_check_branch
      %24 = sbr.rel (0) target = $region5
    $region4: #{cholesky_fcn_forward.1} parent=1 // pred_region
      _
    $region5: #{cholesky_fcn_forward.1} parent=1 // pred_fallthru
      _
    // Predicated region
    $region6: #{cholesky_fcn_forward.1} parent=1 // pred_check
      _
    $region7: #{cholesky_fcn_forward.1} parent=1 // pred_check_branch
      %26 = sbr.rel (0) target = $region9
    $region8: #{cholesky_fcn_forward.1} parent=1 // pred_region
      _
    $region9: #{cholesky_fcn_forward.1} parent=1 // pred_fallthru
      _
    // Predicated region
    $region10: #{cholesky_fcn_forward.1} parent=1 // pred_check
      _
    $region11: #{cholesky_fcn_forward.1} parent=1 // pred_check_branch
      %28 = sbr.rel (0) target = $region13
    $region12: #{cholesky_fcn_forward.1} parent=1 // pred_region
      _
    $region13: #{cholesky_fcn_forward.1} parent=1 // pred_fallthru
      _
    // Predicated region
    $region14: #{cholesky_fcn_forward.1} parent=1 // pred_check
      _
    $region15: #{cholesky_fcn_forward.1} parent=1 // pred_check_branch
      %30 = sbr.rel (0) target = $region17
    $region16: #{cholesky_fcn_forward.1} parent=1 // pred_region
      _
    $region17: #{cholesky_fcn_forward.1} parent=1 // pred_fallthru
      _
    // Predicated region
    $region18: #{cholesky_fcn_forward.1} parent=1 // pred_check
      _
    $region19: #{cholesky_fcn_forward.1} parent=1 // pred_check_branch
      %32 = sbr.rel (0) target = $region21
    $region20: #{cholesky_fcn_forward.1} parent=1 // pred_region
      _
    $region21: #{cholesky_fcn_forward.1} parent=1 // pred_fallthru
      _
    // Predicated region
    $region22: #{cholesky_fcn_forward.1} parent=1 // pred_check
      _
    $region23: #{cholesky_fcn_forward.1} parent=1 // pred_check_branch
      %34 = sbr.rel (0) target = $region25
    $region24: #{cholesky_fcn_forward.1} parent=1 // pred_region
      _
    $region25: #{cholesky_fcn_forward.1} parent=1 // pred_fallthru
      _
    // Predicated region
    $region26: #{cholesky_fcn_forward.1} parent=1 // pred_check
      _
    $region27: #{cholesky_fcn_forward.1} parent=1 // pred_check_branch
      %36 = sbr.rel (0) target = $region29
    $region28: #{cholesky_fcn_forward.1} parent=1 // pred_region
      %s38 = ssub.s32 16, 16
      %39 = vsyncadd [#allocation4], %s38
      %s41 = sshll.u32 [#allocation3], 4
      %s42 = int_to_ptr.vmem [resolvable:$true] %s41
      %44 = dma.hbm_to_vmem [thread:$0]  %s6, 16, %s42, [#allocation4]
    $region29: #{cholesky_fcn_forward.1} parent=1 // pred_fallthru
      _
    // Predicated region
    $region30: #{cholesky_fcn_forward.1} parent=1 // pred_check
      _
    $region31: #{cholesky_fcn_forward.1} parent=1 // pred_check_branch
      %46 = sbr.rel (0) target = $region33
    $region32: #{cholesky_fcn_forward.1} parent=1 // pred_region
      %s48 = ssub.s32 256, 256
      %49 = vsyncadd [#allocation6], %s48
      %s50 = sshll.u32 [#allocation5], 4
      %s51 = int_to_ptr.vmem [resolvable:$true] %s50
      %56 = dma.hbm_to_vmem [thread:$0]  %s7, 256, %s51, [#allocation6], 64, 64, 4
    $region33: #{cholesky_fcn_forward.1} parent=1 // pred_fallthru
      _
    // Predicated region
    $region34: #{cholesky_fcn_forward.1} parent=1 // pred_check
      _
    $region35: #{cholesky_fcn_forward.1} parent=1 // pred_check_branch
      %58 = sbr.rel (0) target = $region37
    $region36: #{cholesky_fcn_forward.1} parent=1 // pred_region
      %s60 = ssub.s32 16, 16
      %61 = vsyncadd [#allocation6], %s60
      %s63 = sshll.u32 [#allocation7], 4
      %s64 = int_to_ptr.vmem [resolvable:$true] %s63
      %66 = dma.hbm_to_vmem [thread:$0]  %s8, 16, %s64, [#allocation6]
    $region37: #{cholesky_fcn_forward.1} parent=1 // pred_fallthru
      _
    // Predicated region
    $region38: #{cholesky_fcn_forward.1} parent=1 // pred_check
      _
    $region39: #{cholesky_fcn_forward.1} parent=1 // pred_check_branch
      %68 = sbr.rel (0) target = $region41
    $region40: #{cholesky_fcn_forward.1} parent=1 // pred_region
      %s70 = ssub.s32 256, 256
      %71 = vsyncadd [#allocation9], %s70
      %s72 = sshll.u32 [#allocation8], 4
      %s73 = int_to_ptr.vmem [resolvable:$true] %s72
      %78 = dma.hbm_to_vmem [thread:$0]  %s9, 256, %s73, [#allocation9], 64, 64, 4
    $region41: #{cholesky_fcn_forward.1} parent=1 // pred_fallthru
      _
    // Predicated region
    $region42: #{cholesky_fcn_forward.1} parent=1 // pred_check
      _
    $region43: #{cholesky_fcn_forward.1} parent=1 // pred_check_branch
      %80 = sbr.rel (0) target = $region45
    $region44: #{cholesky_fcn_forward.1} parent=1 // pred_region
      %s82 = ssub.s32 16, 16
      %83 = vsyncadd [#allocation9], %s82
      %s85 = sshll.u32 [#allocation10], 4
      %s86 = int_to_ptr.vmem [resolvable:$true] %s85
      %88 = dma.hbm_to_vmem [thread:$0]  %s10, 16, %s86, [#allocation9]
    $region45: #{cholesky_fcn_forward.1} parent=1 // pred_fallthru
      _
    // Predicated region
    $region46: #{cholesky_fcn_forward.1} parent=1 // pred_check
      _
    $region47: #{cholesky_fcn_forward.1} parent=1 // pred_check_branch
      %90 = sbr.rel (0) target = $region49
    $region48: #{cholesky_fcn_forward.1} parent=1 // pred_region
      _
    $region49: #{cholesky_fcn_forward.1} parent=1 // pred_fallthru
      _
    // Predicated region
    $region50: #{cholesky_fcn_forward.1} parent=1 // pred_check
      _
    $region51: #{cholesky_fcn_forward.1} parent=1 // pred_check_branch
      %92 = sbr.rel (0) target = $region53
    $region52: #{cholesky_fcn_forward.1} parent=1 // pred_region
      _
    $region53: #{cholesky_fcn_forward.1} parent=1 // pred_fallthru
      _
    // Predicated region
    $region54: #{cholesky_fcn_forward.1} parent=1 // pred_check
      _
    $region55: #{cholesky_fcn_forward.1} parent=1 // pred_check_branch
      %94 = sbr.rel (0) target = $region57
    $region56: #{cholesky_fcn_forward.1} parent=1 // pred_region
      %s96 = ssub.s32 128, 128
      %97 = vsyncadd [#allocation12], %s96
      %s99 = sshll.u32 [#allocation11], 4
      %s100 = int_to_ptr.vmem [resolvable:$true] %s99
      %102 = dma.hbm_to_vmem [thread:$0]  %s13, 128, %s100, [#allocation12]
    $region57: #{cholesky_fcn_forward.1} parent=1 // pred_fallthru
      _
    // Predicated region
    $region58: #{cholesky_fcn_forward.1} parent=1 // pred_check
      _
    $region59: #{cholesky_fcn_forward.1} parent=1 // pred_check_branch
      %104 = sbr.rel (0) target = $region61
    $region60: #{cholesky_fcn_forward.1} parent=1 // pred_region
      %105 = dma.done [#allocation4], 16
    $region61: #{cholesky_fcn_forward.1} parent=1 // pred_fallthru
      _
    // Predicated region
    $region62: #{cholesky_fcn_forward.1} parent=1 // pred_check
      _
    $region63: #{cholesky_fcn_forward.1} parent=1 // pred_check_branch
      %107 = sbr.rel (0) target = $region65
    $region64: #{cholesky_fcn_forward.1} parent=1 // pred_region
      %108 = dma.done [#allocation6], 256
    $region65: #{cholesky_fcn_forward.1} parent=1 // pred_fallthru
      _
    // Predicated region
    $region66: #{cholesky_fcn_forward.1} parent=1 // pred_check
      _
    $region67: #{cholesky_fcn_forward.1} parent=1 // pred_check_branch
      %110 = sbr.rel (0) target = $region69
    $region68: #{cholesky_fcn_forward.1} parent=1 // pred_region
      %111 = dma.done [#allocation6], 16
    $region69: #{cholesky_fcn_forward.1} parent=1 // pred_fallthru
      _
    // Predicated region
    $region70: #{cholesky_fcn_forward.1} parent=1 // pred_check
      _
    $region71: #{cholesky_fcn_forward.1} parent=1 // pred_check_branch
      %113 = sbr.rel (0) target = $region73
    $region72: #{cholesky_fcn_forward.1} parent=1 // pred_region
      %114 = dma.done [#allocation9], 256
    $region73: #{cholesky_fcn_forward.1} parent=1 // pred_fallthru
      _
    // Predicated region
    $region74: #{cholesky_fcn_forward.1} parent=1 // pred_check
      _
    $region75: #{cholesky_fcn_forward.1} parent=1 // pred_check_branch
      %116 = sbr.rel (0) target = $region77
    $region76: #{cholesky_fcn_forward.1} parent=1 // pred_region
      %117 = dma.done [#allocation9], 16
    $region77: #{cholesky_fcn_forward.1} parent=1 // pred_fallthru
      _
    // Predicated region
    $region78: #{cholesky_fcn_forward.1} parent=1 // pred_check
      _
    $region79: #{cholesky_fcn_forward.1} parent=1 // pred_check_branch
      %119 = sbr.rel (0) target = $region81
    $region80: #{cholesky_fcn_forward.1} parent=1 // pred_region
      %120 = dma.done [#allocation12], 128
    $region81: #{cholesky_fcn_forward.1} parent=1 // pred_fallthru
      _
    %p122 = scmp.eq.s32.totalorder 0, 0
    // Predicated region
    $region82: #{cholesky_fcn_forward.1} parent=1 // pred_check
      %p123 = pneg %p122
    $region83: #{cholesky_fcn_forward.1} parent=1 // pred_check_branch
      %125 = sbr.rel (%p123) target = $region85
    $region84: #{cholesky_fcn_forward.1} parent=1 // pred_region
      %126 = vst [vmem:[#allocation2] sm:$0xff] 0.0
      %127 = vst [vmem:[#allocation2 + $0x8] sm:$0xff] 0.0
      %128 = vst [vmem:[#allocation2 + $0x10] sm:$0xff] 0.0
      %129 = vst [vmem:[#allocation2 + $0x18] sm:$0xff] 0.0
      %130 = vst [vmem:[#allocation2 + $0x20] sm:$0xff] 0.0
      %131 = vst [vmem:[#allocation2 + $0x28] sm:$0xff] 0.0
      %132 = vst [vmem:[#allocation2 + $0x30] sm:$0xff] 0.0
      %133 = vst [vmem:[#allocation2 + $0x38] sm:$0xff] 0.0
      %134 = vst [vmem:[#allocation2 + $0x40] sm:$0xff] 0.0
      %135 = vst [vmem:[#allocation2 + $0x48] sm:$0xff] 0.0
      %136 = vst [vmem:[#allocation2 + $0x50] sm:$0xff] 0.0
      %137 = vst [vmem:[#allocation2 + $0x58] sm:$0xff] 0.0
      %138 = vst [vmem:[#allocation2 + $0x60] sm:$0xff] 0.0
      %139 = vst [vmem:[#allocation2 + $0x68] sm:$0xff] 0.0
      %140 = vst [vmem:[#allocation2 + $0x70] sm:$0xff] 0.0
      %141 = vst [vmem:[#allocation2 + $0x78] sm:$0xff] 0.0
      %142 = vst [vmem:[#allocation2 + $0x80] sm:$0xff] 0.0
      %143 = vst [vmem:[#allocation2 + $0x88] sm:$0xff] 0.0
      %144 = vst [vmem:[#allocation2 + $0x90] sm:$0xff] 0.0
      %145 = vst [vmem:[#allocation2 + $0x98] sm:$0xff] 0.0
      %146 = vst [vmem:[#allocation2 + $0xa0] sm:$0xff] 0.0
      %147 = vst [vmem:[#allocation2 + $0xa8] sm:$0xff] 0.0
      %148 = vst [vmem:[#allocation2 + $0xb0] sm:$0xff] 0.0
      %149 = vst [vmem:[#allocation2 + $0xb8] sm:$0xff] 0.0
      %150 = vst [vmem:[#allocation2 + $0xc0] sm:$0xff] 0.0
      %151 = vst [vmem:[#allocation2 + $0xc8] sm:$0xff] 0.0
      %152 = vst [vmem:[#allocation2 + $0xd0] sm:$0xff] 0.0
      %153 = vst [vmem:[#allocation2 + $0xd8] sm:$0xff] 0.0
      %154 = vst [vmem:[#allocation2 + $0xe0] sm:$0xff] 0.0
      %155 = vst [vmem:[#allocation2 + $0xe8] sm:$0xff] 0.0
      %156 = vst [vmem:[#allocation2 + $0xf0] sm:$0xff] 0.0
      %157 = vst [vmem:[#allocation2 + $0xf8] sm:$0xff] 0.0
      %158 = vst [vmem:[#allocation2 + $0x100] sm:$0xff] 0.0
      %159 = vst [vmem:[#allocation2 + $0x108] sm:$0xff] 0.0
      %160 = vst [vmem:[#allocation2 + $0x110] sm:$0xff] 0.0
      %161 = vst [vmem:[#allocation2 + $0x118] sm:$0xff] 0.0
      %162 = vst [vmem:[#allocation2 + $0x120] sm:$0xff] 0.0
      %163 = vst [vmem:[#allocation2 + $0x128] sm:$0xff] 0.0
      %164 = vst [vmem:[#allocation2 + $0x130] sm:$0xff] 0.0
      %165 = vst [vmem:[#allocation2 + $0x138] sm:$0xff] 0.0
      %166 = vst [vmem:[#allocation2 + $0x140] sm:$0xff] 0.0
      %167 = vst [vmem:[#allocation2 + $0x148] sm:$0xff] 0.0
      %168 = vst [vmem:[#allocation2 + $0x150] sm:$0xff] 0.0
      %169 = vst [vmem:[#allocation2 + $0x158] sm:$0xff] 0.0
      %170 = vst [vmem:[#allocation2 + $0x160] sm:$0xff] 0.0
      %171 = vst [vmem:[#allocation2 + $0x168] sm:$0xff] 0.0
      %172 = vst [vmem:[#allocation2 + $0x170] sm:$0xff] 0.0
      %173 = vst [vmem:[#allocation2 + $0x178] sm:$0xff] 0.0
      %174 = vst [vmem:[#allocation2 + $0x180] sm:$0xff] 0.0
      %175 = vst [vmem:[#allocation2 + $0x188] sm:$0xff] 0.0
      %176 = vst [vmem:[#allocation2 + $0x190] sm:$0xff] 0.0
      %177 = vst [vmem:[#allocation2 + $0x198] sm:$0xff] 0.0
      %178 = vst [vmem:[#allocation2 + $0x1a0] sm:$0xff] 0.0
      %179 = vst [vmem:[#allocation2 + $0x1a8] sm:$0xff] 0.0
      %180 = vst [vmem:[#allocation2 + $0x1b0] sm:$0xff] 0.0
      %181 = vst [vmem:[#allocation2 + $0x1b8] sm:$0xff] 0.0
      %182 = vst [vmem:[#allocation2 + $0x1c0] sm:$0xff] 0.0
      %183 = vst [vmem:[#allocation2 + $0x1c8] sm:$0xff] 0.0
      %184 = vst [vmem:[#allocation2 + $0x1d0] sm:$0xff] 0.0
      %185 = vst [vmem:[#allocation2 + $0x1d8] sm:$0xff] 0.0
      %186 = vst [vmem:[#allocation2 + $0x1e0] sm:$0xff] 0.0
      %187 = vst [vmem:[#allocation2 + $0x1e8] sm:$0xff] 0.0
      %188 = vst [vmem:[#allocation2 + $0x1f0] sm:$0xff] 0.0
      %189 = vst [vmem:[#allocation2 + $0x1f8] sm:$0xff] 0.0
      %190 = vst [vmem:[#allocation2 + $0x200] sm:$0xff] 0.0
      %191 = vst [vmem:[#allocation2 + $0x208] sm:$0xff] 0.0
      %192 = vst [vmem:[#allocation2 + $0x210] sm:$0xff] 0.0
      %193 = vst [vmem:[#allocation2 + $0x218] sm:$0xff] 0.0
      %194 = vst [vmem:[#allocation2 + $0x220] sm:$0xff] 0.0
      %195 = vst [vmem:[#allocation2 + $0x228] sm:$0xff] 0.0
      %196 = vst [vmem:[#allocation2 + $0x230] sm:$0xff] 0.0
      %197 = vst [vmem:[#allocation2 + $0x238] sm:$0xff] 0.0
      %198 = vst [vmem:[#allocation2 + $0x240] sm:$0xff] 0.0
      %199 = vst [vmem:[#allocation2 + $0x248] sm:$0xff] 0.0
      %200 = vst [vmem:[#allocation2 + $0x250] sm:$0xff] 0.0
      %201 = vst [vmem:[#allocation2 + $0x258] sm:$0xff] 0.0
      %202 = vst [vmem:[#allocation2 + $0x260] sm:$0xff] 0.0
      %203 = vst [vmem:[#allocation2 + $0x268] sm:$0xff] 0.0
      %204 = vst [vmem:[#allocation2 + $0x270] sm:$0xff] 0.0
      %205 = vst [vmem:[#allocation2 + $0x278] sm:$0xff] 0.0
      %206 = vst [vmem:[#allocation2 + $0x280] sm:$0xff] 0.0
      %207 = vst [vmem:[#allocation2 + $0x288] sm:$0xff] 0.0
      %208 = vst [vmem:[#allocation2 + $0x290] sm:$0xff] 0.0
      %209 = vst [vmem:[#allocation2 + $0x298] sm:$0xff] 0.0
      %210 = vst [vmem:[#allocation2 + $0x2a0] sm:$0xff] 0.0
      %211 = vst [vmem:[#allocation2 + $0x2a8] sm:$0xff] 0.0
      %212 = vst [vmem:[#allocation2 + $0x2b0] sm:$0xff] 0.0
      %213 = vst [vmem:[#allocation2 + $0x2b8] sm:$0xff] 0.0
      %214 = vst [vmem:[#allocation2 + $0x2c0] sm:$0xff] 0.0
      %215 = vst [vmem:[#allocation2 + $0x2c8] sm:$0xff] 0.0
      %216 = vst [vmem:[#allocation2 + $0x2d0] sm:$0xff] 0.0
      %217 = vst [vmem:[#allocation2 + $0x2d8] sm:$0xff] 0.0
      %218 = vst [vmem:[#allocation2 + $0x2e0] sm:$0xff] 0.0
      %219 = vst [vmem:[#allocation2 + $0x2e8] sm:$0xff] 0.0
      %220 = vst [vmem:[#allocation2 + $0x2f0] sm:$0xff] 0.0
      %221 = vst [vmem:[#allocation2 + $0x2f8] sm:$0xff] 0.0
      %222 = vst [vmem:[#allocation2 + $0x300] sm:$0xff] 0.0
      %223 = vst [vmem:[#allocation2 + $0x308] sm:$0xff] 0.0
      %224 = vst [vmem:[#allocation2 + $0x310] sm:$0xff] 0.0
      %225 = vst [vmem:[#allocation2 + $0x318] sm:$0xff] 0.0
      %226 = vst [vmem:[#allocation2 + $0x320] sm:$0xff] 0.0
      %227 = vst [vmem:[#allocation2 + $0x328] sm:$0xff] 0.0
      %228 = vst [vmem:[#allocation2 + $0x330] sm:$0xff] 0.0
      %229 = vst [vmem:[#allocation2 + $0x338] sm:$0xff] 0.0
      %230 = vst [vmem:[#allocation2 + $0x340] sm:$0xff] 0.0
      %231 = vst [vmem:[#allocation2 + $0x348] sm:$0xff] 0.0
      %232 = vst [vmem:[#allocation2 + $0x350] sm:$0xff] 0.0
      %233 = vst [vmem:[#allocation2 + $0x358] sm:$0xff] 0.0
      %234 = vst [vmem:[#allocation2 + $0x360] sm:$0xff] 0.0
      %235 = vst [vmem:[#allocation2 + $0x368] sm:$0xff] 0.0
      %236 = vst [vmem:[#allocation2 + $0x370] sm:$0xff] 0.0
      %237 = vst [vmem:[#allocation2 + $0x378] sm:$0xff] 0.0
      %238 = vst [vmem:[#allocation2 + $0x380] sm:$0xff] 0.0
      %239 = vst [vmem:[#allocation2 + $0x388] sm:$0xff] 0.0
      %240 = vst [vmem:[#allocation2 + $0x390] sm:$0xff] 0.0
      %241 = vst [vmem:[#allocation2 + $0x398] sm:$0xff] 0.0
      %242 = vst [vmem:[#allocation2 + $0x3a0] sm:$0xff] 0.0
      %243 = vst [vmem:[#allocation2 + $0x3a8] sm:$0xff] 0.0
      %244 = vst [vmem:[#allocation2 + $0x3b0] sm:$0xff] 0.0
      %245 = vst [vmem:[#allocation2 + $0x3b8] sm:$0xff] 0.0
      %246 = vst [vmem:[#allocation2 + $0x3c0] sm:$0xff] 0.0
      %247 = vst [vmem:[#allocation2 + $0x3c8] sm:$0xff] 0.0
      %248 = vst [vmem:[#allocation2 + $0x3d0] sm:$0xff] 0.0
      %249 = vst [vmem:[#allocation2 + $0x3d8] sm:$0xff] 0.0
      %250 = vst [vmem:[#allocation2 + $0x3e0] sm:$0xff] 0.0
      %251 = vst [vmem:[#allocation2 + $0x3e8] sm:$0xff] 0.0
      %252 = vst [vmem:[#allocation2 + $0x3f0] sm:$0xff] 0.0
      %253 = vst [vmem:[#allocation2 + $0x3f8] sm:$0xff] 0.0
      %254 = vst [vmem:[#allocation2 + $0x400] sm:$0xff] 0.0
      %255 = vst [vmem:[#allocation2 + $0x408] sm:$0xff] 0.0
      %256 = vst [vmem:[#allocation2 + $0x410] sm:$0xff] 0.0
      %257 = vst [vmem:[#allocation2 + $0x418] sm:$0xff] 0.0
      %258 = vst [vmem:[#allocation2 + $0x420] sm:$0xff] 0.0
      %259 = vst [vmem:[#allocation2 + $0x428] sm:$0xff] 0.0
      %260 = vst [vmem:[#allocation2 + $0x430] sm:$0xff] 0.0
      %261 = vst [vmem:[#allocation2 + $0x438] sm:$0xff] 0.0
      %262 = vst [vmem:[#allocation2 + $0x440] sm:$0xff] 0.0
      %263 = vst [vmem:[#allocation2 + $0x448] sm:$0xff] 0.0
      %264 = vst [vmem:[#allocation2 + $0x450] sm:$0xff] 0.0
      %265 = vst [vmem:[#allocation2 + $0x458] sm:$0xff] 0.0
      %266 = vst [vmem:[#allocation2 + $0x460] sm:$0xff] 0.0
      %267 = vst [vmem:[#allocation2 + $0x468] sm:$0xff] 0.0
      %268 = vst [vmem:[#allocation2 + $0x470] sm:$0xff] 0.0
      %269 = vst [vmem:[#allocation2 + $0x478] sm:$0xff] 0.0
      %270 = vst [vmem:[#allocation2 + $0x480] sm:$0xff] 0.0
      %271 = vst [vmem:[#allocation2 + $0x488] sm:$0xff] 0.0
      %272 = vst [vmem:[#allocation2 + $0x490] sm:$0xff] 0.0
      %273 = vst [vmem:[#allocation2 + $0x498] sm:$0xff] 0.0
      %274 = vst [vmem:[#allocation2 + $0x4a0] sm:$0xff] 0.0
      %275 = vst [vmem:[#allocation2 + $0x4a8] sm:$0xff] 0.0
      %276 = vst [vmem:[#allocation2 + $0x4b0] sm:$0xff] 0.0
      %277 = vst [vmem:[#allocation2 + $0x4b8] sm:$0xff] 0.0
      %278 = vst [vmem:[#allocation2 + $0x4c0] sm:$0xff] 0.0
      %279 = vst [vmem:[#allocation2 + $0x4c8] sm:$0xff] 0.0
      %280 = vst [vmem:[#allocation2 + $0x4d0] sm:$0xff] 0.0
      %281 = vst [vmem:[#allocation2 + $0x4d8] sm:$0xff] 0.0
      %282 = vst [vmem:[#allocation2 + $0x4e0] sm:$0xff] 0.0
      %283 = vst [vmem:[#allocation2 + $0x4e8] sm:$0xff] 0.0
      %284 = vst [vmem:[#allocation2 + $0x4f0] sm:$0xff] 0.0
      %285 = vst [vmem:[#allocation2 + $0x4f8] sm:$0xff] 0.0
      %286 = vst [vmem:[#allocation2 + $0x500] sm:$0xff] 0.0
      %287 = vst [vmem:[#allocation2 + $0x508] sm:$0xff] 0.0
      %288 = vst [vmem:[#allocation2 + $0x510] sm:$0xff] 0.0
      %289 = vst [vmem:[#allocation2 + $0x518] sm:$0xff] 0.0
      %290 = vst [vmem:[#allocation2 + $0x520] sm:$0xff] 0.0
      %291 = vst [vmem:[#allocation2 + $0x528] sm:$0xff] 0.0
      %292 = vst [vmem:[#allocation2 + $0x530] sm:$0xff] 0.0
      %293 = vst [vmem:[#allocation2 + $0x538] sm:$0xff] 0.0
      %294 = vst [vmem:[#allocation2 + $0x540] sm:$0xff] 0.0
      %295 = vst [vmem:[#allocation2 + $0x548] sm:$0xff] 0.0
      %296 = vst [vmem:[#allocation2 + $0x550] sm:$0xff] 0.0
      %297 = vst [vmem:[#allocation2 + $0x558] sm:$0xff] 0.0
      %298 = vst [vmem:[#allocation2 + $0x560] sm:$0xff] 0.0
      %299 = vst [vmem:[#allocation2 + $0x568] sm:$0xff] 0.0
      %300 = vst [vmem:[#allocation2 + $0x570] sm:$0xff] 0.0
      %301 = vst [vmem:[#allocation2 + $0x578] sm:$0xff] 0.0
      %302 = vst [vmem:[#allocation2 + $0x580] sm:$0xff] 0.0
      %303 = vst [vmem:[#allocation2 + $0x588] sm:$0xff] 0.0
      %304 = vst [vmem:[#allocation2 + $0x590] sm:$0xff] 0.0
      %305 = vst [vmem:[#allocation2 + $0x598] sm:$0xff] 0.0
      %306 = vst [vmem:[#allocation2 + $0x5a0] sm:$0xff] 0.0
      %307 = vst [vmem:[#allocation2 + $0x5a8] sm:$0xff] 0.0
      %308 = vst [vmem:[#allocation2 + $0x5b0] sm:$0xff] 0.0
      %309 = vst [vmem:[#allocation2 + $0x5b8] sm:$0xff] 0.0
      %310 = vst [vmem:[#allocation2 + $0x5c0] sm:$0xff] 0.0
      %311 = vst [vmem:[#allocation2 + $0x5c8] sm:$0xff] 0.0
      %312 = vst [vmem:[#allocation2 + $0x5d0] sm:$0xff] 0.0
      %313 = vst [vmem:[#allocation2 + $0x5d8] sm:$0xff] 0.0
      %314 = vst [vmem:[#allocation2 + $0x5e0] sm:$0xff] 0.0
      %315 = vst [vmem:[#allocation2 + $0x5e8] sm:$0xff] 0.0
      %316 = vst [vmem:[#allocation2 + $0x5f0] sm:$0xff] 0.0
      %317 = vst [vmem:[#allocation2 + $0x5f8] sm:$0xff] 0.0
      %318 = vst [vmem:[#allocation2 + $0x600] sm:$0xff] 0.0
      %319 = vst [vmem:[#allocation2 + $0x608] sm:$0xff] 0.0
      %320 = vst [vmem:[#allocation2 + $0x610] sm:$0xff] 0.0
      %321 = vst [vmem:[#allocation2 + $0x618] sm:$0xff] 0.0
      %322 = vst [vmem:[#allocation2 + $0x620] sm:$0xff] 0.0
      %323 = vst [vmem:[#allocation2 + $0x628] sm:$0xff] 0.0
      %324 = vst [vmem:[#allocation2 + $0x630] sm:$0xff] 0.0
      %325 = vst [vmem:[#allocation2 + $0x638] sm:$0xff] 0.0
      %326 = vst [vmem:[#allocation2 + $0x640] sm:$0xff] 0.0
      %327 = vst [vmem:[#allocation2 + $0x648] sm:$0xff] 0.0
      %328 = vst [vmem:[#allocation2 + $0x650] sm:$0xff] 0.0
      %329 = vst [vmem:[#allocation2 + $0x658] sm:$0xff] 0.0
      %330 = vst [vmem:[#allocation2 + $0x660] sm:$0xff] 0.0
      %331 = vst [vmem:[#allocation2 + $0x668] sm:$0xff] 0.0
      %332 = vst [vmem:[#allocation2 + $0x670] sm:$0xff] 0.0
      %333 = vst [vmem:[#allocation2 + $0x678] sm:$0xff] 0.0
      %334 = vst [vmem:[#allocation2 + $0x680] sm:$0xff] 0.0
      %335 = vst [vmem:[#allocation2 + $0x688] sm:$0xff] 0.0
      %336 = vst [vmem:[#allocation2 + $0x690] sm:$0xff] 0.0
      %337 = vst [vmem:[#allocation2 + $0x698] sm:$0xff] 0.0
      %338 = vst [vmem:[#allocation2 + $0x6a0] sm:$0xff] 0.0
      %339 = vst [vmem:[#allocation2 + $0x6a8] sm:$0xff] 0.0
      %340 = vst [vmem:[#allocation2 + $0x6b0] sm:$0xff] 0.0
      %341 = vst [vmem:[#allocation2 + $0x6b8] sm:$0xff] 0.0
      %342 = vst [vmem:[#allocation2 + $0x6c0] sm:$0xff] 0.0
      %343 = vst [vmem:[#allocation2 + $0x6c8] sm:$0xff] 0.0
      %344 = vst [vmem:[#allocation2 + $0x6d0] sm:$0xff] 0.0
      %345 = vst [vmem:[#allocation2 + $0x6d8] sm:$0xff] 0.0
      %346 = vst [vmem:[#allocation2 + $0x6e0] sm:$0xff] 0.0
      %347 = vst [vmem:[#allocation2 + $0x6e8] sm:$0xff] 0.0
      %348 = vst [vmem:[#allocation2 + $0x6f0] sm:$0xff] 0.0
      %349 = vst [vmem:[#allocation2 + $0x6f8] sm:$0xff] 0.0
      %350 = vst [vmem:[#allocation2 + $0x700] sm:$0xff] 0.0
      %351 = vst [vmem:[#allocation2 + $0x708] sm:$0xff] 0.0
      %352 = vst [vmem:[#allocation2 + $0x710] sm:$0xff] 0.0
      %353 = vst [vmem:[#allocation2 + $0x718] sm:$0xff] 0.0
      %354 = vst [vmem:[#allocation2 + $0x720] sm:$0xff] 0.0
      %355 = vst [vmem:[#allocation2 + $0x728] sm:$0xff] 0.0
      %356 = vst [vmem:[#allocation2 + $0x730] sm:$0xff] 0.0
      %357 = vst [vmem:[#allocation2 + $0x738] sm:$0xff] 0.0
      %358 = vst [vmem:[#allocation2 + $0x740] sm:$0xff] 0.0
      %359 = vst [vmem:[#allocation2 + $0x748] sm:$0xff] 0.0
      %360 = vst [vmem:[#allocation2 + $0x750] sm:$0xff] 0.0
      %361 = vst [vmem:[#allocation2 + $0x758] sm:$0xff] 0.0
      %362 = vst [vmem:[#allocation2 + $0x760] sm:$0xff] 0.0
      %363 = vst [vmem:[#allocation2 + $0x768] sm:$0xff] 0.0
      %364 = vst [vmem:[#allocation2 + $0x770] sm:$0xff] 0.0
      %365 = vst [vmem:[#allocation2 + $0x778] sm:$0xff] 0.0
      %366 = vst [vmem:[#allocation2 + $0x780] sm:$0xff] 0.0
      %367 = vst [vmem:[#allocation2 + $0x788] sm:$0xff] 0.0
      %368 = vst [vmem:[#allocation2 + $0x790] sm:$0xff] 0.0
      %369 = vst [vmem:[#allocation2 + $0x798] sm:$0xff] 0.0
      %370 = vst [vmem:[#allocation2 + $0x7a0] sm:$0xff] 0.0
      %371 = vst [vmem:[#allocation2 + $0x7a8] sm:$0xff] 0.0
      %372 = vst [vmem:[#allocation2 + $0x7b0] sm:$0xff] 0.0
      %373 = vst [vmem:[#allocation2 + $0x7b8] sm:$0xff] 0.0
      %374 = vst [vmem:[#allocation2 + $0x7c0] sm:$0xff] 0.0
      %375 = vst [vmem:[#allocation2 + $0x7c8] sm:$0xff] 0.0
      %376 = vst [vmem:[#allocation2 + $0x7d0] sm:$0xff] 0.0
      %377 = vst [vmem:[#allocation2 + $0x7d8] sm:$0xff] 0.0
      %378 = vst [vmem:[#allocation2 + $0x7e0] sm:$0xff] 0.0
      %379 = vst [vmem:[#allocation2 + $0x7e8] sm:$0xff] 0.0
      %380 = vst [vmem:[#allocation2 + $0x7f0] sm:$0xff] 0.0
      %381 = vst [vmem:[#allocation2 + $0x7f8] sm:$0xff] 0.0
    $region85: #{cholesky_fcn_forward.1} parent=1 // pred_fallthru
      _
    %v382 = vld [vmem:[%s0] sm:$0xf]
    %v383 = vld [vmem:[%s0 + $0x4] sm:$0xf]
    %v384 = vld [vmem:[%s1] sm:$0xf]
    %v385 = vld [vmem:[%s1 + $0x4] sm:$0xf]
    %v386 = vld [vmem:[%s1 + $0x8] sm:$0xf]
    %v387 = vld [vmem:[%s1 + $0xc] sm:$0xf]
    %v388 = vld [vmem:[%s1 + $0x10] sm:$0xf]
    %v389 = vld [vmem:[%s1 + $0x14] sm:$0xf]
    %v390 = vld [vmem:[%s1 + $0x18] sm:$0xf]
    %v391 = vld [vmem:[%s1 + $0x1c] sm:$0xf]
    %v392 = vld [vmem:[%s1 + $0x20] sm:$0xf]
    %v393 = vld [vmem:[%s1 + $0x24] sm:$0xf]
    %v394 = vld [vmem:[%s1 + $0x28] sm:$0xf]
    %v395 = vld [vmem:[%s1 + $0x2c] sm:$0xf]
    %v396 = vld [vmem:[%s1 + $0x30] sm:$0xf]
    %v397 = vld [vmem:[%s1 + $0x34] sm:$0xf]
    %v398 = vld [vmem:[%s1 + $0x38] sm:$0xf]
    %v399 = vld [vmem:[%s1 + $0x3c] sm:$0xf]
    %v400 = vld [vmem:[%s2] sm:$0x1]
    %v402 = vlaneseq
    %v403 = vshrl.u32 %v402, 7
    %v404 = vsub.s32 0, %v403
    %v405 = vrot.slane %v400, %v404
    %v409 = vunpack.c.l.b16 %v382
    %v410 = vunpack.c.l.b16 %v383
    %v411 = vpack.c.b16 %v410, %v409
    %v429 = vunpack.c.l.b16 %v384
    %v430 = vunpack.c.l.b16 %v385
    %v431 = vunpack.c.l.b16 %v386
    %v432 = vunpack.c.l.b16 %v387
    %v433 = vunpack.c.l.b16 %v388
    %v434 = vunpack.c.l.b16 %v389
    %v435 = vunpack.c.l.b16 %v390
    %v436 = vunpack.c.l.b16 %v391
    %v437 = vunpack.c.l.b16 %v392
    %v438 = vunpack.c.l.b16 %v393
    %v439 = vunpack.c.l.b16 %v394
    %v440 = vunpack.c.l.b16 %v395
    %v441 = vunpack.c.l.b16 %v396
    %v442 = vunpack.c.l.b16 %v397
    %v443 = vunpack.c.l.b16 %v398
    %v444 = vunpack.c.l.b16 %v399
    %v445 = vpack.c.b16 %v430, %v429
    %v446 = vpack.c.b16 %v432, %v431
    %v447 = vpack.c.b16 %v434, %v433
    %v448 = vpack.c.b16 %v436, %v435
    %v449 = vpack.c.b16 %v438, %v437
    %v450 = vpack.c.b16 %v440, %v439
    %v451 = vpack.c.b16 %v442, %v441
    %v452 = vpack.c.b16 %v444, %v443
    %461 = vmatprep.subr.bf16.mxu0 0
    %462 = vmatpush1.bf16.msra.mxu0 %v445
    %463 = vmatprep.subr.bf16.mxu0 0
    %464 = vmatpush1.bf16.msra.mxu0 %v446
    %465 = vmatprep.subr.bf16.mxu0 0
    %466 = vmatpush1.bf16.msra.mxu0 %v447
    %467 = vmatprep.subr.bf16.mxu0 0
    %468 = vmatpush1.bf16.msra.mxu0 %v448
    %469 = vmatprep.subr.bf16.mxu0 0
    %470 = vmatpush1.bf16.msra.mxu0 %v449
    %471 = vmatprep.subr.bf16.mxu0 0
    %472 = vmatpush1.bf16.msra.mxu0 %v450
    %473 = vmatprep.subr.bf16.mxu0 0
    %474 = vmatpush1.bf16.msra.mxu0 %v451
    %475 = vmatprep.subr.bf16.mxu0 0
    %476 = vmatpush1.bf16.msra.mxu0 %v452
    %477 = vmatprep.subr.bf16.mxu0 0
    %478 = vmatpush1.bf16.msra.mxu0 0
    %479 = vmatprep.subr.bf16.mxu0 0
    %480 = vmatpush1.bf16.msra.mxu0 0
    %481 = vmatprep.subr.bf16.mxu0 0
    %482 = vmatpush1.bf16.msra.mxu0 0
    %483 = vmatprep.subr.bf16.mxu0 0
    %484 = vmatpush1.bf16.msra.mxu0 0
    %485 = vmatprep.subr.bf16.mxu0 0
    %486 = vmatpush1.bf16.msra.mxu0 0
    %487 = vmatprep.subr.bf16.mxu0 0
    %488 = vmatpush1.bf16.msra.mxu0 0
    %489 = vmatprep.subr.bf16.mxu0 0
    %490 = vmatpush1.bf16.msra.mxu0 0
    %491 = vmatprep.subr.bf16.mxu0 0
    %492 = vmatpush1.bf16.msra.mxu0 0
    %493 = vmatprep.mubr.bf16.mxu0 0
    %494 = vmatmul.mubr.bf16.gmra.mrb[0].mxu0 %v411
    %v495 = vpop.f32.mrb[0].mxu0
    %v496 = vadd.f32 %v405, %v495
    %v497 = vpop.f32.mrb[0].mxu0
    %v498 = vpop.f32.mrb[0].mxu0
    %v499 = vadd.f32 %v405, %v498
    %v500 = vpop.f32.mrb[0].mxu0
    %501 = vdwg.mxu0
    %v502 = vmax.f32 %v496, 0.0
    %v503 = vmax.f32 %v499, 0.0
    %v504 = vpack.c.bf16 %v503, %v502
    %v505 = vld [vmem:[%s3] sm:$0xf]
    %v506 = vld [vmem:[%s3 + $0x4] sm:$0xf]
    %v507 = vld [vmem:[%s3 + $0x8] sm:$0xf]
    %v508 = vld [vmem:[%s3 + $0xc] sm:$0xf]
    %v509 = vld [vmem:[%s4] sm:$0x1]
    %v511 = vlaneseq
    %v512 = vshrl.u32 %v511, 7
    %v513 = vsub.s32 0, %v512
    %v514 = vrot.slane %v509, %v513
    %v520 = vunpack.c.l.b16 %v505
    %v521 = vunpack.c.l.b16 %v506
    %v522 = vunpack.c.l.b16 %v507
    %v523 = vunpack.c.l.b16 %v508
    %v524 = vpack.c.b16 %v521, %v520
    %v525 = vpack.c.b16 %v523, %v522
    %vm528 = vcmask 261120
    %v530 = vsel %vm528, %v504, 0
    %532 = vmatprep.subr.bf16.mxu0 0
    %533 = vmatpush1.bf16.msra.mxu0 %v524
    %534 = vmatprep.subr.bf16.mxu0 0
    %535 = vmatpush1.bf16.msra.mxu0 %v525
    %536 = vmatprep.subr.bf16.mxu0 0
    %537 = vmatpush1.bf16.msra.mxu0 0
    %538 = vmatprep.subr.bf16.mxu0 0
    %539 = vmatpush1.bf16.msra.mxu0 0
    %540 = vmatprep.subr.bf16.mxu0 0
    %541 = vmatpush1.bf16.msra.mxu0 0
    %542 = vmatprep.subr.bf16.mxu0 0
    %543 = vmatpush1.bf16.msra.mxu0 0
    %544 = vmatprep.subr.bf16.mxu0 0
    %545 = vmatpush1.bf16.msra.mxu0 0
    %546 = vmatprep.subr.bf16.mxu0 0
    %547 = vmatpush1.bf16.msra.mxu0 0
    %548 = vmatprep.subr.bf16.mxu0 0
    %549 = vmatpush1.bf16.msra.mxu0 0
    %550 = vmatprep.subr.bf16.mxu0 0
    %551 = vmatpush1.bf16.msra.mxu0 0
    %552 = vmatprep.subr.bf16.mxu0 0
    %553 = vmatpush1.bf16.msra.mxu0 0
    %554 = vmatprep.subr.bf16.mxu0 0
    %555 = vmatpush1.bf16.msra.mxu0 0
    %556 = vmatprep.subr.bf16.mxu0 0
    %557 = vmatpush1.bf16.msra.mxu0 0
    %558 = vmatprep.subr.bf16.mxu0 0
    %559 = vmatpush1.bf16.msra.mxu0 0
    %560 = vmatprep.subr.bf16.mxu0 0
    %561 = vmatpush1.bf16.msra.mxu0 0
    %562 = vmatprep.subr.bf16.mxu0 0
    %563 = vmatpush1.bf16.msra.mxu0 0
    %564 = vmatprep.mubr.bf16.mxu0 0
    %565 = vmatmul.mubr.bf16.gmra.mrb[0].mxu0 %v530
    %v566 = vpop.f32.mrb[0].mxu0
    %v567 = vadd.f32 %v514, %v566
    %v568 = vpop.f32.mrb[0].mxu0
    %v569 = vpop.f32.mrb[0].mxu0
    %v570 = vadd.f32 %v514, %v569
    %v571 = vpop.f32.mrb[0].mxu0
    %572 = vdwg.mxu0
    %v573 = vmax.f32 %v567, 0.0
    %v574 = vmax.f32 %v570, 0.0
    %v575 = vpack.c.bf16 %v574, %v573
    %v576 = vld [vmem:[%s5] sm:$0xf]
    %v577 = vld [vmem:[%s5 + $0x4] sm:$0xf]
    %v578 = vld [vmem:[%s5 + $0x8] sm:$0xf]
    %v579 = vld [vmem:[%s5 + $0xc] sm:$0xf]
    %v580 = vld [vmem:[#allocation3] sm:$0x1]
    %v582 = vlaneseq
    %v583 = vshrl.u32 %v582, 7
    %v584 = vsub.s32 0, %v583
    %v585 = vrot.slane %v580, %v584
    %v591 = vunpack.c.l.b16 %v576
    %v592 = vunpack.c.l.b16 %v577
    %v593 = vunpack.c.l.b16 %v578
    %v594 = vunpack.c.l.b16 %v579
    %v595 = vpack.c.b16 %v592, %v591
    %v596 = vpack.c.b16 %v594, %v593
    %v600 = vsel %vm528, %v575, 0
    %602 = vmatprep.subr.bf16.mxu0 0
    %603 = vmatpush1.bf16.msra.mxu0 %v595
    %604 = vmatprep.subr.bf16.mxu0 0
    %605 = vmatpush1.bf16.msra.mxu0 %v596
    %606 = vmatprep.subr.bf16.mxu0 0
    %607 = vmatpush1.bf16.msra.mxu0 0
    %608 = vmatprep.subr.bf16.mxu0 0
    %609 = vmatpush1.bf16.msra.mxu0 0
    %610 = vmatprep.subr.bf16.mxu0 0
    %611 = vmatpush1.bf16.msra.mxu0 0
    %612 = vmatprep.subr.bf16.mxu0 0
    %613 = vmatpush1.bf16.msra.mxu0 0
    %614 = vmatprep.subr.bf16.mxu0 0
    %615 = vmatpush1.bf16.msra.mxu0 0
    %616 = vmatprep.subr.bf16.mxu0 0
    %617 = vmatpush1.bf16.msra.mxu0 0
    %618 = vmatprep.subr.bf16.mxu0 0
    %619 = vmatpush1.bf16.msra.mxu0 0
    %620 = vmatprep.subr.bf16.mxu0 0
    %621 = vmatpush1.bf16.msra.mxu0 0
    %622 = vmatprep.subr.bf16.mxu0 0
    %623 = vmatpush1.bf16.msra.mxu0 0
    %624 = vmatprep.subr.bf16.mxu0 0
    %625 = vmatpush1.bf16.msra.mxu0 0
    %626 = vmatprep.subr.bf16.mxu0 0
    %627 = vmatpush1.bf16.msra.mxu0 0
    %628 = vmatprep.subr.bf16.mxu0 0
    %629 = vmatpush1.bf16.msra.mxu0 0
    %630 = vmatprep.subr.bf16.mxu0 0
    %631 = vmatpush1.bf16.msra.mxu0 0
    %632 = vmatprep.subr.bf16.mxu0 0
    %633 = vmatpush1.bf16.msra.mxu0 0
    %634 = vmatprep.mubr.bf16.mxu0 0
    %635 = vmatmul.mubr.bf16.gmra.mrb[0].mxu0 %v600
    %v636 = vpop.f32.mrb[0].mxu0
    %v637 = vadd.f32 %v585, %v636
    %v638 = vpop.f32.mrb[0].mxu0
    %v639 = vpop.f32.mrb[0].mxu0
    %v640 = vadd.f32 %v585, %v639
    %v641 = vpop.f32.mrb[0].mxu0
    %642 = vdwg.mxu0
    %v643 = vmax.f32 %v637, 0.0
    %v644 = vmax.f32 %v640, 0.0
    %v645 = vpack.c.bf16 %v644, %v643
    %v646 = vld [vmem:[#allocation5] sm:$0xf]
    %v647 = vld [vmem:[#allocation5 + $0x4] sm:$0xf]
    %v648 = vld [vmem:[#allocation5 + $0x8] sm:$0xf]
    %v649 = vld [vmem:[#allocation5 + $0xc] sm:$0xf]
    %v650 = vld [vmem:[#allocation7] sm:$0x1]
    %v652 = vlaneseq
    %v653 = vshrl.u32 %v652, 7
    %v654 = vsub.s32 0, %v653
    %v655 = vrot.slane %v650, %v654
    %v661 = vunpack.c.l.b16 %v646
    %v662 = vunpack.c.l.b16 %v647
    %v663 = vunpack.c.l.b16 %v648
    %v664 = vunpack.c.l.b16 %v649
    %v665 = vpack.c.b16 %v662, %v661
    %v666 = vpack.c.b16 %v664, %v663
    %v670 = vsel %vm528, %v645, 0
    %672 = vmatprep.subr.bf16.mxu0 0
    %673 = vmatpush1.bf16.msra.mxu0 %v665
    %674 = vmatprep.subr.bf16.mxu0 0
    %675 = vmatpush1.bf16.msra.mxu0 %v666
    %676 = vmatprep.subr.bf16.mxu0 0
    %677 = vmatpush1.bf16.msra.mxu0 0
    %678 = vmatprep.subr.bf16.mxu0 0
    %679 = vmatpush1.bf16.msra.mxu0 0
    %680 = vmatprep.subr.bf16.mxu0 0
    %681 = vmatpush1.bf16.msra.mxu0 0
    %682 = vmatprep.subr.bf16.mxu0 0
    %683 = vmatpush1.bf16.msra.mxu0 0
    %684 = vmatprep.subr.bf16.mxu0 0
    %685 = vmatpush1.bf16.msra.mxu0 0
    %686 = vmatprep.subr.bf16.mxu0 0
    %687 = vmatpush1.bf16.msra.mxu0 0
    %688 = vmatprep.subr.bf16.mxu0 0
    %689 = vmatpush1.bf16.msra.mxu0 0
    %690 = vmatprep.subr.bf16.mxu0 0
    %691 = vmatpush1.bf16.msra.mxu0 0
    %692 = vmatprep.subr.bf16.mxu0 0
    %693 = vmatpush1.bf16.msra.mxu0 0
    %694 = vmatprep.subr.bf16.mxu0 0
    %695 = vmatpush1.bf16.msra.mxu0 0
    %696 = vmatprep.subr.bf16.mxu0 0
    %697 = vmatpush1.bf16.msra.mxu0 0
    %698 = vmatprep.subr.bf16.mxu0 0
    %699 = vmatpush1.bf16.msra.mxu0 0
    %700 = vmatprep.subr.bf16.mxu0 0
    %701 = vmatpush1.bf16.msra.mxu0 0
    %702 = vmatprep.subr.bf16.mxu0 0
    %703 = vmatpush1.bf16.msra.mxu0 0
    %704 = vmatprep.mubr.bf16.mxu0 0
    %705 = vmatmul.mubr.bf16.gmra.mrb[0].mxu0 %v670
    %v706 = vpop.f32.mrb[0].mxu0
    %v707 = vadd.f32 %v655, %v706
    %v708 = vpop.f32.mrb[0].mxu0
    %v709 = vpop.f32.mrb[0].mxu0
    %v710 = vadd.f32 %v655, %v709
    %v711 = vpop.f32.mrb[0].mxu0
    %712 = vdwg.mxu0
    %v713 = vmax.f32 %v707, 0.0
    %v714 = vmax.f32 %v710, 0.0
    %v715 = vpack.c.bf16 %v714, %v713
    %v716 = vld [vmem:[#allocation8] sm:$0xf]
    %v717 = vld [vmem:[#allocation8 + $0x4] sm:$0xf]
    %v718 = vld [vmem:[#allocation8 + $0x8] sm:$0xf]
    %v719 = vld [vmem:[#allocation8 + $0xc] sm:$0xf]
    %v720 = vld [vmem:[#allocation10] sm:$0x1]
    %v722 = vlaneseq
    %v723 = vshrl.u32 %v722, 7
    %v724 = vsub.s32 0, %v723
    %v725 = vrot.slane %v720, %v724
    %v731 = vunpack.c.l.b16 %v716
    %v732 = vunpack.c.l.b16 %v717
    %v733 = vunpack.c.l.b16 %v718
    %v734 = vunpack.c.l.b16 %v719
    %v735 = vpack.c.b16 %v732, %v731
    %v736 = vpack.c.b16 %v734, %v733
    %v740 = vsel %vm528, %v715, 0
    %742 = vmatprep.subr.bf16.mxu0 0
    %743 = vmatpush1.bf16.msra.mxu0 %v735
    %744 = vmatprep.subr.bf16.mxu0 0
    %745 = vmatpush1.bf16.msra.mxu0 %v736
    %746 = vmatprep.subr.bf16.mxu0 0
    %747 = vmatpush1.bf16.msra.mxu0 0
    %748 = vmatprep.subr.bf16.mxu0 0
    %749 = vmatpush1.bf16.msra.mxu0 0
    %750 = vmatprep.subr.bf16.mxu0 0
    %751 = vmatpush1.bf16.msra.mxu0 0
    %752 = vmatprep.subr.bf16.mxu0 0
    %753 = vmatpush1.bf16.msra.mxu0 0
    %754 = vmatprep.subr.bf16.mxu0 0
    %755 = vmatpush1.bf16.msra.mxu0 0
    %756 = vmatprep.subr.bf16.mxu0 0
    %757 = vmatpush1.bf16.msra.mxu0 0
    %758 = vmatprep.subr.bf16.mxu0 0
    %759 = vmatpush1.bf16.msra.mxu0 0
    %760 = vmatprep.subr.bf16.mxu0 0
    %761 = vmatpush1.bf16.msra.mxu0 0
    %762 = vmatprep.subr.bf16.mxu0 0
    %763 = vmatpush1.bf16.msra.mxu0 0
    %764 = vmatprep.subr.bf16.mxu0 0
    %765 = vmatpush1.bf16.msra.mxu0 0
    %766 = vmatprep.subr.bf16.mxu0 0
    %767 = vmatpush1.bf16.msra.mxu0 0
    %768 = vmatprep.subr.bf16.mxu0 0
    %769 = vmatpush1.bf16.msra.mxu0 0
    %770 = vmatprep.subr.bf16.mxu0 0
    %771 = vmatpush1.bf16.msra.mxu0 0
    %772 = vmatprep.subr.bf16.mxu0 0
    %773 = vmatpush1.bf16.msra.mxu0 0
    %774 = vmatprep.mubr.bf16.mxu0 0
    %775 = vmatmul.mubr.bf16.gmra.mrb[0].mxu0 %v740
    %v776 = vpop.f32.mrb[0].mxu0
    %v777 = vadd.f32 %v725, %v776
    %v778 = vpop.f32.mrb[0].mxu0
    %v779 = vpop.f32.mrb[0].mxu0
    %v780 = vadd.f32 %v725, %v779
    %v781 = vpop.f32.mrb[0].mxu0
    %782 = vdwg.mxu0
    %v783 = vmax.f32 %v777, 0.0
    %v784 = vmax.f32 %v780, 0.0
    %v785 = vpack.c.bf16 %v784, %v783
    %v786 = vld [vmem:[%s11] sm:$0xff]
    %v787 = vld [vmem:[%s11 + $0x8] sm:$0xff]
    %v788 = vld [vmem:[%s11 + $0x10] sm:$0xff]
    %v789 = vld [vmem:[%s11 + $0x18] sm:$0xff]
    %v790 = vld [vmem:[%s11 + $0x20] sm:$0xff]
    %v791 = vld [vmem:[%s11 + $0x28] sm:$0xff]
    %v792 = vld [vmem:[%s11 + $0x30] sm:$0xff]
    %v793 = vld [vmem:[%s11 + $0x38] sm:$0xff]
    %v794 = vld [vmem:[%s11 + $0x40] sm:$0xff]
    %v795 = vld [vmem:[%s11 + $0x48] sm:$0xff]
    %v796 = vld [vmem:[%s11 + $0x50] sm:$0xff]
    %v797 = vld [vmem:[%s11 + $0x58] sm:$0xff]
    %v798 = vld [vmem:[%s11 + $0x60] sm:$0xff]
    %v799 = vld [vmem:[%s11 + $0x68] sm:$0xff]
    %v800 = vld [vmem:[%s11 + $0x70] sm:$0xff]
    %v801 = vld [vmem:[%s11 + $0x78] sm:$0xff]
    %v802 = vld [vmem:[%s12] sm:$0xff]
    %v804 = vlaneseq
    %v805 = vshrl.u32 %v804, 7
    %v806 = vsub.s32 0, %v805
    %v807 = vrot.slane %v802, %v806
    %v808 = vlaneseq
    %v809 = vshrl.u32 %v808, 7
    %v810 = vsub.s32 1, %v809
    %v811 = vrot.slane %v802, %v810
    %v812 = vlaneseq
    %v813 = vshrl.u32 %v812, 7
    %v814 = vsub.s32 2, %v813
    %v815 = vrot.slane %v802, %v814
    %v816 = vlaneseq
    %v817 = vshrl.u32 %v816, 7
    %v818 = vsub.s32 3, %v817
    %v819 = vrot.slane %v802, %v818
    %v820 = vlaneseq
    %v821 = vshrl.u32 %v820, 7
    %v822 = vsub.s32 4, %v821
    %v823 = vrot.slane %v802, %v822
    %v824 = vlaneseq
    %v825 = vshrl.u32 %v824, 7
    %v826 = vsub.s32 5, %v825
    %v827 = vrot.slane %v802, %v826
    %v828 = vlaneseq
    %v829 = vshrl.u32 %v828, 7
    %v830 = vsub.s32 6, %v829
    %v831 = vrot.slane %v802, %v830
    %v832 = vlaneseq
    %v833 = vshrl.u32 %v832, 7
    %v834 = vsub.s32 7, %v833
    %v835 = vrot.slane %v802, %v834
    %v860 = vunpack.c.l.b16 %v786
    %v861 = vunpack.c.h.b16 %v786
    %v862 = vunpack.c.l.b16 %v787
    %v863 = vunpack.c.h.b16 %v787
    %v864 = vunpack.c.l.b16 %v788
    %v865 = vunpack.c.h.b16 %v788
    %v866 = vunpack.c.l.b16 %v789
    %v867 = vunpack.c.h.b16 %v789
    %v868 = vunpack.c.l.b16 %v790
    %v869 = vunpack.c.h.b16 %v790
    %v870 = vunpack.c.l.b16 %v791
    %v871 = vunpack.c.h.b16 %v791
    %v872 = vunpack.c.l.b16 %v792
    %v873 = vunpack.c.h.b16 %v792
    %v874 = vunpack.c.l.b16 %v793
    %v875 = vunpack.c.h.b16 %v793
    %v876 = vunpack.c.l.b16 %v794
    %v877 = vunpack.c.h.b16 %v794
    %v878 = vunpack.c.l.b16 %v795
    %v879 = vunpack.c.h.b16 %v795
    %v880 = vunpack.c.l.b16 %v796
    %v881 = vunpack.c.h.b16 %v796
    %v882 = vunpack.c.l.b16 %v797
    %v883 = vunpack.c.h.b16 %v797
    %v884 = vunpack.c.l.b16 %v798
    %v885 = vunpack.c.h.b16 %v798
    %v886 = vunpack.c.l.b16 %v799
    %v887 = vunpack.c.h.b16 %v799
    %v888 = vunpack.c.l.b16 %v800
    %v889 = vunpack.c.h.b16 %v800
    %v890 = vunpack.c.l.b16 %v801
    %v891 = vunpack.c.h.b16 %v801
    %v892 = vpack.c.b16 %v868, %v860
    %v893 = vpack.c.b16 %v869, %v861
    %v894 = vpack.c.b16 %v870, %v862
    %v895 = vpack.c.b16 %v871, %v863
    %v896 = vpack.c.b16 %v872, %v864
    %v897 = vpack.c.b16 %v873, %v865
    %v898 = vpack.c.b16 %v874, %v866
    %v899 = vpack.c.b16 %v875, %v867
    %v900 = vpack.c.b16 %v884, %v876
    %v901 = vpack.c.b16 %v885, %v877
    %v902 = vpack.c.b16 %v886, %v878
    %v903 = vpack.c.b16 %v887, %v879
    %v904 = vpack.c.b16 %v888, %v880
    %v905 = vpack.c.b16 %v889, %v881
    %v906 = vpack.c.b16 %v890, %v882
    %v907 = vpack.c.b16 %v891, %v883
    %v925 = vsel %vm528, %v785, 0
    %927 = vmatprep.subr.bf16.mxu0 %v893
    %928 = vmatpush1.bf16.msra.mxu0 %v892
    %929 = vmatprep.subr.bf16.mxu0 %v901
    %930 = vmatpush1.bf16.msra.mxu0 %v900
    %931 = vmatprep.subr.bf16.mxu0 0
    %932 = vmatpush1.bf16.msra.mxu0 0
    %933 = vmatprep.subr.bf16.mxu0 0
    %934 = vmatpush1.bf16.msra.mxu0 0
    %935 = vmatprep.subr.bf16.mxu0 0
    %936 = vmatpush1.bf16.msra.mxu0 0
    %937 = vmatprep.subr.bf16.mxu0 0
    %938 = vmatpush1.bf16.msra.mxu0 0
    %939 = vmatprep.subr.bf16.mxu0 0
    %940 = vmatpush1.bf16.msra.mxu0 0
    %941 = vmatprep.subr.bf16.mxu0 0
    %942 = vmatpush1.bf16.msra.mxu0 0
    %943 = vmatprep.subr.bf16.mxu0 0
    %944 = vmatpush1.bf16.msra.mxu0 0
    %945 = vmatprep.subr.bf16.mxu0 0
    %946 = vmatpush1.bf16.msra.mxu0 0
    %947 = vmatprep.subr.bf16.mxu0 0
    %948 = vmatpush1.bf16.msra.mxu0 0
    %949 = vmatprep.subr.bf16.mxu0 0
    %950 = vmatpush1.bf16.msra.mxu0 0
    %951 = vmatprep.subr.bf16.mxu0 0
    %952 = vmatpush1.bf16.msra.mxu0 0
    %953 = vmatprep.subr.bf16.mxu0 0
    %954 = vmatpush1.bf16.msra.mxu0 0
    %955 = vmatprep.subr.bf16.mxu0 0
    %956 = vmatpush1.bf16.msra.mxu0 0
    %957 = vmatprep.subr.bf16.mxu0 0
    %958 = vmatpush1.bf16.msra.mxu0 0
    %959 = vmatprep.mubr.bf16.mxu0 0
    %960 = vmatmul.mubr.bf16.gmra.mrb[0].mxu0 %v925
    %v961 = vpop.f32.mrb[0].mxu0
    %v962 = vadd.f32 %v807, %v961
    %v963 = vpop.f32.mrb[0].mxu0
    %v964 = vadd.f32 %v811, %v963
    %v965 = vpop.f32.mrb[0].mxu0
    %v966 = vadd.f32 %v807, %v965
    %v967 = vpop.f32.mrb[0].mxu0
    %v968 = vadd.f32 %v811, %v967
    %969 = vdwg.mxu0
    %970 = vmatprep.subr.bf16.mxu0 %v895
    %971 = vmatpush1.bf16.msra.mxu0 %v894
    %972 = vmatprep.subr.bf16.mxu0 %v903
    %973 = vmatpush1.bf16.msra.mxu0 %v902
    %974 = vmatprep.subr.bf16.mxu0 0
    %975 = vmatpush1.bf16.msra.mxu0 0
    %976 = vmatprep.subr.bf16.mxu0 0
    %977 = vmatpush1.bf16.msra.mxu0 0
    %978 = vmatprep.subr.bf16.mxu0 0
    %979 = vmatpush1.bf16.msra.mxu0 0
    %980 = vmatprep.subr.bf16.mxu0 0
    %981 = vmatpush1.bf16.msra.mxu0 0
    %982 = vmatprep.subr.bf16.mxu0 0
    %983 = vmatpush1.bf16.msra.mxu0 0
    %984 = vmatprep.subr.bf16.mxu0 0
    %985 = vmatpush1.bf16.msra.mxu0 0
    %986 = vmatprep.subr.bf16.mxu0 0
    %987 = vmatpush1.bf16.msra.mxu0 0
    %988 = vmatprep.subr.bf16.mxu0 0
    %989 = vmatpush1.bf16.msra.mxu0 0
    %990 = vmatprep.subr.bf16.mxu0 0
    %991 = vmatpush1.bf16.msra.mxu0 0
    %992 = vmatprep.subr.bf16.mxu0 0
    %993 = vmatpush1.bf16.msra.mxu0 0
    %994 = vmatprep.subr.bf16.mxu0 0
    %995 = vmatpush1.bf16.msra.mxu0 0
    %996 = vmatprep.subr.bf16.mxu0 0
    %997 = vmatpush1.bf16.msra.mxu0 0
    %998 = vmatprep.subr.bf16.mxu0 0
    %999 = vmatpush1.bf16.msra.mxu0 0
    %1000 = vmatprep.subr.bf16.mxu0 0
    %1001 = vmatpush1.bf16.msra.mxu0 0
    %1002 = vmatprep.mubr.bf16.mxu0 0
    %1003 = vmatmul.mubr.bf16.gmra.mrb[0].mxu0 %v925
    %v1004 = vpop.f32.mrb[0].mxu0
    %v1005 = vadd.f32 %v815, %v1004
    %v1006 = vpop.f32.mrb[0].mxu0
    %v1007 = vadd.f32 %v819, %v1006
    %v1008 = vpop.f32.mrb[0].mxu0
    %v1009 = vadd.f32 %v815, %v1008
    %v1010 = vpop.f32.mrb[0].mxu0
    %v1011 = vadd.f32 %v819, %v1010
    %1012 = vdwg.mxu0
    %1013 = vmatprep.subr.bf16.mxu0 %v897
    %1014 = vmatpush1.bf16.msra.mxu0 %v896
    %1015 = vmatprep.subr.bf16.mxu0 %v905
    %1016 = vmatpush1.bf16.msra.mxu0 %v904
    %1017 = vmatprep.subr.bf16.mxu0 0
    %1018 = vmatpush1.bf16.msra.mxu0 0
    %1019 = vmatprep.subr.bf16.mxu0 0
    %1020 = vmatpush1.bf16.msra.mxu0 0
    %1021 = vmatprep.subr.bf16.mxu0 0
    %1022 = vmatpush1.bf16.msra.mxu0 0
    %1023 = vmatprep.subr.bf16.mxu0 0
    %1024 = vmatpush1.bf16.msra.mxu0 0
    %1025 = vmatprep.subr.bf16.mxu0 0
    %1026 = vmatpush1.bf16.msra.mxu0 0
    %1027 = vmatprep.subr.bf16.mxu0 0
    %1028 = vmatpush1.bf16.msra.mxu0 0
    %1029 = vmatprep.subr.bf16.mxu0 0
    %1030 = vmatpush1.bf16.msra.mxu0 0
    %1031 = vmatprep.subr.bf16.mxu0 0
    %1032 = vmatpush1.bf16.msra.mxu0 0
    %1033 = vmatprep.subr.bf16.mxu0 0
    %1034 = vmatpush1.bf16.msra.mxu0 0
    %1035 = vmatprep.subr.bf16.mxu0 0
    %1036 = vmatpush1.bf16.msra.mxu0 0
    %1037 = vmatprep.subr.bf16.mxu0 0
    %1038 = vmatpush1.bf16.msra.mxu0 0
    %1039 = vmatprep.subr.bf16.mxu0 0
    %1040 = vmatpush1.bf16.msra.mxu0 0
    %1041 = vmatprep.subr.bf16.mxu0 0
    %1042 = vmatpush1.bf16.msra.mxu0 0
    %1043 = vmatprep.subr.bf16.mxu0 0
    %1044 = vmatpush1.bf16.msra.mxu0 0
    %1045 = vmatprep.mubr.bf16.mxu0 0
    %1046 = vmatmul.mubr.bf16.gmra.mrb[0].mxu0 %v925
    %v1047 = vpop.f32.mrb[0].mxu0
    %v1048 = vadd.f32 %v823, %v1047
    %v1049 = vpop.f32.mrb[0].mxu0
    %v1050 = vadd.f32 %v827, %v1049
    %v1051 = vpop.f32.mrb[0].mxu0
    %v1052 = vadd.f32 %v823, %v1051
    %v1053 = vpop.f32.mrb[0].mxu0
    %v1054 = vadd.f32 %v827, %v1053
    %1055 = vdwg.mxu0
    %1056 = vmatprep.subr.bf16.mxu0 %v899
    %1057 = vmatpush1.bf16.msra.mxu0 %v898
    %1058 = vmatprep.subr.bf16.mxu0 %v907
    %1059 = vmatpush1.bf16.msra.mxu0 %v906
    %1060 = vmatprep.subr.bf16.mxu0 0
    %1061 = vmatpush1.bf16.msra.mxu0 0
    %1062 = vmatprep.subr.bf16.mxu0 0
    %1063 = vmatpush1.bf16.msra.mxu0 0
    %1064 = vmatprep.subr.bf16.mxu0 0
    %1065 = vmatpush1.bf16.msra.mxu0 0
    %1066 = vmatprep.subr.bf16.mxu0 0
    %1067 = vmatpush1.bf16.msra.mxu0 0
    %1068 = vmatprep.subr.bf16.mxu0 0
    %1069 = vmatpush1.bf16.msra.mxu0 0
    %1070 = vmatprep.subr.bf16.mxu0 0
    %1071 = vmatpush1.bf16.msra.mxu0 0
    %1072 = vmatprep.subr.bf16.mxu0 0
    %1073 = vmatpush1.bf16.msra.mxu0 0
    %1074 = vmatprep.subr.bf16.mxu0 0
    %1075 = vmatpush1.bf16.msra.mxu0 0
    %1076 = vmatprep.subr.bf16.mxu0 0
    %1077 = vmatpush1.bf16.msra.mxu0 0
    %1078 = vmatprep.subr.bf16.mxu0 0
    %1079 = vmatpush1.bf16.msra.mxu0 0
    %1080 = vmatprep.subr.bf16.mxu0 0
    %1081 = vmatpush1.bf16.msra.mxu0 0
    %1082 = vmatprep.subr.bf16.mxu0 0
    %1083 = vmatpush1.bf16.msra.mxu0 0
    %1084 = vmatprep.subr.bf16.mxu0 0
    %1085 = vmatpush1.bf16.msra.mxu0 0
    %1086 = vmatprep.subr.bf16.mxu0 0
    %1087 = vmatpush1.bf16.msra.mxu0 0
    %1088 = vmatprep.mubr.bf16.mxu0 0
    %1089 = vmatmul.mubr.bf16.gmra.mrb[0].mxu0 %v925
    %v1090 = vpop.f32.mrb[0].mxu0
    %v1091 = vadd.f32 %v831, %v1090
    %v1092 = vpop.f32.mrb[0].mxu0
    %v1093 = vadd.f32 %v835, %v1092
    %v1094 = vpop.f32.mrb[0].mxu0
    %v1095 = vadd.f32 %v831, %v1094
    %v1096 = vpop.f32.mrb[0].mxu0
    %v1097 = vadd.f32 %v835, %v1096
    %1098 = vdwg.mxu0
    %v1101 = vcombine.high %v962, %v962
    %v1103 = vunpack.c.l.s4 1966171168
    %v1104 = vunpack.c.0.s8 %v1103
    %v1105 = vlaneseq
    %v1106 = vshrl.u32 %v1105, 7
    %v1107 = vsub.s32 %v1104, %v1106
    %v1108 = vrot.slane %v962, %v1107
    %v1110 = vunpack.c.l.s4 1966171168
    %v1111 = vunpack.c.0.s8 %v1110
    %v1112 = vlaneseq
    %v1113 = vshrl.u32 %v1112, 7
    %v1114 = vsub.s32 %v1111, %v1113
    %v1115 = vrot.slane %v1101, %v1114
    %v1116 = vcombine.high %v1108, %v1108
    %v1117 = vcombine.high %v1115, %v1115
    %v1119 = vunpack.c.l.s4 1966171168
    %v1120 = vunpack.c.0.s8 %v1119
    %v1121 = vlaneseq
    %v1122 = vshrl.u32 %v1121, 7
    %v1123 = vsub.s32 %v1120, %v1122
    %v1124 = vrot.slane %v1108, %v1123
    %v1126 = vunpack.c.l.s4 1966171168
    %v1127 = vunpack.c.0.s8 %v1126
    %v1128 = vlaneseq
    %v1129 = vshrl.u32 %v1128, 7
    %v1130 = vsub.s32 %v1127, %v1129
    %v1131 = vrot.slane %v1115, %v1130
    %v1133 = vunpack.c.l.s4 1966171168
    %v1134 = vunpack.c.0.s8 %v1133
    %v1135 = vlaneseq
    %v1136 = vshrl.u32 %v1135, 7
    %v1137 = vsub.s32 %v1134, %v1136
    %v1138 = vrot.slane %v1116, %v1137
    %v1140 = vunpack.c.l.s4 1966171168
    %v1141 = vunpack.c.0.s8 %v1140
    %v1142 = vlaneseq
    %v1143 = vshrl.u32 %v1142, 7
    %v1144 = vsub.s32 %v1141, %v1143
    %v1145 = vrot.slane %v1117, %v1144
    %v1146 = vcombine.high %v1124, %v1124
    %v1147 = vcombine.high %v1131, %v1131
    %v1148 = vcombine.high %v1138, %v1138
    %v1149 = vcombine.high %v1145, %v1145
    %v1150 = vcombine.high %v966, %v966
    %v1152 = vunpack.c.l.s4 1966171168
    %v1153 = vunpack.c.0.s8 %v1152
    %v1154 = vlaneseq
    %v1155 = vshrl.u32 %v1154, 7
    %v1156 = vsub.s32 %v1153, %v1155
    %v1157 = vrot.slane %v966, %v1156
    %v1159 = vunpack.c.l.s4 1966171168
    %v1160 = vunpack.c.0.s8 %v1159
    %v1161 = vlaneseq
    %v1162 = vshrl.u32 %v1161, 7
    %v1163 = vsub.s32 %v1160, %v1162
    %v1164 = vrot.slane %v1150, %v1163
    %v1165 = vcombine.high %v1157, %v1157
    %v1166 = vcombine.high %v1164, %v1164
    %v1168 = vunpack.c.l.s4 1966171168
    %v1169 = vunpack.c.0.s8 %v1168
    %v1170 = vlaneseq
    %v1171 = vshrl.u32 %v1170, 7
    %v1172 = vsub.s32 %v1169, %v1171
    %v1173 = vrot.slane %v1157, %v1172
    %v1175 = vunpack.c.l.s4 1966171168
    %v1176 = vunpack.c.0.s8 %v1175
    %v1177 = vlaneseq
    %v1178 = vshrl.u32 %v1177, 7
    %v1179 = vsub.s32 %v1176, %v1178
    %v1180 = vrot.slane %v1164, %v1179
    %v1182 = vunpack.c.l.s4 1966171168
    %v1183 = vunpack.c.0.s8 %v1182
    %v1184 = vlaneseq
    %v1185 = vshrl.u32 %v1184, 7
    %v1186 = vsub.s32 %v1183, %v1185
    %v1187 = vrot.slane %v1165, %v1186
    %v1189 = vunpack.c.l.s4 1966171168
    %v1190 = vunpack.c.0.s8 %v1189
    %v1191 = vlaneseq
    %v1192 = vshrl.u32 %v1191, 7
    %v1193 = vsub.s32 %v1190, %v1192
    %v1194 = vrot.slane %v1166, %v1193
    %v1195 = vcombine.high %v1173, %v1173
    %v1196 = vcombine.high %v1180, %v1180
    %v1197 = vcombine.high %v1187, %v1187
    %v1198 = vcombine.high %v1194, %v1194
    %1215 = vst [vmem:[#allocation2] sm:$0x1] %v1124
    %1216 = vst [vmem:[#allocation2 + $0x80] sm:$0x1] %v1138
    %1217 = vst [vmem:[#allocation2 + $0x100] sm:$0x1] %v1146
    %1218 = vst [vmem:[#allocation2 + $0x180] sm:$0x1] %v1148
    %1219 = vst [vmem:[#allocation2 + $0x200] sm:$0x1] %v1131
    %1220 = vst [vmem:[#allocation2 + $0x280] sm:$0x1] %v1145
    %1221 = vst [vmem:[#allocation2 + $0x300] sm:$0x1] %v1147
    %1222 = vst [vmem:[#allocation2 + $0x380] sm:$0x1] %v1149
    %1223 = vst [vmem:[#allocation2 + $0x400] sm:$0x1] %v1173
    %1224 = vst [vmem:[#allocation2 + $0x480] sm:$0x1] %v1187
    %1225 = vst [vmem:[#allocation2 + $0x500] sm:$0x1] %v1195
    %1226 = vst [vmem:[#allocation2 + $0x580] sm:$0x1] %v1197
    %1227 = vst [vmem:[#allocation2 + $0x600] sm:$0x1] %v1180
    %1228 = vst [vmem:[#allocation2 + $0x680] sm:$0x1] %v1194
    %1229 = vst [vmem:[#allocation2 + $0x700] sm:$0x1] %v1196
    %1230 = vst [vmem:[#allocation2 + $0x780] sm:$0x1] %v1198
    %v1233 = vcombine.high %v964, %v964
    %v1235 = vunpack.c.l.s4 1966171168
    %v1236 = vunpack.c.0.s8 %v1235
    %v1237 = vlaneseq
    %v1238 = vshrl.u32 %v1237, 7
    %v1239 = vsub.s32 %v1236, %v1238
    %v1240 = vrot.slane %v964, %v1239
    %v1242 = vunpack.c.l.s4 1966171168
    %v1243 = vunpack.c.0.s8 %v1242
    %v1244 = vlaneseq
    %v1245 = vshrl.u32 %v1244, 7
    %v1246 = vsub.s32 %v1243, %v1245
    %v1247 = vrot.slane %v1233, %v1246
    %v1248 = vcombine.high %v1240, %v1240
    %v1249 = vcombine.high %v1247, %v1247
    %v1251 = vunpack.c.l.s4 1966171168
    %v1252 = vunpack.c.0.s8 %v1251
    %v1253 = vlaneseq
    %v1254 = vshrl.u32 %v1253, 7
    %v1255 = vsub.s32 %v1252, %v1254
    %v1256 = vrot.slane %v1240, %v1255
    %v1258 = vunpack.c.l.s4 1966171168
    %v1259 = vunpack.c.0.s8 %v1258
    %v1260 = vlaneseq
    %v1261 = vshrl.u32 %v1260, 7
    %v1262 = vsub.s32 %v1259, %v1261
    %v1263 = vrot.slane %v1247, %v1262
    %v1265 = vunpack.c.l.s4 1966171168
    %v1266 = vunpack.c.0.s8 %v1265
    %v1267 = vlaneseq
    %v1268 = vshrl.u32 %v1267, 7
    %v1269 = vsub.s32 %v1266, %v1268
    %v1270 = vrot.slane %v1248, %v1269
    %v1272 = vunpack.c.l.s4 1966171168
    %v1273 = vunpack.c.0.s8 %v1272
    %v1274 = vlaneseq
    %v1275 = vshrl.u32 %v1274, 7
    %v1276 = vsub.s32 %v1273, %v1275
    %v1277 = vrot.slane %v1249, %v1276
    %v1278 = vcombine.high %v1256, %v1256
    %v1279 = vcombine.high %v1263, %v1263
    %v1280 = vcombine.high %v1270, %v1270
    %v1281 = vcombine.high %v1277, %v1277
    %v1282 = vcombine.high %v968, %v968
    %v1284 = vunpack.c.l.s4 1966171168
    %v1285 = vunpack.c.0.s8 %v1284
    %v1286 = vlaneseq
    %v1287 = vshrl.u32 %v1286, 7
    %v1288 = vsub.s32 %v1285, %v1287
    %v1289 = vrot.slane %v968, %v1288
    %v1291 = vunpack.c.l.s4 1966171168
    %v1292 = vunpack.c.0.s8 %v1291
    %v1293 = vlaneseq
    %v1294 = vshrl.u32 %v1293, 7
    %v1295 = vsub.s32 %v1292, %v1294
    %v1296 = vrot.slane %v1282, %v1295
    %v1297 = vcombine.high %v1289, %v1289
    %v1298 = vcombine.high %v1296, %v1296
    %v1300 = vunpack.c.l.s4 1966171168
    %v1301 = vunpack.c.0.s8 %v1300
    %v1302 = vlaneseq
    %v1303 = vshrl.u32 %v1302, 7
    %v1304 = vsub.s32 %v1301, %v1303
    %v1305 = vrot.slane %v1289, %v1304
    %v1307 = vunpack.c.l.s4 1966171168
    %v1308 = vunpack.c.0.s8 %v1307
    %v1309 = vlaneseq
    %v1310 = vshrl.u32 %v1309, 7
    %v1311 = vsub.s32 %v1308, %v1310
    %v1312 = vrot.slane %v1296, %v1311
    %v1314 = vunpack.c.l.s4 1966171168
    %v1315 = vunpack.c.0.s8 %v1314
    %v1316 = vlaneseq
    %v1317 = vshrl.u32 %v1316, 7
    %v1318 = vsub.s32 %v1315, %v1317
    %v1319 = vrot.slane %v1297, %v1318
    %v1321 = vunpack.c.l.s4 1966171168
    %v1322 = vunpack.c.0.s8 %v1321
    %v1323 = vlaneseq
    %v1324 = vshrl.u32 %v1323, 7
    %v1325 = vsub.s32 %v1322, %v1324
    %v1326 = vrot.slane %v1298, %v1325
    %v1327 = vcombine.high %v1305, %v1305
    %v1328 = vcombine.high %v1312, %v1312
    %v1329 = vcombine.high %v1319, %v1319
    %v1330 = vcombine.high %v1326, %v1326
    %1347 = vst [vmem:[#allocation2 + $0x1] sm:$0x1] %v1256
    %1348 = vst [vmem:[#allocation2 + $0x81] sm:$0x1] %v1270
    %1349 = vst [vmem:[#allocation2 + $0x101] sm:$0x1] %v1278
    %1350 = vst [vmem:[#allocation2 + $0x181] sm:$0x1] %v1280
    %1351 = vst [vmem:[#allocation2 + $0x201] sm:$0x1] %v1263
    %1352 = vst [vmem:[#allocation2 + $0x281] sm:$0x1] %v1277
    %1353 = vst [vmem:[#allocation2 + $0x301] sm:$0x1] %v1279
    %1354 = vst [vmem:[#allocation2 + $0x381] sm:$0x1] %v1281
    %1355 = vst [vmem:[#allocation2 + $0x401] sm:$0x1] %v1305
    %1356 = vst [vmem:[#allocation2 + $0x481] sm:$0x1] %v1319
    %1357 = vst [vmem:[#allocation2 + $0x501] sm:$0x1] %v1327
    %1358 = vst [vmem:[#allocation2 + $0x581] sm:$0x1] %v1329
    %1359 = vst [vmem:[#allocation2 + $0x601] sm:$0x1] %v1312
    %1360 = vst [vmem:[#allocation2 + $0x681] sm:$0x1] %v1326
    %1361 = vst [vmem:[#allocation2 + $0x701] sm:$0x1] %v1328
    %1362 = vst [vmem:[#allocation2 + $0x781] sm:$0x1] %v1330
    %v1365 = vcombine.high %v1005, %v1005
    %v1367 = vunpack.c.l.s4 1966171168
    %v1368 = vunpack.c.0.s8 %v1367
    %v1369 = vlaneseq
    %v1370 = vshrl.u32 %v1369, 7
    %v1371 = vsub.s32 %v1368, %v1370
    %v1372 = vrot.slane %v1005, %v1371
    %v1374 = vunpack.c.l.s4 1966171168
    %v1375 = vunpack.c.0.s8 %v1374
    %v1376 = vlaneseq
    %v1377 = vshrl.u32 %v1376, 7
    %v1378 = vsub.s32 %v1375, %v1377
    %v1379 = vrot.slane %v1365, %v1378
    %v1380 = vcombine.high %v1372, %v1372
    %v1381 = vcombine.high %v1379, %v1379
    %v1383 = vunpack.c.l.s4 1966171168
    %v1384 = vunpack.c.0.s8 %v1383
    %v1385 = vlaneseq
    %v1386 = vshrl.u32 %v1385, 7
    %v1387 = vsub.s32 %v1384, %v1386
    %v1388 = vrot.slane %v1372, %v1387
    %v1390 = vunpack.c.l.s4 1966171168
    %v1391 = vunpack.c.0.s8 %v1390
    %v1392 = vlaneseq
    %v1393 = vshrl.u32 %v1392, 7
    %v1394 = vsub.s32 %v1391, %v1393
    %v1395 = vrot.slane %v1379, %v1394
    %v1397 = vunpack.c.l.s4 1966171168
    %v1398 = vunpack.c.0.s8 %v1397
    %v1399 = vlaneseq
    %v1400 = vshrl.u32 %v1399, 7
    %v1401 = vsub.s32 %v1398, %v1400
    %v1402 = vrot.slane %v1380, %v1401
    %v1404 = vunpack.c.l.s4 1966171168
    %v1405 = vunpack.c.0.s8 %v1404
    %v1406 = vlaneseq
    %v1407 = vshrl.u32 %v1406, 7
    %v1408 = vsub.s32 %v1405, %v1407
    %v1409 = vrot.slane %v1381, %v1408
    %v1410 = vcombine.high %v1388, %v1388
    %v1411 = vcombine.high %v1395, %v1395
    %v1412 = vcombine.high %v1402, %v1402
    %v1413 = vcombine.high %v1409, %v1409
    %v1414 = vcombine.high %v1009, %v1009
    %v1416 = vunpack.c.l.s4 1966171168
    %v1417 = vunpack.c.0.s8 %v1416
    %v1418 = vlaneseq
    %v1419 = vshrl.u32 %v1418, 7
    %v1420 = vsub.s32 %v1417, %v1419
    %v1421 = vrot.slane %v1009, %v1420
    %v1423 = vunpack.c.l.s4 1966171168
    %v1424 = vunpack.c.0.s8 %v1423
    %v1425 = vlaneseq
    %v1426 = vshrl.u32 %v1425, 7
    %v1427 = vsub.s32 %v1424, %v1426
    %v1428 = vrot.slane %v1414, %v1427
    %v1429 = vcombine.high %v1421, %v1421
    %v1430 = vcombine.high %v1428, %v1428
    %v1432 = vunpack.c.l.s4 1966171168
    %v1433 = vunpack.c.0.s8 %v1432
    %v1434 = vlaneseq
    %v1435 = vshrl.u32 %v1434, 7
    %v1436 = vsub.s32 %v1433, %v1435
    %v1437 = vrot.slane %v1421, %v1436
    %v1439 = vunpack.c.l.s4 1966171168
    %v1440 = vunpack.c.0.s8 %v1439
    %v1441 = vlaneseq
    %v1442 = vshrl.u32 %v1441, 7
    %v1443 = vsub.s32 %v1440, %v1442
    %v1444 = vrot.slane %v1428, %v1443
    %v1446 = vunpack.c.l.s4 1966171168
    %v1447 = vunpack.c.0.s8 %v1446
    %v1448 = vlaneseq
    %v1449 = vshrl.u32 %v1448, 7
    %v1450 = vsub.s32 %v1447, %v1449
    %v1451 = vrot.slane %v1429, %v1450
    %v1453 = vunpack.c.l.s4 1966171168
    %v1454 = vunpack.c.0.s8 %v1453
    %v1455 = vlaneseq
    %v1456 = vshrl.u32 %v1455, 7
    %v1457 = vsub.s32 %v1454, %v1456
    %v1458 = vrot.slane %v1430, %v1457
    %v1459 = vcombine.high %v1437, %v1437
    %v1460 = vcombine.high %v1444, %v1444
    %v1461 = vcombine.high %v1451, %v1451
    %v1462 = vcombine.high %v1458, %v1458
    %1479 = vst [vmem:[#allocation2 + $0x2] sm:$0x1] %v1388
    %1480 = vst [vmem:[#allocation2 + $0x82] sm:$0x1] %v1402
    %1481 = vst [vmem:[#allocation2 + $0x102] sm:$0x1] %v1410
    %1482 = vst [vmem:[#allocation2 + $0x182] sm:$0x1] %v1412
    %1483 = vst [vmem:[#allocation2 + $0x202] sm:$0x1] %v1395
    %1484 = vst [vmem:[#allocation2 + $0x282] sm:$0x1] %v1409
    %1485 = vst [vmem:[#allocation2 + $0x302] sm:$0x1] %v1411
    %1486 = vst [vmem:[#allocation2 + $0x382] sm:$0x1] %v1413
    %1487 = vst [vmem:[#allocation2 + $0x402] sm:$0x1] %v1437
    %1488 = vst [vmem:[#allocation2 + $0x482] sm:$0x1] %v1451
    %1489 = vst [vmem:[#allocation2 + $0x502] sm:$0x1] %v1459
    %1490 = vst [vmem:[#allocation2 + $0x582] sm:$0x1] %v1461
    %1491 = vst [vmem:[#allocation2 + $0x602] sm:$0x1] %v1444
    %1492 = vst [vmem:[#allocation2 + $0x682] sm:$0x1] %v1458
    %1493 = vst [vmem:[#allocation2 + $0x702] sm:$0x1] %v1460
    %1494 = vst [vmem:[#allocation2 + $0x782] sm:$0x1] %v1462
    %v1497 = vcombine.high %v1007, %v1007
    %v1499 = vunpack.c.l.s4 1966171168
    %v1500 = vunpack.c.0.s8 %v1499
    %v1501 = vlaneseq
    %v1502 = vshrl.u32 %v1501, 7
    %v1503 = vsub.s32 %v1500, %v1502
    %v1504 = vrot.slane %v1007, %v1503
    %v1506 = vunpack.c.l.s4 1966171168
    %v1507 = vunpack.c.0.s8 %v1506
    %v1508 = vlaneseq
    %v1509 = vshrl.u32 %v1508, 7
    %v1510 = vsub.s32 %v1507, %v1509
    %v1511 = vrot.slane %v1497, %v1510
    %v1512 = vcombine.high %v1504, %v1504
    %v1513 = vcombine.high %v1511, %v1511
    %v1515 = vunpack.c.l.s4 1966171168
    %v1516 = vunpack.c.0.s8 %v1515
    %v1517 = vlaneseq
    %v1518 = vshrl.u32 %v1517, 7
    %v1519 = vsub.s32 %v1516, %v1518
    %v1520 = vrot.slane %v1504, %v1519
    %v1522 = vunpack.c.l.s4 1966171168
    %v1523 = vunpack.c.0.s8 %v1522
    %v1524 = vlaneseq
    %v1525 = vshrl.u32 %v1524, 7
    %v1526 = vsub.s32 %v1523, %v1525
    %v1527 = vrot.slane %v1511, %v1526
    %v1529 = vunpack.c.l.s4 1966171168
    %v1530 = vunpack.c.0.s8 %v1529
    %v1531 = vlaneseq
    %v1532 = vshrl.u32 %v1531, 7
    %v1533 = vsub.s32 %v1530, %v1532
    %v1534 = vrot.slane %v1512, %v1533
    %v1536 = vunpack.c.l.s4 1966171168
    %v1537 = vunpack.c.0.s8 %v1536
    %v1538 = vlaneseq
    %v1539 = vshrl.u32 %v1538, 7
    %v1540 = vsub.s32 %v1537, %v1539
    %v1541 = vrot.slane %v1513, %v1540
    %v1542 = vcombine.high %v1520, %v1520
    %v1543 = vcombine.high %v1527, %v1527
    %v1544 = vcombine.high %v1534, %v1534
    %v1545 = vcombine.high %v1541, %v1541
    %v1546 = vcombine.high %v1011, %v1011
    %v1548 = vunpack.c.l.s4 1966171168
    %v1549 = vunpack.c.0.s8 %v1548
    %v1550 = vlaneseq
    %v1551 = vshrl.u32 %v1550, 7
    %v1552 = vsub.s32 %v1549, %v1551
    %v1553 = vrot.slane %v1011, %v1552
    %v1555 = vunpack.c.l.s4 1966171168
    %v1556 = vunpack.c.0.s8 %v1555
    %v1557 = vlaneseq
    %v1558 = vshrl.u32 %v1557, 7
    %v1559 = vsub.s32 %v1556, %v1558
    %v1560 = vrot.slane %v1546, %v1559
    %v1561 = vcombine.high %v1553, %v1553
    %v1562 = vcombine.high %v1560, %v1560
    %v1564 = vunpack.c.l.s4 1966171168
    %v1565 = vunpack.c.0.s8 %v1564
    %v1566 = vlaneseq
    %v1567 = vshrl.u32 %v1566, 7
    %v1568 = vsub.s32 %v1565, %v1567
    %v1569 = vrot.slane %v1553, %v1568
    %v1571 = vunpack.c.l.s4 1966171168
    %v1572 = vunpack.c.0.s8 %v1571
    %v1573 = vlaneseq
    %v1574 = vshrl.u32 %v1573, 7
    %v1575 = vsub.s32 %v1572, %v1574
    %v1576 = vrot.slane %v1560, %v1575
    %v1578 = vunpack.c.l.s4 1966171168
    %v1579 = vunpack.c.0.s8 %v1578
    %v1580 = vlaneseq
    %v1581 = vshrl.u32 %v1580, 7
    %v1582 = vsub.s32 %v1579, %v1581
    %v1583 = vrot.slane %v1561, %v1582
    %v1585 = vunpack.c.l.s4 1966171168
    %v1586 = vunpack.c.0.s8 %v1585
    %v1587 = vlaneseq
    %v1588 = vshrl.u32 %v1587, 7
    %v1589 = vsub.s32 %v1586, %v1588
    %v1590 = vrot.slane %v1562, %v1589
    %v1591 = vcombine.high %v1569, %v1569
    %v1592 = vcombine.high %v1576, %v1576
    %v1593 = vcombine.high %v1583, %v1583
    %v1594 = vcombine.high %v1590, %v1590
    %1611 = vst [vmem:[#allocation2 + $0x3] sm:$0x1] %v1520
    %1612 = vst [vmem:[#allocation2 + $0x83] sm:$0x1] %v1534
    %1613 = vst [vmem:[#allocation2 + $0x103] sm:$0x1] %v1542
    %1614 = vst [vmem:[#allocation2 + $0x183] sm:$0x1] %v1544
    %1615 = vst [vmem:[#allocation2 + $0x203] sm:$0x1] %v1527
    %1616 = vst [vmem:[#allocation2 + $0x283] sm:$0x1] %v1541
    %1617 = vst [vmem:[#allocation2 + $0x303] sm:$0x1] %v1543
    %1618 = vst [vmem:[#allocation2 + $0x383] sm:$0x1] %v1545
    %1619 = vst [vmem:[#allocation2 + $0x403] sm:$0x1] %v1569
    %1620 = vst [vmem:[#allocation2 + $0x483] sm:$0x1] %v1583
    %1621 = vst [vmem:[#allocation2 + $0x503] sm:$0x1] %v1591
    %1622 = vst [vmem:[#allocation2 + $0x583] sm:$0x1] %v1593
    %1623 = vst [vmem:[#allocation2 + $0x603] sm:$0x1] %v1576
    %1624 = vst [vmem:[#allocation2 + $0x683] sm:$0x1] %v1590
    %1625 = vst [vmem:[#allocation2 + $0x703] sm:$0x1] %v1592
    %1626 = vst [vmem:[#allocation2 + $0x783] sm:$0x1] %v1594
    %v1629 = vcombine.high %v1048, %v1048
    %v1631 = vunpack.c.l.s4 1966171168
    %v1632 = vunpack.c.0.s8 %v1631
    %v1633 = vlaneseq
    %v1634 = vshrl.u32 %v1633, 7
    %v1635 = vsub.s32 %v1632, %v1634
    %v1636 = vrot.slane %v1048, %v1635
    %v1638 = vunpack.c.l.s4 1966171168
    %v1639 = vunpack.c.0.s8 %v1638
    %v1640 = vlaneseq
    %v1641 = vshrl.u32 %v1640, 7
    %v1642 = vsub.s32 %v1639, %v1641
    %v1643 = vrot.slane %v1629, %v1642
    %v1644 = vcombine.high %v1636, %v1636
    %v1645 = vcombine.high %v1643, %v1643
    %v1647 = vunpack.c.l.s4 1966171168
    %v1648 = vunpack.c.0.s8 %v1647
    %v1649 = vlaneseq
    %v1650 = vshrl.u32 %v1649, 7
    %v1651 = vsub.s32 %v1648, %v1650
    %v1652 = vrot.slane %v1636, %v1651
    %v1654 = vunpack.c.l.s4 1966171168
    %v1655 = vunpack.c.0.s8 %v1654
    %v1656 = vlaneseq
    %v1657 = vshrl.u32 %v1656, 7
    %v1658 = vsub.s32 %v1655, %v1657
    %v1659 = vrot.slane %v1643, %v1658
    %v1661 = vunpack.c.l.s4 1966171168
    %v1662 = vunpack.c.0.s8 %v1661
    %v1663 = vlaneseq
    %v1664 = vshrl.u32 %v1663, 7
    %v1665 = vsub.s32 %v1662, %v1664
    %v1666 = vrot.slane %v1644, %v1665
    %v1668 = vunpack.c.l.s4 1966171168
    %v1669 = vunpack.c.0.s8 %v1668
    %v1670 = vlaneseq
    %v1671 = vshrl.u32 %v1670, 7
    %v1672 = vsub.s32 %v1669, %v1671
    %v1673 = vrot.slane %v1645, %v1672
    %v1674 = vcombine.high %v1652, %v1652
    %v1675 = vcombine.high %v1659, %v1659
    %v1676 = vcombine.high %v1666, %v1666
    %v1677 = vcombine.high %v1673, %v1673
    %v1678 = vcombine.high %v1052, %v1052
    %v1680 = vunpack.c.l.s4 1966171168
    %v1681 = vunpack.c.0.s8 %v1680
    %v1682 = vlaneseq
    %v1683 = vshrl.u32 %v1682, 7
    %v1684 = vsub.s32 %v1681, %v1683
    %v1685 = vrot.slane %v1052, %v1684
    %v1687 = vunpack.c.l.s4 1966171168
    %v1688 = vunpack.c.0.s8 %v1687
    %v1689 = vlaneseq
    %v1690 = vshrl.u32 %v1689, 7
    %v1691 = vsub.s32 %v1688, %v1690
    %v1692 = vrot.slane %v1678, %v1691
    %v1693 = vcombine.high %v1685, %v1685
    %v1694 = vcombine.high %v1692, %v1692
    %v1696 = vunpack.c.l.s4 1966171168
    %v1697 = vunpack.c.0.s8 %v1696
    %v1698 = vlaneseq
    %v1699 = vshrl.u32 %v1698, 7
    %v1700 = vsub.s32 %v1697, %v1699
    %v1701 = vrot.slane %v1685, %v1700
    %v1703 = vunpack.c.l.s4 1966171168
    %v1704 = vunpack.c.0.s8 %v1703
    %v1705 = vlaneseq
    %v1706 = vshrl.u32 %v1705, 7
    %v1707 = vsub.s32 %v1704, %v1706
    %v1708 = vrot.slane %v1692, %v1707
    %v1710 = vunpack.c.l.s4 1966171168
    %v1711 = vunpack.c.0.s8 %v1710
    %v1712 = vlaneseq
    %v1713 = vshrl.u32 %v1712, 7
    %v1714 = vsub.s32 %v1711, %v1713
    %v1715 = vrot.slane %v1693, %v1714
    %v1717 = vunpack.c.l.s4 1966171168
    %v1718 = vunpack.c.0.s8 %v1717
    %v1719 = vlaneseq
    %v1720 = vshrl.u32 %v1719, 7
    %v1721 = vsub.s32 %v1718, %v1720
    %v1722 = vrot.slane %v1694, %v1721
    %v1723 = vcombine.high %v1701, %v1701
    %v1724 = vcombine.high %v1708, %v1708
    %v1725 = vcombine.high %v1715, %v1715
    %v1726 = vcombine.high %v1722, %v1722
    %1743 = vst [vmem:[#allocation2 + $0x4] sm:$0x1] %v1652
    %1744 = vst [vmem:[#allocation2 + $0x84] sm:$0x1] %v1666
    %1745 = vst [vmem:[#allocation2 + $0x104] sm:$0x1] %v1674
    %1746 = vst [vmem:[#allocation2 + $0x184] sm:$0x1] %v1676
    %1747 = vst [vmem:[#allocation2 + $0x204] sm:$0x1] %v1659
    %1748 = vst [vmem:[#allocation2 + $0x284] sm:$0x1] %v1673
    %1749 = vst [vmem:[#allocation2 + $0x304] sm:$0x1] %v1675
    %1750 = vst [vmem:[#allocation2 + $0x384] sm:$0x1] %v1677
    %1751 = vst [vmem:[#allocation2 + $0x404] sm:$0x1] %v1701
    %1752 = vst [vmem:[#allocation2 + $0x484] sm:$0x1] %v1715
    %1753 = vst [vmem:[#allocation2 + $0x504] sm:$0x1] %v1723
    %1754 = vst [vmem:[#allocation2 + $0x584] sm:$0x1] %v1725
    %1755 = vst [vmem:[#allocation2 + $0x604] sm:$0x1] %v1708
    %1756 = vst [vmem:[#allocation2 + $0x684] sm:$0x1] %v1722
    %1757 = vst [vmem:[#allocation2 + $0x704] sm:$0x1] %v1724
    %1758 = vst [vmem:[#allocation2 + $0x784] sm:$0x1] %v1726
    %v1761 = vcombine.high %v1050, %v1050
    %v1763 = vunpack.c.l.s4 1966171168
    %v1764 = vunpack.c.0.s8 %v1763
    %v1765 = vlaneseq
    %v1766 = vshrl.u32 %v1765, 7
    %v1767 = vsub.s32 %v1764, %v1766
    %v1768 = vrot.slane %v1050, %v1767
    %v1770 = vunpack.c.l.s4 1966171168
    %v1771 = vunpack.c.0.s8 %v1770
    %v1772 = vlaneseq
    %v1773 = vshrl.u32 %v1772, 7
    %v1774 = vsub.s32 %v1771, %v1773
    %v1775 = vrot.slane %v1761, %v1774
    %v1776 = vcombine.high %v1768, %v1768
    %v1777 = vcombine.high %v1775, %v1775
    %v1779 = vunpack.c.l.s4 1966171168
    %v1780 = vunpack.c.0.s8 %v1779
    %v1781 = vlaneseq
    %v1782 = vshrl.u32 %v1781, 7
    %v1783 = vsub.s32 %v1780, %v1782
    %v1784 = vrot.slane %v1768, %v1783
    %v1786 = vunpack.c.l.s4 1966171168
    %v1787 = vunpack.c.0.s8 %v1786
    %v1788 = vlaneseq
    %v1789 = vshrl.u32 %v1788, 7
    %v1790 = vsub.s32 %v1787, %v1789
    %v1791 = vrot.slane %v1775, %v1790
    %v1793 = vunpack.c.l.s4 1966171168
    %v1794 = vunpack.c.0.s8 %v1793
    %v1795 = vlaneseq
    %v1796 = vshrl.u32 %v1795, 7
    %v1797 = vsub.s32 %v1794, %v1796
    %v1798 = vrot.slane %v1776, %v1797
    %v1800 = vunpack.c.l.s4 1966171168
    %v1801 = vunpack.c.0.s8 %v1800
    %v1802 = vlaneseq
    %v1803 = vshrl.u32 %v1802, 7
    %v1804 = vsub.s32 %v1801, %v1803
    %v1805 = vrot.slane %v1777, %v1804
    %v1806 = vcombine.high %v1784, %v1784
    %v1807 = vcombine.high %v1791, %v1791
    %v1808 = vcombine.high %v1798, %v1798
    %v1809 = vcombine.high %v1805, %v1805
    %v1810 = vcombine.high %v1054, %v1054
    %v1812 = vunpack.c.l.s4 1966171168
    %v1813 = vunpack.c.0.s8 %v1812
    %v1814 = vlaneseq
    %v1815 = vshrl.u32 %v1814, 7
    %v1816 = vsub.s32 %v1813, %v1815
    %v1817 = vrot.slane %v1054, %v1816
    %v1819 = vunpack.c.l.s4 1966171168
    %v1820 = vunpack.c.0.s8 %v1819
    %v1821 = vlaneseq
    %v1822 = vshrl.u32 %v1821, 7
    %v1823 = vsub.s32 %v1820, %v1822
    %v1824 = vrot.slane %v1810, %v1823
    %v1825 = vcombine.high %v1817, %v1817
    %v1826 = vcombine.high %v1824, %v1824
    %v1828 = vunpack.c.l.s4 1966171168
    %v1829 = vunpack.c.0.s8 %v1828
    %v1830 = vlaneseq
    %v1831 = vshrl.u32 %v1830, 7
    %v1832 = vsub.s32 %v1829, %v1831
    %v1833 = vrot.slane %v1817, %v1832
    %v1835 = vunpack.c.l.s4 1966171168
    %v1836 = vunpack.c.0.s8 %v1835
    %v1837 = vlaneseq
    %v1838 = vshrl.u32 %v1837, 7
    %v1839 = vsub.s32 %v1836, %v1838
    %v1840 = vrot.slane %v1824, %v1839
    %v1842 = vunpack.c.l.s4 1966171168
    %v1843 = vunpack.c.0.s8 %v1842
    %v1844 = vlaneseq
    %v1845 = vshrl.u32 %v1844, 7
    %v1846 = vsub.s32 %v1843, %v1845
    %v1847 = vrot.slane %v1825, %v1846
    %v1849 = vunpack.c.l.s4 1966171168
    %v1850 = vunpack.c.0.s8 %v1849
    %v1851 = vlaneseq
    %v1852 = vshrl.u32 %v1851, 7
    %v1853 = vsub.s32 %v1850, %v1852
    %v1854 = vrot.slane %v1826, %v1853
    %v1855 = vcombine.high %v1833, %v1833
    %v1856 = vcombine.high %v1840, %v1840
    %v1857 = vcombine.high %v1847, %v1847
    %v1858 = vcombine.high %v1854, %v1854
    %1875 = vst [vmem:[#allocation2 + $0x5] sm:$0x1] %v1784
    %1876 = vst [vmem:[#allocation2 + $0x85] sm:$0x1] %v1798
    %1877 = vst [vmem:[#allocation2 + $0x105] sm:$0x1] %v1806
    %1878 = vst [vmem:[#allocation2 + $0x185] sm:$0x1] %v1808
    %1879 = vst [vmem:[#allocation2 + $0x205] sm:$0x1] %v1791
    %1880 = vst [vmem:[#allocation2 + $0x285] sm:$0x1] %v1805
    %1881 = vst [vmem:[#allocation2 + $0x305] sm:$0x1] %v1807
    %1882 = vst [vmem:[#allocation2 + $0x385] sm:$0x1] %v1809
    %1883 = vst [vmem:[#allocation2 + $0x405] sm:$0x1] %v1833
    %1884 = vst [vmem:[#allocation2 + $0x485] sm:$0x1] %v1847
    %1885 = vst [vmem:[#allocation2 + $0x505] sm:$0x1] %v1855
    %1886 = vst [vmem:[#allocation2 + $0x585] sm:$0x1] %v1857
    %1887 = vst [vmem:[#allocation2 + $0x605] sm:$0x1] %v1840
    %1888 = vst [vmem:[#allocation2 + $0x685] sm:$0x1] %v1854
    %1889 = vst [vmem:[#allocation2 + $0x705] sm:$0x1] %v1856
    %1890 = vst [vmem:[#allocation2 + $0x785] sm:$0x1] %v1858
    %v1893 = vcombine.high %v1091, %v1091
    %v1895 = vunpack.c.l.s4 1966171168
    %v1896 = vunpack.c.0.s8 %v1895
    %v1897 = vlaneseq
    %v1898 = vshrl.u32 %v1897, 7
    %v1899 = vsub.s32 %v1896, %v1898
    %v1900 = vrot.slane %v1091, %v1899
    %v1902 = vunpack.c.l.s4 1966171168
    %v1903 = vunpack.c.0.s8 %v1902
    %v1904 = vlaneseq
    %v1905 = vshrl.u32 %v1904, 7
    %v1906 = vsub.s32 %v1903, %v1905
    %v1907 = vrot.slane %v1893, %v1906
    %v1908 = vcombine.high %v1900, %v1900
    %v1909 = vcombine.high %v1907, %v1907
    %v1911 = vunpack.c.l.s4 1966171168
    %v1912 = vunpack.c.0.s8 %v1911
    %v1913 = vlaneseq
    %v1914 = vshrl.u32 %v1913, 7
    %v1915 = vsub.s32 %v1912, %v1914
    %v1916 = vrot.slane %v1900, %v1915
    %v1918 = vunpack.c.l.s4 1966171168
    %v1919 = vunpack.c.0.s8 %v1918
    %v1920 = vlaneseq
    %v1921 = vshrl.u32 %v1920, 7
    %v1922 = vsub.s32 %v1919, %v1921
    %v1923 = vrot.slane %v1907, %v1922
    %v1925 = vunpack.c.l.s4 1966171168
    %v1926 = vunpack.c.0.s8 %v1925
    %v1927 = vlaneseq
    %v1928 = vshrl.u32 %v1927, 7
    %v1929 = vsub.s32 %v1926, %v1928
    %v1930 = vrot.slane %v1908, %v1929
    %v1932 = vunpack.c.l.s4 1966171168
    %v1933 = vunpack.c.0.s8 %v1932
    %v1934 = vlaneseq
    %v1935 = vshrl.u32 %v1934, 7
    %v1936 = vsub.s32 %v1933, %v1935
    %v1937 = vrot.slane %v1909, %v1936
    %v1938 = vcombine.high %v1916, %v1916
    %v1939 = vcombine.high %v1923, %v1923
    %v1940 = vcombine.high %v1930, %v1930
    %v1941 = vcombine.high %v1937, %v1937
    %v1942 = vcombine.high %v1095, %v1095
    %v1944 = vunpack.c.l.s4 1966171168
    %v1945 = vunpack.c.0.s8 %v1944
    %v1946 = vlaneseq
    %v1947 = vshrl.u32 %v1946, 7
    %v1948 = vsub.s32 %v1945, %v1947
    %v1949 = vrot.slane %v1095, %v1948
    %v1951 = vunpack.c.l.s4 1966171168
    %v1952 = vunpack.c.0.s8 %v1951
    %v1953 = vlaneseq
    %v1954 = vshrl.u32 %v1953, 7
    %v1955 = vsub.s32 %v1952, %v1954
    %v1956 = vrot.slane %v1942, %v1955
    %v1957 = vcombine.high %v1949, %v1949
    %v1958 = vcombine.high %v1956, %v1956
    %v1960 = vunpack.c.l.s4 1966171168
    %v1961 = vunpack.c.0.s8 %v1960
    %v1962 = vlaneseq
    %v1963 = vshrl.u32 %v1962, 7
    %v1964 = vsub.s32 %v1961, %v1963
    %v1965 = vrot.slane %v1949, %v1964
    %v1967 = vunpack.c.l.s4 1966171168
    %v1968 = vunpack.c.0.s8 %v1967
    %v1969 = vlaneseq
    %v1970 = vshrl.u32 %v1969, 7
    %v1971 = vsub.s32 %v1968, %v1970
    %v1972 = vrot.slane %v1956, %v1971
    %v1974 = vunpack.c.l.s4 1966171168
    %v1975 = vunpack.c.0.s8 %v1974
    %v1976 = vlaneseq
    %v1977 = vshrl.u32 %v1976, 7
    %v1978 = vsub.s32 %v1975, %v1977
    %v1979 = vrot.slane %v1957, %v1978
    %v1981 = vunpack.c.l.s4 1966171168
    %v1982 = vunpack.c.0.s8 %v1981
    %v1983 = vlaneseq
    %v1984 = vshrl.u32 %v1983, 7
    %v1985 = vsub.s32 %v1982, %v1984
    %v1986 = vrot.slane %v1958, %v1985
    %v1987 = vcombine.high %v1965, %v1965
    %v1988 = vcombine.high %v1972, %v1972
    %v1989 = vcombine.high %v1979, %v1979
    %v1990 = vcombine.high %v1986, %v1986
    %2007 = vst [vmem:[#allocation2 + $0x6] sm:$0x1] %v1916
    %2008 = vst [vmem:[#allocation2 + $0x86] sm:$0x1] %v1930
    %2009 = vst [vmem:[#allocation2 + $0x106] sm:$0x1] %v1938
    %2010 = vst [vmem:[#allocation2 + $0x186] sm:$0x1] %v1940
    %2011 = vst [vmem:[#allocation2 + $0x206] sm:$0x1] %v1923
    %2012 = vst [vmem:[#allocation2 + $0x286] sm:$0x1] %v1937
    %2013 = vst [vmem:[#allocation2 + $0x306] sm:$0x1] %v1939
    %2014 = vst [vmem:[#allocation2 + $0x386] sm:$0x1] %v1941
    %2015 = vst [vmem:[#allocation2 + $0x406] sm:$0x1] %v1965
    %2016 = vst [vmem:[#allocation2 + $0x486] sm:$0x1] %v1979
    %2017 = vst [vmem:[#allocation2 + $0x506] sm:$0x1] %v1987
    %2018 = vst [vmem:[#allocation2 + $0x586] sm:$0x1] %v1989
    %2019 = vst [vmem:[#allocation2 + $0x606] sm:$0x1] %v1972
    %2020 = vst [vmem:[#allocation2 + $0x686] sm:$0x1] %v1986
    %2021 = vst [vmem:[#allocation2 + $0x706] sm:$0x1] %v1988
    %2022 = vst [vmem:[#allocation2 + $0x786] sm:$0x1] %v1990
    %v2025 = vcombine.high %v1093, %v1093
    %v2027 = vunpack.c.l.s4 1966171168
    %v2028 = vunpack.c.0.s8 %v2027
    %v2029 = vlaneseq
    %v2030 = vshrl.u32 %v2029, 7
    %v2031 = vsub.s32 %v2028, %v2030
    %v2032 = vrot.slane %v1093, %v2031
    %v2034 = vunpack.c.l.s4 1966171168
    %v2035 = vunpack.c.0.s8 %v2034
    %v2036 = vlaneseq
    %v2037 = vshrl.u32 %v2036, 7
    %v2038 = vsub.s32 %v2035, %v2037
    %v2039 = vrot.slane %v2025, %v2038
    %v2040 = vcombine.high %v2032, %v2032
    %v2041 = vcombine.high %v2039, %v2039
    %v2043 = vunpack.c.l.s4 1966171168
    %v2044 = vunpack.c.0.s8 %v2043
    %v2045 = vlaneseq
    %v2046 = vshrl.u32 %v2045, 7
    %v2047 = vsub.s32 %v2044, %v2046
    %v2048 = vrot.slane %v2032, %v2047
    %v2050 = vunpack.c.l.s4 1966171168
    %v2051 = vunpack.c.0.s8 %v2050
    %v2052 = vlaneseq
    %v2053 = vshrl.u32 %v2052, 7
    %v2054 = vsub.s32 %v2051, %v2053
    %v2055 = vrot.slane %v2039, %v2054
    %v2057 = vunpack.c.l.s4 1966171168
    %v2058 = vunpack.c.0.s8 %v2057
    %v2059 = vlaneseq
    %v2060 = vshrl.u32 %v2059, 7
    %v2061 = vsub.s32 %v2058, %v2060
    %v2062 = vrot.slane %v2040, %v2061
    %v2064 = vunpack.c.l.s4 1966171168
    %v2065 = vunpack.c.0.s8 %v2064
    %v2066 = vlaneseq
    %v2067 = vshrl.u32 %v2066, 7
    %v2068 = vsub.s32 %v2065, %v2067
    %v2069 = vrot.slane %v2041, %v2068
    %v2070 = vcombine.high %v2048, %v2048
    %v2071 = vcombine.high %v2055, %v2055
    %v2072 = vcombine.high %v2062, %v2062
    %v2073 = vcombine.high %v2069, %v2069
    %v2074 = vcombine.high %v1097, %v1097
    %v2076 = vunpack.c.l.s4 1966171168
    %v2077 = vunpack.c.0.s8 %v2076
    %v2078 = vlaneseq
    %v2079 = vshrl.u32 %v2078, 7
    %v2080 = vsub.s32 %v2077, %v2079
    %v2081 = vrot.slane %v1097, %v2080
    %v2083 = vunpack.c.l.s4 1966171168
    %v2084 = vunpack.c.0.s8 %v2083
    %v2085 = vlaneseq
    %v2086 = vshrl.u32 %v2085, 7
    %v2087 = vsub.s32 %v2084, %v2086
    %v2088 = vrot.slane %v2074, %v2087
    %v2089 = vcombine.high %v2081, %v2081
    %v2090 = vcombine.high %v2088, %v2088
    %v2092 = vunpack.c.l.s4 1966171168
    %v2093 = vunpack.c.0.s8 %v2092
    %v2094 = vlaneseq
    %v2095 = vshrl.u32 %v2094, 7
    %v2096 = vsub.s32 %v2093, %v2095
    %v2097 = vrot.slane %v2081, %v2096
    %v2099 = vunpack.c.l.s4 1966171168
    %v2100 = vunpack.c.0.s8 %v2099
    %v2101 = vlaneseq
    %v2102 = vshrl.u32 %v2101, 7
    %v2103 = vsub.s32 %v2100, %v2102
    %v2104 = vrot.slane %v2088, %v2103
    %v2106 = vunpack.c.l.s4 1966171168
    %v2107 = vunpack.c.0.s8 %v2106
    %v2108 = vlaneseq
    %v2109 = vshrl.u32 %v2108, 7
    %v2110 = vsub.s32 %v2107, %v2109
    %v2111 = vrot.slane %v2089, %v2110
    %v2113 = vunpack.c.l.s4 1966171168
    %v2114 = vunpack.c.0.s8 %v2113
    %v2115 = vlaneseq
    %v2116 = vshrl.u32 %v2115, 7
    %v2117 = vsub.s32 %v2114, %v2116
    %v2118 = vrot.slane %v2090, %v2117
    %v2119 = vcombine.high %v2097, %v2097
    %v2120 = vcombine.high %v2104, %v2104
    %v2121 = vcombine.high %v2111, %v2111
    %v2122 = vcombine.high %v2118, %v2118
    %2139 = vst [vmem:[#allocation2 + $0x7] sm:$0x1] %v2048
    %2140 = vst [vmem:[#allocation2 + $0x87] sm:$0x1] %v2062
    %2141 = vst [vmem:[#allocation2 + $0x107] sm:$0x1] %v2070
    %2142 = vst [vmem:[#allocation2 + $0x187] sm:$0x1] %v2072
    %2143 = vst [vmem:[#allocation2 + $0x207] sm:$0x1] %v2055
    %2144 = vst [vmem:[#allocation2 + $0x287] sm:$0x1] %v2069
    %2145 = vst [vmem:[#allocation2 + $0x307] sm:$0x1] %v2071
    %2146 = vst [vmem:[#allocation2 + $0x387] sm:$0x1] %v2073
    %2147 = vst [vmem:[#allocation2 + $0x407] sm:$0x1] %v2097
    %2148 = vst [vmem:[#allocation2 + $0x487] sm:$0x1] %v2111
    %2149 = vst [vmem:[#allocation2 + $0x507] sm:$0x1] %v2119
    %2150 = vst [vmem:[#allocation2 + $0x587] sm:$0x1] %v2121
    %2151 = vst [vmem:[#allocation2 + $0x607] sm:$0x1] %v2104
    %2152 = vst [vmem:[#allocation2 + $0x687] sm:$0x1] %v2118
    %2153 = vst [vmem:[#allocation2 + $0x707] sm:$0x1] %v2120
    %2154 = vst [vmem:[#allocation2 + $0x787] sm:$0x1] %v2122
    %v2155 = vld [vmem:[#allocation2] sm:$0xff]
    %v2156 = vld [vmem:[#allocation2 + $0x8] sm:$0xff]
    %v2157 = vld [vmem:[#allocation2 + $0x10] sm:$0xff]
    %v2158 = vld [vmem:[#allocation2 + $0x18] sm:$0xff]
    %v2159 = vld [vmem:[#allocation2 + $0x20] sm:$0xff]
    %v2160 = vld [vmem:[#allocation2 + $0x28] sm:$0xff]
    %v2161 = vld [vmem:[#allocation2 + $0x30] sm:$0xff]
    %v2162 = vld [vmem:[#allocation2 + $0x38] sm:$0xff]
    %v2163 = vld [vmem:[#allocation2 + $0x40] sm:$0xff]
    %v2164 = vld [vmem:[#allocation2 + $0x48] sm:$0xff]
    %v2165 = vld [vmem:[#allocation2 + $0x50] sm:$0xff]
    %v2166 = vld [vmem:[#allocation2 + $0x58] sm:$0xff]
    %v2167 = vld [vmem:[#allocation2 + $0x60] sm:$0xff]
    %v2168 = vld [vmem:[#allocation2 + $0x68] sm:$0xff]
    %v2169 = vld [vmem:[#allocation2 + $0x70] sm:$0xff]
    %v2170 = vld [vmem:[#allocation2 + $0x78] sm:$0xff]
    %v2171 = vld [vmem:[#allocation2 + $0x80] sm:$0xff]
    %v2172 = vld [vmem:[#allocation2 + $0x88] sm:$0xff]
    %v2173 = vld [vmem:[#allocation2 + $0x90] sm:$0xff]
    %v2174 = vld [vmem:[#allocation2 + $0x98] sm:$0xff]
    %v2175 = vld [vmem:[#allocation2 + $0xa0] sm:$0xff]
    %v2176 = vld [vmem:[#allocation2 + $0xa8] sm:$0xff]
    %v2177 = vld [vmem:[#allocation2 + $0xb0] sm:$0xff]
    %v2178 = vld [vmem:[#allocation2 + $0xb8] sm:$0xff]
    %v2179 = vld [vmem:[#allocation2 + $0xc0] sm:$0xff]
    %v2180 = vld [vmem:[#allocation2 + $0xc8] sm:$0xff]
    %v2181 = vld [vmem:[#allocation2 + $0xd0] sm:$0xff]
    %v2182 = vld [vmem:[#allocation2 + $0xd8] sm:$0xff]
    %v2183 = vld [vmem:[#allocation2 + $0xe0] sm:$0xff]
    %v2184 = vld [vmem:[#allocation2 + $0xe8] sm:$0xff]
    %v2185 = vld [vmem:[#allocation2 + $0xf0] sm:$0xff]
    %v2186 = vld [vmem:[#allocation2 + $0xf8] sm:$0xff]
    %v2187 = vld [vmem:[#allocation2 + $0x100] sm:$0xff]
    %v2188 = vld [vmem:[#allocation2 + $0x108] sm:$0xff]
    %v2189 = vld [vmem:[#allocation2 + $0x110] sm:$0xff]
    %v2190 = vld [vmem:[#allocation2 + $0x118] sm:$0xff]
    %v2191 = vld [vmem:[#allocation2 + $0x120] sm:$0xff]
    %v2192 = vld [vmem:[#allocation2 + $0x128] sm:$0xff]
    %v2193 = vld [vmem:[#allocation2 + $0x130] sm:$0xff]
    %v2194 = vld [vmem:[#allocation2 + $0x138] sm:$0xff]
    %v2195 = vld [vmem:[#allocation2 + $0x140] sm:$0xff]
    %v2196 = vld [vmem:[#allocation2 + $0x148] sm:$0xff]
    %v2197 = vld [vmem:[#allocation2 + $0x150] sm:$0xff]
    %v2198 = vld [vmem:[#allocation2 + $0x158] sm:$0xff]
    %v2199 = vld [vmem:[#allocation2 + $0x160] sm:$0xff]
    %v2200 = vld [vmem:[#allocation2 + $0x168] sm:$0xff]
    %v2201 = vld [vmem:[#allocation2 + $0x170] sm:$0xff]
    %v2202 = vld [vmem:[#allocation2 + $0x178] sm:$0xff]
    %v2203 = vld [vmem:[#allocation2 + $0x180] sm:$0xff]
    %v2204 = vld [vmem:[#allocation2 + $0x188] sm:$0xff]
    %v2205 = vld [vmem:[#allocation2 + $0x190] sm:$0xff]
    %v2206 = vld [vmem:[#allocation2 + $0x198] sm:$0xff]
    %v2207 = vld [vmem:[#allocation2 + $0x1a0] sm:$0xff]
    %v2208 = vld [vmem:[#allocation2 + $0x1a8] sm:$0xff]
    %v2209 = vld [vmem:[#allocation2 + $0x1b0] sm:$0xff]
    %v2210 = vld [vmem:[#allocation2 + $0x1b8] sm:$0xff]
    %v2211 = vld [vmem:[#allocation2 + $0x1c0] sm:$0xff]
    %v2212 = vld [vmem:[#allocation2 + $0x1c8] sm:$0xff]
    %v2213 = vld [vmem:[#allocation2 + $0x1d0] sm:$0xff]
    %v2214 = vld [vmem:[#allocation2 + $0x1d8] sm:$0xff]
    %v2215 = vld [vmem:[#allocation2 + $0x1e0] sm:$0xff]
    %v2216 = vld [vmem:[#allocation2 + $0x1e8] sm:$0xff]
    %v2217 = vld [vmem:[#allocation2 + $0x1f0] sm:$0xff]
    %v2218 = vld [vmem:[#allocation2 + $0x1f8] sm:$0xff]
    %v2219 = vld [vmem:[#allocation2 + $0x200] sm:$0xff]
    %v2220 = vld [vmem:[#allocation2 + $0x208] sm:$0xff]
    %v2221 = vld [vmem:[#allocation2 + $0x210] sm:$0xff]
    %v2222 = vld [vmem:[#allocation2 + $0x218] sm:$0xff]
    %v2223 = vld [vmem:[#allocation2 + $0x220] sm:$0xff]
    %v2224 = vld [vmem:[#allocation2 + $0x228] sm:$0xff]
    %v2225 = vld [vmem:[#allocation2 + $0x230] sm:$0xff]
    %v2226 = vld [vmem:[#allocation2 + $0x238] sm:$0xff]
    %v2227 = vld [vmem:[#allocation2 + $0x240] sm:$0xff]
    %v2228 = vld [vmem:[#allocation2 + $0x248] sm:$0xff]
    %v2229 = vld [vmem:[#allocation2 + $0x250] sm:$0xff]
    %v2230 = vld [vmem:[#allocation2 + $0x258] sm:$0xff]
    %v2231 = vld [vmem:[#allocation2 + $0x260] sm:$0xff]
    %v2232 = vld [vmem:[#allocation2 + $0x268] sm:$0xff]
    %v2233 = vld [vmem:[#allocation2 + $0x270] sm:$0xff]
    %v2234 = vld [vmem:[#allocation2 + $0x278] sm:$0xff]
    %v2235 = vld [vmem:[#allocation2 + $0x280] sm:$0xff]
    %v2236 = vld [vmem:[#allocation2 + $0x288] sm:$0xff]
    %v2237 = vld [vmem:[#allocation2 + $0x290] sm:$0xff]
    %v2238 = vld [vmem:[#allocation2 + $0x298] sm:$0xff]
    %v2239 = vld [vmem:[#allocation2 + $0x2a0] sm:$0xff]
    %v2240 = vld [vmem:[#allocation2 + $0x2a8] sm:$0xff]
    %v2241 = vld [vmem:[#allocation2 + $0x2b0] sm:$0xff]
    %v2242 = vld [vmem:[#allocation2 + $0x2b8] sm:$0xff]
    %v2243 = vld [vmem:[#allocation2 + $0x2c0] sm:$0xff]
    %v2244 = vld [vmem:[#allocation2 + $0x2c8] sm:$0xff]
    %v2245 = vld [vmem:[#allocation2 + $0x2d0] sm:$0xff]
    %v2246 = vld [vmem:[#allocation2 + $0x2d8] sm:$0xff]
    %v2247 = vld [vmem:[#allocation2 + $0x2e0] sm:$0xff]
    %v2248 = vld [vmem:[#allocation2 + $0x2e8] sm:$0xff]
    %v2249 = vld [vmem:[#allocation2 + $0x2f0] sm:$0xff]
    %v2250 = vld [vmem:[#allocation2 + $0x2f8] sm:$0xff]
    %v2251 = vld [vmem:[#allocation2 + $0x300] sm:$0xff]
    %v2252 = vld [vmem:[#allocation2 + $0x308] sm:$0xff]
    %v2253 = vld [vmem:[#allocation2 + $0x310] sm:$0xff]
    %v2254 = vld [vmem:[#allocation2 + $0x318] sm:$0xff]
    %v2255 = vld [vmem:[#allocation2 + $0x320] sm:$0xff]
    %v2256 = vld [vmem:[#allocation2 + $0x328] sm:$0xff]
    %v2257 = vld [vmem:[#allocation2 + $0x330] sm:$0xff]
    %v2258 = vld [vmem:[#allocation2 + $0x338] sm:$0xff]
    %v2259 = vld [vmem:[#allocation2 + $0x340] sm:$0xff]
    %v2260 = vld [vmem:[#allocation2 + $0x348] sm:$0xff]
    %v2261 = vld [vmem:[#allocation2 + $0x350] sm:$0xff]
    %v2262 = vld [vmem:[#allocation2 + $0x358] sm:$0xff]
    %v2263 = vld [vmem:[#allocation2 + $0x360] sm:$0xff]
    %v2264 = vld [vmem:[#allocation2 + $0x368] sm:$0xff]
    %v2265 = vld [vmem:[#allocation2 + $0x370] sm:$0xff]
    %v2266 = vld [vmem:[#allocation2 + $0x378] sm:$0xff]
    %v2267 = vld [vmem:[#allocation2 + $0x380] sm:$0xff]
    %v2268 = vld [vmem:[#allocation2 + $0x388] sm:$0xff]
    %v2269 = vld [vmem:[#allocation2 + $0x390] sm:$0xff]
    %v2270 = vld [vmem:[#allocation2 + $0x398] sm:$0xff]
    %v2271 = vld [vmem:[#allocation2 + $0x3a0] sm:$0xff]
    %v2272 = vld [vmem:[#allocation2 + $0x3a8] sm:$0xff]
    %v2273 = vld [vmem:[#allocation2 + $0x3b0] sm:$0xff]
    %v2274 = vld [vmem:[#allocation2 + $0x3b8] sm:$0xff]
    %v2275 = vld [vmem:[#allocation2 + $0x3c0] sm:$0xff]
    %v2276 = vld [vmem:[#allocation2 + $0x3c8] sm:$0xff]
    %v2277 = vld [vmem:[#allocation2 + $0x3d0] sm:$0xff]
    %v2278 = vld [vmem:[#allocation2 + $0x3d8] sm:$0xff]
    %v2279 = vld [vmem:[#allocation2 + $0x3e0] sm:$0xff]
    %v2280 = vld [vmem:[#allocation2 + $0x3e8] sm:$0xff]
    %v2281 = vld [vmem:[#allocation2 + $0x3f0] sm:$0xff]
    %v2282 = vld [vmem:[#allocation2 + $0x3f8] sm:$0xff]
    %v2283 = vld [vmem:[#allocation2 + $0x400] sm:$0xff]
    %v2284 = vld [vmem:[#allocation2 + $0x408] sm:$0xff]
    %v2285 = vld [vmem:[#allocation2 + $0x410] sm:$0xff]
    %v2286 = vld [vmem:[#allocation2 + $0x418] sm:$0xff]
    %v2287 = vld [vmem:[#allocation2 + $0x420] sm:$0xff]
    %v2288 = vld [vmem:[#allocation2 + $0x428] sm:$0xff]
    %v2289 = vld [vmem:[#allocation2 + $0x430] sm:$0xff]
    %v2290 = vld [vmem:[#allocation2 + $0x438] sm:$0xff]
    %v2291 = vld [vmem:[#allocation2 + $0x440] sm:$0xff]
    %v2292 = vld [vmem:[#allocation2 + $0x448] sm:$0xff]
    %v2293 = vld [vmem:[#allocation2 + $0x450] sm:$0xff]
    %v2294 = vld [vmem:[#allocation2 + $0x458] sm:$0xff]
    %v2295 = vld [vmem:[#allocation2 + $0x460] sm:$0xff]
    %v2296 = vld [vmem:[#allocation2 + $0x468] sm:$0xff]
    %v2297 = vld [vmem:[#allocation2 + $0x470] sm:$0xff]
    %v2298 = vld [vmem:[#allocation2 + $0x478] sm:$0xff]
    %v2299 = vld [vmem:[#allocation2 + $0x480] sm:$0xff]
    %v2300 = vld [vmem:[#allocation2 + $0x488] sm:$0xff]
    %v2301 = vld [vmem:[#allocation2 + $0x490] sm:$0xff]
    %v2302 = vld [vmem:[#allocation2 + $0x498] sm:$0xff]
    %v2303 = vld [vmem:[#allocation2 + $0x4a0] sm:$0xff]
    %v2304 = vld [vmem:[#allocation2 + $0x4a8] sm:$0xff]
    %v2305 = vld [vmem:[#allocation2 + $0x4b0] sm:$0xff]
    %v2306 = vld [vmem:[#allocation2 + $0x4b8] sm:$0xff]
    %v2307 = vld [vmem:[#allocation2 + $0x4c0] sm:$0xff]
    %v2308 = vld [vmem:[#allocation2 + $0x4c8] sm:$0xff]
    %v2309 = vld [vmem:[#allocation2 + $0x4d0] sm:$0xff]
    %v2310 = vld [vmem:[#allocation2 + $0x4d8] sm:$0xff]
    %v2311 = vld [vmem:[#allocation2 + $0x4e0] sm:$0xff]
    %v2312 = vld [vmem:[#allocation2 + $0x4e8] sm:$0xff]
    %v2313 = vld [vmem:[#allocation2 + $0x4f0] sm:$0xff]
    %v2314 = vld [vmem:[#allocation2 + $0x4f8] sm:$0xff]
    %v2315 = vld [vmem:[#allocation2 + $0x500] sm:$0xff]
    %v2316 = vld [vmem:[#allocation2 + $0x508] sm:$0xff]
    %v2317 = vld [vmem:[#allocation2 + $0x510] sm:$0xff]
    %v2318 = vld [vmem:[#allocation2 + $0x518] sm:$0xff]
    %v2319 = vld [vmem:[#allocation2 + $0x520] sm:$0xff]
    %v2320 = vld [vmem:[#allocation2 + $0x528] sm:$0xff]
    %v2321 = vld [vmem:[#allocation2 + $0x530] sm:$0xff]
    %v2322 = vld [vmem:[#allocation2 + $0x538] sm:$0xff]
    %v2323 = vld [vmem:[#allocation2 + $0x540] sm:$0xff]
    %v2324 = vld [vmem:[#allocation2 + $0x548] sm:$0xff]
    %v2325 = vld [vmem:[#allocation2 + $0x550] sm:$0xff]
    %v2326 = vld [vmem:[#allocation2 + $0x558] sm:$0xff]
    %v2327 = vld [vmem:[#allocation2 + $0x560] sm:$0xff]
    %v2328 = vld [vmem:[#allocation2 + $0x568] sm:$0xff]
    %v2329 = vld [vmem:[#allocation2 + $0x570] sm:$0xff]
    %v2330 = vld [vmem:[#allocation2 + $0x578] sm:$0xff]
    %v2331 = vld [vmem:[#allocation2 + $0x580] sm:$0xff]
    %v2332 = vld [vmem:[#allocation2 + $0x588] sm:$0xff]
    %v2333 = vld [vmem:[#allocation2 + $0x590] sm:$0xff]
    %v2334 = vld [vmem:[#allocation2 + $0x598] sm:$0xff]
    %v2335 = vld [vmem:[#allocation2 + $0x5a0] sm:$0xff]
    %v2336 = vld [vmem:[#allocation2 + $0x5a8] sm:$0xff]
    %v2337 = vld [vmem:[#allocation2 + $0x5b0] sm:$0xff]
    %v2338 = vld [vmem:[#allocation2 + $0x5b8] sm:$0xff]
    %v2339 = vld [vmem:[#allocation2 + $0x5c0] sm:$0xff]
    %v2340 = vld [vmem:[#allocation2 + $0x5c8] sm:$0xff]
    %v2341 = vld [vmem:[#allocation2 + $0x5d0] sm:$0xff]
    %v2342 = vld [vmem:[#allocation2 + $0x5d8] sm:$0xff]
    %v2343 = vld [vmem:[#allocation2 + $0x5e0] sm:$0xff]
    %v2344 = vld [vmem:[#allocation2 + $0x5e8] sm:$0xff]
    %v2345 = vld [vmem:[#allocation2 + $0x5f0] sm:$0xff]
    %v2346 = vld [vmem:[#allocation2 + $0x5f8] sm:$0xff]
    %v2347 = vld [vmem:[#allocation2 + $0x600] sm:$0xff]
    %v2348 = vld [vmem:[#allocation2 + $0x608] sm:$0xff]
    %v2349 = vld [vmem:[#allocation2 + $0x610] sm:$0xff]
    %v2350 = vld [vmem:[#allocation2 + $0x618] sm:$0xff]
    %v2351 = vld [vmem:[#allocation2 + $0x620] sm:$0xff]
    %v2352 = vld [vmem:[#allocation2 + $0x628] sm:$0xff]
    %v2353 = vld [vmem:[#allocation2 + $0x630] sm:$0xff]
    %v2354 = vld [vmem:[#allocation2 + $0x638] sm:$0xff]
    %v2355 = vld [vmem:[#allocation2 + $0x640] sm:$0xff]
    %v2356 = vld [vmem:[#allocation2 + $0x648] sm:$0xff]
    %v2357 = vld [vmem:[#allocation2 + $0x650] sm:$0xff]
    %v2358 = vld [vmem:[#allocation2 + $0x658] sm:$0xff]
    %v2359 = vld [vmem:[#allocation2 + $0x660] sm:$0xff]
    %v2360 = vld [vmem:[#allocation2 + $0x668] sm:$0xff]
    %v2361 = vld [vmem:[#allocation2 + $0x670] sm:$0xff]
    %v2362 = vld [vmem:[#allocation2 + $0x678] sm:$0xff]
    %v2363 = vld [vmem:[#allocation2 + $0x680] sm:$0xff]
    %v2364 = vld [vmem:[#allocation2 + $0x688] sm:$0xff]
    %v2365 = vld [vmem:[#allocation2 + $0x690] sm:$0xff]
    %v2366 = vld [vmem:[#allocation2 + $0x698] sm:$0xff]
    %v2367 = vld [vmem:[#allocation2 + $0x6a0] sm:$0xff]
    %v2368 = vld [vmem:[#allocation2 + $0x6a8] sm:$0xff]
    %v2369 = vld [vmem:[#allocation2 + $0x6b0] sm:$0xff]
    %v2370 = vld [vmem:[#allocation2 + $0x6b8] sm:$0xff]
    %v2371 = vld [vmem:[#allocation2 + $0x6c0] sm:$0xff]
    %v2372 = vld [vmem:[#allocation2 + $0x6c8] sm:$0xff]
    %v2373 = vld [vmem:[#allocation2 + $0x6d0] sm:$0xff]
    %v2374 = vld [vmem:[#allocation2 + $0x6d8] sm:$0xff]
    %v2375 = vld [vmem:[#allocation2 + $0x6e0] sm:$0xff]
    %v2376 = vld [vmem:[#allocation2 + $0x6e8] sm:$0xff]
    %v2377 = vld [vmem:[#allocation2 + $0x6f0] sm:$0xff]
    %v2378 = vld [vmem:[#allocation2 + $0x6f8] sm:$0xff]
    %v2379 = vld [vmem:[#allocation2 + $0x700] sm:$0xff]
    %v2380 = vld [vmem:[#allocation2 + $0x708] sm:$0xff]
    %v2381 = vld [vmem:[#allocation2 + $0x710] sm:$0xff]
    %v2382 = vld [vmem:[#allocation2 + $0x718] sm:$0xff]
    %v2383 = vld [vmem:[#allocation2 + $0x720] sm:$0xff]
    %v2384 = vld [vmem:[#allocation2 + $0x728] sm:$0xff]
    %v2385 = vld [vmem:[#allocation2 + $0x730] sm:$0xff]
    %v2386 = vld [vmem:[#allocation2 + $0x738] sm:$0xff]
    %v2387 = vld [vmem:[#allocation2 + $0x740] sm:$0xff]
    %v2388 = vld [vmem:[#allocation2 + $0x748] sm:$0xff]
    %v2389 = vld [vmem:[#allocation2 + $0x750] sm:$0xff]
    %v2390 = vld [vmem:[#allocation2 + $0x758] sm:$0xff]
    %v2391 = vld [vmem:[#allocation2 + $0x760] sm:$0xff]
    %v2392 = vld [vmem:[#allocation2 + $0x768] sm:$0xff]
    %v2393 = vld [vmem:[#allocation2 + $0x770] sm:$0xff]
    %v2394 = vld [vmem:[#allocation2 + $0x778] sm:$0xff]
    %v2395 = vld [vmem:[#allocation2 + $0x780] sm:$0xff]
    %v2396 = vld [vmem:[#allocation2 + $0x788] sm:$0xff]
    %v2397 = vld [vmem:[#allocation2 + $0x790] sm:$0xff]
    %v2398 = vld [vmem:[#allocation2 + $0x798] sm:$0xff]
    %v2399 = vld [vmem:[#allocation2 + $0x7a0] sm:$0xff]
    %v2400 = vld [vmem:[#allocation2 + $0x7a8] sm:$0xff]
    %v2401 = vld [vmem:[#allocation2 + $0x7b0] sm:$0xff]
    %v2402 = vld [vmem:[#allocation2 + $0x7b8] sm:$0xff]
    %v2403 = vld [vmem:[#allocation2 + $0x7c0] sm:$0xff]
    %v2404 = vld [vmem:[#allocation2 + $0x7c8] sm:$0xff]
    %v2405 = vld [vmem:[#allocation2 + $0x7d0] sm:$0xff]
    %v2406 = vld [vmem:[#allocation2 + $0x7d8] sm:$0xff]
    %v2407 = vld [vmem:[#allocation2 + $0x7e0] sm:$0xff]
    %v2408 = vld [vmem:[#allocation2 + $0x7e8] sm:$0xff]
    %v2409 = vld [vmem:[#allocation2 + $0x7f0] sm:$0xff]
    %v2410 = vld [vmem:[#allocation2 + $0x7f8] sm:$0xff]
    %v2411 = vpack.c.bf16 %v2156, %v2155
    %v2412 = vpack.c.bf16 %v2158, %v2157
    %v2413 = vpack.c.bf16 %v2160, %v2159
    %v2414 = vpack.c.bf16 %v2162, %v2161
    %v2415 = vpack.c.bf16 %v2164, %v2163
    %v2416 = vpack.c.bf16 %v2166, %v2165
    %v2417 = vpack.c.bf16 %v2168, %v2167
    %v2418 = vpack.c.bf16 %v2170, %v2169
    %v2419 = vpack.c.bf16 %v2172, %v2171
    %v2420 = vpack.c.bf16 %v2174, %v2173
    %v2421 = vpack.c.bf16 %v2176, %v2175
    %v2422 = vpack.c.bf16 %v2178, %v2177
    %v2423 = vpack.c.bf16 %v2180, %v2179
    %v2424 = vpack.c.bf16 %v2182, %v2181
    %v2425 = vpack.c.bf16 %v2184, %v2183
    %v2426 = vpack.c.bf16 %v2186, %v2185
    %v2427 = vpack.c.bf16 %v2188, %v2187
    %v2428 = vpack.c.bf16 %v2190, %v2189
    %v2429 = vpack.c.bf16 %v2192, %v2191
    %v2430 = vpack.c.bf16 %v2194, %v2193
    %v2431 = vpack.c.bf16 %v2196, %v2195
    %v2432 = vpack.c.bf16 %v2198, %v2197
    %v2433 = vpack.c.bf16 %v2200, %v2199
    %v2434 = vpack.c.bf16 %v2202, %v2201
    %v2435 = vpack.c.bf16 %v2204, %v2203
    %v2436 = vpack.c.bf16 %v2206, %v2205
    %v2437 = vpack.c.bf16 %v2208, %v2207
    %v2438 = vpack.c.bf16 %v2210, %v2209
    %v2439 = vpack.c.bf16 %v2212, %v2211
    %v2440 = vpack.c.bf16 %v2214, %v2213
    %v2441 = vpack.c.bf16 %v2216, %v2215
    %v2442 = vpack.c.bf16 %v2218, %v2217
    %v2443 = vpack.c.bf16 %v2220, %v2219
    %v2444 = vpack.c.bf16 %v2222, %v2221
    %v2445 = vpack.c.bf16 %v2224, %v2223
    %v2446 = vpack.c.bf16 %v2226, %v2225
    %v2447 = vpack.c.bf16 %v2228, %v2227
    %v2448 = vpack.c.bf16 %v2230, %v2229
    %v2449 = vpack.c.bf16 %v2232, %v2231
    %v2450 = vpack.c.bf16 %v2234, %v2233
    %v2451 = vpack.c.bf16 %v2236, %v2235
    %v2452 = vpack.c.bf16 %v2238, %v2237
    %v2453 = vpack.c.bf16 %v2240, %v2239
    %v2454 = vpack.c.bf16 %v2242, %v2241
    %v2455 = vpack.c.bf16 %v2244, %v2243
    %v2456 = vpack.c.bf16 %v2246, %v2245
    %v2457 = vpack.c.bf16 %v2248, %v2247
    %v2458 = vpack.c.bf16 %v2250, %v2249
    %v2459 = vpack.c.bf16 %v2252, %v2251
    %v2460 = vpack.c.bf16 %v2254, %v2253
    %v2461 = vpack.c.bf16 %v2256, %v2255
    %v2462 = vpack.c.bf16 %v2258, %v2257
    %v2463 = vpack.c.bf16 %v2260, %v2259
    %v2464 = vpack.c.bf16 %v2262, %v2261
    %v2465 = vpack.c.bf16 %v2264, %v2263
    %v2466 = vpack.c.bf16 %v2266, %v2265
    %v2467 = vpack.c.bf16 %v2268, %v2267
    %v2468 = vpack.c.bf16 %v2270, %v2269
    %v2469 = vpack.c.bf16 %v2272, %v2271
    %v2470 = vpack.c.bf16 %v2274, %v2273
    %v2471 = vpack.c.bf16 %v2276, %v2275
    %v2472 = vpack.c.bf16 %v2278, %v2277
    %v2473 = vpack.c.bf16 %v2280, %v2279
    %v2474 = vpack.c.bf16 %v2282, %v2281
    %v2475 = vpack.c.bf16 %v2284, %v2283
    %v2476 = vpack.c.bf16 %v2286, %v2285
    %v2477 = vpack.c.bf16 %v2288, %v2287
    %v2478 = vpack.c.bf16 %v2290, %v2289
    %v2479 = vpack.c.bf16 %v2292, %v2291
    %v2480 = vpack.c.bf16 %v2294, %v2293
    %v2481 = vpack.c.bf16 %v2296, %v2295
    %v2482 = vpack.c.bf16 %v2298, %v2297
    %v2483 = vpack.c.bf16 %v2300, %v2299
    %v2484 = vpack.c.bf16 %v2302, %v2301
    %v2485 = vpack.c.bf16 %v2304, %v2303
    %v2486 = vpack.c.bf16 %v2306, %v2305
    %v2487 = vpack.c.bf16 %v2308, %v2307
    %v2488 = vpack.c.bf16 %v2310, %v2309
    %v2489 = vpack.c.bf16 %v2312, %v2311
    %v2490 = vpack.c.bf16 %v2314, %v2313
    %v2491 = vpack.c.bf16 %v2316, %v2315
    %v2492 = vpack.c.bf16 %v2318, %v2317
    %v2493 = vpack.c.bf16 %v2320, %v2319
    %v2494 = vpack.c.bf16 %v2322, %v2321
    %v2495 = vpack.c.bf16 %v2324, %v2323
    %v2496 = vpack.c.bf16 %v2326, %v2325
    %v2497 = vpack.c.bf16 %v2328, %v2327
    %v2498 = vpack.c.bf16 %v2330, %v2329
    %v2499 = vpack.c.bf16 %v2332, %v2331
    %v2500 = vpack.c.bf16 %v2334, %v2333
    %v2501 = vpack.c.bf16 %v2336, %v2335
    %v2502 = vpack.c.bf16 %v2338, %v2337
    %v2503 = vpack.c.bf16 %v2340, %v2339
    %v2504 = vpack.c.bf16 %v2342, %v2341
    %v2505 = vpack.c.bf16 %v2344, %v2343
    %v2506 = vpack.c.bf16 %v2346, %v2345
    %v2507 = vpack.c.bf16 %v2348, %v2347
    %v2508 = vpack.c.bf16 %v2350, %v2349
    %v2509 = vpack.c.bf16 %v2352, %v2351
    %v2510 = vpack.c.bf16 %v2354, %v2353
    %v2511 = vpack.c.bf16 %v2356, %v2355
    %v2512 = vpack.c.bf16 %v2358, %v2357
    %v2513 = vpack.c.bf16 %v2360, %v2359
    %v2514 = vpack.c.bf16 %v2362, %v2361
    %v2515 = vpack.c.bf16 %v2364, %v2363
    %v2516 = vpack.c.bf16 %v2366, %v2365
    %v2517 = vpack.c.bf16 %v2368, %v2367
    %v2518 = vpack.c.bf16 %v2370, %v2369
    %v2519 = vpack.c.bf16 %v2372, %v2371
    %v2520 = vpack.c.bf16 %v2374, %v2373
    %v2521 = vpack.c.bf16 %v2376, %v2375
    %v2522 = vpack.c.bf16 %v2378, %v2377
    %v2523 = vpack.c.bf16 %v2380, %v2379
    %v2524 = vpack.c.bf16 %v2382, %v2381
    %v2525 = vpack.c.bf16 %v2384, %v2383
    %v2526 = vpack.c.bf16 %v2386, %v2385
    %v2527 = vpack.c.bf16 %v2388, %v2387
    %v2528 = vpack.c.bf16 %v2390, %v2389
    %v2529 = vpack.c.bf16 %v2392, %v2391
    %v2530 = vpack.c.bf16 %v2394, %v2393
    %v2531 = vpack.c.bf16 %v2396, %v2395
    %v2532 = vpack.c.bf16 %v2398, %v2397
    %v2533 = vpack.c.bf16 %v2400, %v2399
    %v2534 = vpack.c.bf16 %v2402, %v2401
    %v2535 = vpack.c.bf16 %v2404, %v2403
    %v2536 = vpack.c.bf16 %v2406, %v2405
    %v2537 = vpack.c.bf16 %v2408, %v2407
    %v2538 = vpack.c.bf16 %v2410, %v2409
    %v2539 = vld [vmem:[#allocation11] sm:$0xff]
    %2540 = vmatprep.subr.bf16.mxu0 0
    %2541 = vmatpush1.bf16.xpose.msra.mxu0 %v2411
    %2542 = vmatprep.subr.bf16.mxu0 0
    %2543 = vmatpush1.bf16.xpose.msra.mxu0 %v2412
    %2544 = vmatprep.subr.bf16.mxu0 0
    %2545 = vmatpush1.bf16.xpose.msra.mxu0 %v2413
    %2546 = vmatprep.subr.bf16.mxu0 0
    %2547 = vmatpush1.bf16.xpose.msra.mxu0 %v2414
    %2548 = vmatprep.subr.bf16.mxu0 0
    %2549 = vmatpush1.bf16.xpose.msra.mxu0 %v2415
    %2550 = vmatprep.subr.bf16.mxu0 0
    %2551 = vmatpush1.bf16.xpose.msra.mxu0 %v2416
    %2552 = vmatprep.subr.bf16.mxu0 0
    %2553 = vmatpush1.bf16.xpose.msra.mxu0 %v2417
    %2554 = vmatprep.subr.bf16.mxu0 0
    %2555 = vmatpush1.bf16.xpose.msra.mxu0 %v2418
    %2556 = vmatprep.subr.bf16.mxu0 0
    %2557 = vmatpush1.bf16.xpose.msra.mxu0 0
    %2558 = vmatprep.subr.bf16.mxu0 0
    %2559 = vmatpush1.bf16.xpose.msra.mxu0 0
    %2560 = vmatprep.subr.bf16.mxu0 0
    %2561 = vmatpush1.bf16.xpose.msra.mxu0 0
    %2562 = vmatprep.subr.bf16.mxu0 0
    %2563 = vmatpush1.bf16.xpose.msra.mxu0 0
    %2564 = vmatprep.subr.bf16.mxu0 0
    %2565 = vmatpush1.bf16.xpose.msra.mxu0 0
    %2566 = vmatprep.subr.bf16.mxu0 0
    %2567 = vmatpush1.bf16.xpose.msra.mxu0 0
    %2568 = vmatprep.subr.bf16.mxu0 0
    %2569 = vmatpush1.bf16.xpose.msra.mxu0 0
    %2570 = vmatprep.subr.bf16.mxu0 0
    %2571 = vmatpush1.bf16.xpose.msra.mxu0 0
    %2572 = vmatprep.mubr.bf16.mxu0 0
    %2573 = vmatmul.mubr.bf16.gmra.mrb[0].mxu0 %v2411
    %v2574 = vpop.f32.mrb[0].mxu0
    %v2575 = vadd.f32 %v2539, %v2574
    %v2576 = vpop.f32.mrb[0].mxu0
    %v2577 = vpop.f32.mrb[0].mxu0
    %v2578 = vpop.f32.mrb[0].mxu0
    %2579 = vdwg.mxu0
    %2580 = vmatprep.subr.bf16.mxu0 0
    %2581 = vmatpush1.bf16.xpose.msra.mxu0 %v2419
    %2582 = vmatprep.subr.bf16.mxu0 0
    %2583 = vmatpush1.bf16.xpose.msra.mxu0 %v2420
    %2584 = vmatprep.subr.bf16.mxu0 0
    %2585 = vmatpush1.bf16.xpose.msra.mxu0 %v2421
    %2586 = vmatprep.subr.bf16.mxu0 0
    %2587 = vmatpush1.bf16.xpose.msra.mxu0 %v2422
    %2588 = vmatprep.subr.bf16.mxu0 0
    %2589 = vmatpush1.bf16.xpose.msra.mxu0 %v2423
    %2590 = vmatprep.subr.bf16.mxu0 0
    %2591 = vmatpush1.bf16.xpose.msra.mxu0 %v2424
    %2592 = vmatprep.subr.bf16.mxu0 0
    %2593 = vmatpush1.bf16.xpose.msra.mxu0 %v2425
    %2594 = vmatprep.subr.bf16.mxu0 0
    %2595 = vmatpush1.bf16.xpose.msra.mxu0 %v2426
    %2596 = vmatprep.subr.bf16.mxu0 0
    %2597 = vmatpush1.bf16.xpose.msra.mxu0 0
    %2598 = vmatprep.subr.bf16.mxu0 0
    %2599 = vmatpush1.bf16.xpose.msra.mxu0 0
    %2600 = vmatprep.subr.bf16.mxu0 0
    %2601 = vmatpush1.bf16.xpose.msra.mxu0 0
    %2602 = vmatprep.subr.bf16.mxu0 0
    %2603 = vmatpush1.bf16.xpose.msra.mxu0 0
    %2604 = vmatprep.subr.bf16.mxu0 0
    %2605 = vmatpush1.bf16.xpose.msra.mxu0 0
    %2606 = vmatprep.subr.bf16.mxu0 0
    %2607 = vmatpush1.bf16.xpose.msra.mxu0 0
    %2608 = vmatprep.subr.bf16.mxu0 0
    %2609 = vmatpush1.bf16.xpose.msra.mxu0 0
    %2610 = vmatprep.subr.bf16.mxu0 0
    %2611 = vmatpush1.bf16.xpose.msra.mxu0 0
    %2612 = vmatprep.mubr.bf16.mxu0 0
    %2613 = vmatmul.mubr.bf16.gmra.mrb[0].mxu0 %v2419
    %v2614 = vpop.f32.mrb[0].mxu0
    %v2615 = vadd.f32 %v2539, %v2614
    %v2616 = vpop.f32.mrb[0].mxu0
    %v2617 = vpop.f32.mrb[0].mxu0
    %v2618 = vpop.f32.mrb[0].mxu0
    %2619 = vdwg.mxu0
    %2620 = vmatprep.subr.bf16.mxu0 0
    %2621 = vmatpush1.bf16.xpose.msra.mxu0 %v2427
    %2622 = vmatprep.subr.bf16.mxu0 0
    %2623 = vmatpush1.bf16.xpose.msra.mxu0 %v2428
    %2624 = vmatprep.subr.bf16.mxu0 0
    %2625 = vmatpush1.bf16.xpose.msra.mxu0 %v2429
    %2626 = vmatprep.subr.bf16.mxu0 0
    %2627 = vmatpush1.bf16.xpose.msra.mxu0 %v2430
    %2628 = vmatprep.subr.bf16.mxu0 0
    %2629 = vmatpush1.bf16.xpose.msra.mxu0 %v2431
    %2630 = vmatprep.subr.bf16.mxu0 0
    %2631 = vmatpush1.bf16.xpose.msra.mxu0 %v2432
    %2632 = vmatprep.subr.bf16.mxu0 0
    %2633 = vmatpush1.bf16.xpose.msra.mxu0 %v2433
    %2634 = vmatprep.subr.bf16.mxu0 0
    %2635 = vmatpush1.bf16.xpose.msra.mxu0 %v2434
    %2636 = vmatprep.subr.bf16.mxu0 0
    %2637 = vmatpush1.bf16.xpose.msra.mxu0 0
    %2638 = vmatprep.subr.bf16.mxu0 0
    %2639 = vmatpush1.bf16.xpose.msra.mxu0 0
    %2640 = vmatprep.subr.bf16.mxu0 0
    %2641 = vmatpush1.bf16.xpose.msra.mxu0 0
    %2642 = vmatprep.subr.bf16.mxu0 0
    %2643 = vmatpush1.bf16.xpose.msra.mxu0 0
    %2644 = vmatprep.subr.bf16.mxu0 0
    %2645 = vmatpush1.bf16.xpose.msra.mxu0 0
    %2646 = vmatprep.subr.bf16.mxu0 0
    %2647 = vmatpush1.bf16.xpose.msra.mxu0 0
    %2648 = vmatprep.subr.bf16.mxu0 0
    %2649 = vmatpush1.bf16.xpose.msra.mxu0 0
    %2650 = vmatprep.subr.bf16.mxu0 0
    %2651 = vmatpush1.bf16.xpose.msra.mxu0 0
    %2652 = vmatprep.mubr.bf16.mxu0 0
    %2653 = vmatmul.mubr.bf16.gmra.mrb[0].mxu0 %v2427
    %v2654 = vpop.f32.mrb[0].mxu0
    %v2655 = vadd.f32 %v2539, %v2654
    %v2656 = vpop.f32.mrb[0].mxu0
    %v2657 = vpop.f32.mrb[0].mxu0
    %v2658 = vpop.f32.mrb[0].mxu0
    %2659 = vdwg.mxu0
    %2660 = vmatprep.subr.bf16.mxu0 0
    %2661 = vmatpush1.bf16.xpose.msra.mxu0 %v2435
    %2662 = vmatprep.subr.bf16.mxu0 0
    %2663 = vmatpush1.bf16.xpose.msra.mxu0 %v2436
    %2664 = vmatprep.subr.bf16.mxu0 0
    %2665 = vmatpush1.bf16.xpose.msra.mxu0 %v2437
    %2666 = vmatprep.subr.bf16.mxu0 0
    %2667 = vmatpush1.bf16.xpose.msra.mxu0 %v2438
    %2668 = vmatprep.subr.bf16.mxu0 0
    %2669 = vmatpush1.bf16.xpose.msra.mxu0 %v2439
    %2670 = vmatprep.subr.bf16.mxu0 0
    %2671 = vmatpush1.bf16.xpose.msra.mxu0 %v2440
    %2672 = vmatprep.subr.bf16.mxu0 0
    %2673 = vmatpush1.bf16.xpose.msra.mxu0 %v2441
    %2674 = vmatprep.subr.bf16.mxu0 0
    %2675 = vmatpush1.bf16.xpose.msra.mxu0 %v2442
    %2676 = vmatprep.subr.bf16.mxu0 0
    %2677 = vmatpush1.bf16.xpose.msra.mxu0 0
    %2678 = vmatprep.subr.bf16.mxu0 0
    %2679 = vmatpush1.bf16.xpose.msra.mxu0 0
    %2680 = vmatprep.subr.bf16.mxu0 0
    %2681 = vmatpush1.bf16.xpose.msra.mxu0 0
    %2682 = vmatprep.subr.bf16.mxu0 0
    %2683 = vmatpush1.bf16.xpose.msra.mxu0 0
    %2684 = vmatprep.subr.bf16.mxu0 0
    %2685 = vmatpush1.bf16.xpose.msra.mxu0 0
    %2686 = vmatprep.subr.bf16.mxu0 0
    %2687 = vmatpush1.bf16.xpose.msra.mxu0 0
    %2688 = vmatprep.subr.bf16.mxu0 0
    %2689 = vmatpush1.bf16.xpose.msra.mxu0 0
    %2690 = vmatprep.subr.bf16.mxu0 0
    %2691 = vmatpush1.bf16.xpose.msra.mxu0 0
    %2692 = vmatprep.mubr.bf16.mxu0 0
    %2693 = vmatmul.mubr.bf16.gmra.mrb[0].mxu0 %v2435
    %v2694 = vpop.f32.mrb[0].mxu0
    %v2695 = vadd.f32 %v2539, %v2694
    %v2696 = vpop.f32.mrb[0].mxu0
    %v2697 = vpop.f32.mrb[0].mxu0
    %v2698 = vpop.f32.mrb[0].mxu0
    %2699 = vdwg.mxu0
    %2700 = vmatprep.subr.bf16.mxu0 0
    %2701 = vmatpush1.bf16.xpose.msra.mxu0 %v2443
    %2702 = vmatprep.subr.bf16.mxu0 0
    %2703 = vmatpush1.bf16.xpose.msra.mxu0 %v2444
    %2704 = vmatprep.subr.bf16.mxu0 0
    %2705 = vmatpush1.bf16.xpose.msra.mxu0 %v2445
    %2706 = vmatprep.subr.bf16.mxu0 0
    %2707 = vmatpush1.bf16.xpose.msra.mxu0 %v2446
    %2708 = vmatprep.subr.bf16.mxu0 0
    %2709 = vmatpush1.bf16.xpose.msra.mxu0 %v2447
    %2710 = vmatprep.subr.bf16.mxu0 0
    %2711 = vmatpush1.bf16.xpose.msra.mxu0 %v2448
    %2712 = vmatprep.subr.bf16.mxu0 0
    %2713 = vmatpush1.bf16.xpose.msra.mxu0 %v2449
    %2714 = vmatprep.subr.bf16.mxu0 0
    %2715 = vmatpush1.bf16.xpose.msra.mxu0 %v2450
    %2716 = vmatprep.subr.bf16.mxu0 0
    %2717 = vmatpush1.bf16.xpose.msra.mxu0 0
    %2718 = vmatprep.subr.bf16.mxu0 0
    %2719 = vmatpush1.bf16.xpose.msra.mxu0 0
    %2720 = vmatprep.subr.bf16.mxu0 0
    %2721 = vmatpush1.bf16.xpose.msra.mxu0 0
    %2722 = vmatprep.subr.bf16.mxu0 0
    %2723 = vmatpush1.bf16.xpose.msra.mxu0 0
    %2724 = vmatprep.subr.bf16.mxu0 0
    %2725 = vmatpush1.bf16.xpose.msra.mxu0 0
    %2726 = vmatprep.subr.bf16.mxu0 0
    %2727 = vmatpush1.bf16.xpose.msra.mxu0 0
    %2728 = vmatprep.subr.bf16.mxu0 0
    %2729 = vmatpush1.bf16.xpose.msra.mxu0 0
    %2730 = vmatprep.subr.bf16.mxu0 0
    %2731 = vmatpush1.bf16.xpose.msra.mxu0 0
    %2732 = vmatprep.mubr.bf16.mxu0 0
    %2733 = vmatmul.mubr.bf16.gmra.mrb[0].mxu0 %v2443
    %v2734 = vpop.f32.mrb[0].mxu0
    %v2735 = vadd.f32 %v2539, %v2734
    %v2736 = vpop.f32.mrb[0].mxu0
    %v2737 = vpop.f32.mrb[0].mxu0
    %v2738 = vpop.f32.mrb[0].mxu0
    %2739 = vdwg.mxu0
    %2740 = vmatprep.subr.bf16.mxu0 0
    %2741 = vmatpush1.bf16.xpose.msra.mxu0 %v2451
    %2742 = vmatprep.subr.bf16.mxu0 0
    %2743 = vmatpush1.bf16.xpose.msra.mxu0 %v2452
    %2744 = vmatprep.subr.bf16.mxu0 0
    %2745 = vmatpush1.bf16.xpose.msra.mxu0 %v2453
    %2746 = vmatprep.subr.bf16.mxu0 0
    %2747 = vmatpush1.bf16.xpose.msra.mxu0 %v2454
    %2748 = vmatprep.subr.bf16.mxu0 0
    %2749 = vmatpush1.bf16.xpose.msra.mxu0 %v2455
    %2750 = vmatprep.subr.bf16.mxu0 0
    %2751 = vmatpush1.bf16.xpose.msra.mxu0 %v2456
    %2752 = vmatprep.subr.bf16.mxu0 0
    %2753 = vmatpush1.bf16.xpose.msra.mxu0 %v2457
    %2754 = vmatprep.subr.bf16.mxu0 0
    %2755 = vmatpush1.bf16.xpose.msra.mxu0 %v2458
    %2756 = vmatprep.subr.bf16.mxu0 0
    %2757 = vmatpush1.bf16.xpose.msra.mxu0 0
    %2758 = vmatprep.subr.bf16.mxu0 0
    %2759 = vmatpush1.bf16.xpose.msra.mxu0 0
    %2760 = vmatprep.subr.bf16.mxu0 0
    %2761 = vmatpush1.bf16.xpose.msra.mxu0 0
    %2762 = vmatprep.subr.bf16.mxu0 0
    %2763 = vmatpush1.bf16.xpose.msra.mxu0 0
    %2764 = vmatprep.subr.bf16.mxu0 0
    %2765 = vmatpush1.bf16.xpose.msra.mxu0 0
    %2766 = vmatprep.subr.bf16.mxu0 0
    %2767 = vmatpush1.bf16.xpose.msra.mxu0 0
    %2768 = vmatprep.subr.bf16.mxu0 0
    %2769 = vmatpush1.bf16.xpose.msra.mxu0 0
    %2770 = vmatprep.subr.bf16.mxu0 0
    %2771 = vmatpush1.bf16.xpose.msra.mxu0 0
    %2772 = vmatprep.mubr.bf16.mxu0 0
    %2773 = vmatmul.mubr.bf16.gmra.mrb[0].mxu0 %v2451
    %v2774 = vpop.f32.mrb[0].mxu0
    %v2775 = vadd.f32 %v2539, %v2774
    %v2776 = vpop.f32.mrb[0].mxu0
    %v2777 = vpop.f32.mrb[0].mxu0
    %v2778 = vpop.f32.mrb[0].mxu0
    %2779 = vdwg.mxu0
    %2780 = vmatprep.subr.bf16.mxu0 0
    %2781 = vmatpush1.bf16.xpose.msra.mxu0 %v2459
    %2782 = vmatprep.subr.bf16.mxu0 0
    %2783 = vmatpush1.bf16.xpose.msra.mxu0 %v2460
    %2784 = vmatprep.subr.bf16.mxu0 0
    %2785 = vmatpush1.bf16.xpose.msra.mxu0 %v2461
    %2786 = vmatprep.subr.bf16.mxu0 0
    %2787 = vmatpush1.bf16.xpose.msra.mxu0 %v2462
    %2788 = vmatprep.subr.bf16.mxu0 0
    %2789 = vmatpush1.bf16.xpose.msra.mxu0 %v2463
    %2790 = vmatprep.subr.bf16.mxu0 0
    %2791 = vmatpush1.bf16.xpose.msra.mxu0 %v2464
    %2792 = vmatprep.subr.bf16.mxu0 0
    %2793 = vmatpush1.bf16.xpose.msra.mxu0 %v2465
    %2794 = vmatprep.subr.bf16.mxu0 0
    %2795 = vmatpush1.bf16.xpose.msra.mxu0 %v2466
    %2796 = vmatprep.subr.bf16.mxu0 0
    %2797 = vmatpush1.bf16.xpose.msra.mxu0 0
    %2798 = vmatprep.subr.bf16.mxu0 0
    %2799 = vmatpush1.bf16.xpose.msra.mxu0 0
    %2800 = vmatprep.subr.bf16.mxu0 0
    %2801 = vmatpush1.bf16.xpose.msra.mxu0 0
    %2802 = vmatprep.subr.bf16.mxu0 0
    %2803 = vmatpush1.bf16.xpose.msra.mxu0 0
    %2804 = vmatprep.subr.bf16.mxu0 0
    %2805 = vmatpush1.bf16.xpose.msra.mxu0 0
    %2806 = vmatprep.subr.bf16.mxu0 0
    %2807 = vmatpush1.bf16.xpose.msra.mxu0 0
    %2808 = vmatprep.subr.bf16.mxu0 0
    %2809 = vmatpush1.bf16.xpose.msra.mxu0 0
    %2810 = vmatprep.subr.bf16.mxu0 0
    %2811 = vmatpush1.bf16.xpose.msra.mxu0 0
    %2812 = vmatprep.mubr.bf16.mxu0 0
    %2813 = vmatmul.mubr.bf16.gmra.mrb[0].mxu0 %v2459
    %v2814 = vpop.f32.mrb[0].mxu0
    %v2815 = vadd.f32 %v2539, %v2814
    %v2816 = vpop.f32.mrb[0].mxu0
    %v2817 = vpop.f32.mrb[0].mxu0
    %v2818 = vpop.f32.mrb[0].mxu0
    %2819 = vdwg.mxu0
    %2820 = vmatprep.subr.bf16.mxu0 0
    %2821 = vmatpush1.bf16.xpose.msra.mxu0 %v2467
    %2822 = vmatprep.subr.bf16.mxu0 0
    %2823 = vmatpush1.bf16.xpose.msra.mxu0 %v2468
    %2824 = vmatprep.subr.bf16.mxu0 0
    %2825 = vmatpush1.bf16.xpose.msra.mxu0 %v2469
    %2826 = vmatprep.subr.bf16.mxu0 0
    %2827 = vmatpush1.bf16.xpose.msra.mxu0 %v2470
    %2828 = vmatprep.subr.bf16.mxu0 0
    %2829 = vmatpush1.bf16.xpose.msra.mxu0 %v2471
    %2830 = vmatprep.subr.bf16.mxu0 0
    %2831 = vmatpush1.bf16.xpose.msra.mxu0 %v2472
    %2832 = vmatprep.subr.bf16.mxu0 0
    %2833 = vmatpush1.bf16.xpose.msra.mxu0 %v2473
    %2834 = vmatprep.subr.bf16.mxu0 0
    %2835 = vmatpush1.bf16.xpose.msra.mxu0 %v2474
    %2836 = vmatprep.subr.bf16.mxu0 0
    %2837 = vmatpush1.bf16.xpose.msra.mxu0 0
    %2838 = vmatprep.subr.bf16.mxu0 0
    %2839 = vmatpush1.bf16.xpose.msra.mxu0 0
    %2840 = vmatprep.subr.bf16.mxu0 0
    %2841 = vmatpush1.bf16.xpose.msra.mxu0 0
    %2842 = vmatprep.subr.bf16.mxu0 0
    %2843 = vmatpush1.bf16.xpose.msra.mxu0 0
    %2844 = vmatprep.subr.bf16.mxu0 0
    %2845 = vmatpush1.bf16.xpose.msra.mxu0 0
    %2846 = vmatprep.subr.bf16.mxu0 0
    %2847 = vmatpush1.bf16.xpose.msra.mxu0 0
    %2848 = vmatprep.subr.bf16.mxu0 0
    %2849 = vmatpush1.bf16.xpose.msra.mxu0 0
    %2850 = vmatprep.subr.bf16.mxu0 0
    %2851 = vmatpush1.bf16.xpose.msra.mxu0 0
    %2852 = vmatprep.mubr.bf16.mxu0 0
    %2853 = vmatmul.mubr.bf16.gmra.mrb[0].mxu0 %v2467
    %v2854 = vpop.f32.mrb[0].mxu0
    %v2855 = vadd.f32 %v2539, %v2854
    %v2856 = vpop.f32.mrb[0].mxu0
    %v2857 = vpop.f32.mrb[0].mxu0
    %v2858 = vpop.f32.mrb[0].mxu0
    %2859 = vdwg.mxu0
    %2860 = vmatprep.subr.bf16.mxu0 0
    %2861 = vmatpush1.bf16.xpose.msra.mxu0 %v2475
    %2862 = vmatprep.subr.bf16.mxu0 0
    %2863 = vmatpush1.bf16.xpose.msra.mxu0 %v2476
    %2864 = vmatprep.subr.bf16.mxu0 0
    %2865 = vmatpush1.bf16.xpose.msra.mxu0 %v2477
    %2866 = vmatprep.subr.bf16.mxu0 0
    %2867 = vmatpush1.bf16.xpose.msra.mxu0 %v2478
    %2868 = vmatprep.subr.bf16.mxu0 0
    %2869 = vmatpush1.bf16.xpose.msra.mxu0 %v2479
    %2870 = vmatprep.subr.bf16.mxu0 0
    %2871 = vmatpush1.bf16.xpose.msra.mxu0 %v2480
    %2872 = vmatprep.subr.bf16.mxu0 0
    %2873 = vmatpush1.bf16.xpose.msra.mxu0 %v2481
    %2874 = vmatprep.subr.bf16.mxu0 0
    %2875 = vmatpush1.bf16.xpose.msra.mxu0 %v2482
    %2876 = vmatprep.subr.bf16.mxu0 0
    %2877 = vmatpush1.bf16.xpose.msra.mxu0 0
    %2878 = vmatprep.subr.bf16.mxu0 0
    %2879 = vmatpush1.bf16.xpose.msra.mxu0 0
    %2880 = vmatprep.subr.bf16.mxu0 0
    %2881 = vmatpush1.bf16.xpose.msra.mxu0 0
    %2882 = vmatprep.subr.bf16.mxu0 0
    %2883 = vmatpush1.bf16.xpose.msra.mxu0 0
    %2884 = vmatprep.subr.bf16.mxu0 0
    %2885 = vmatpush1.bf16.xpose.msra.mxu0 0
    %2886 = vmatprep.subr.bf16.mxu0 0
    %2887 = vmatpush1.bf16.xpose.msra.mxu0 0
    %2888 = vmatprep.subr.bf16.mxu0 0
    %2889 = vmatpush1.bf16.xpose.msra.mxu0 0
    %2890 = vmatprep.subr.bf16.mxu0 0
    %2891 = vmatpush1.bf16.xpose.msra.mxu0 0
    %2892 = vmatprep.mubr.bf16.mxu0 0
    %2893 = vmatmul.mubr.bf16.gmra.mrb[0].mxu0 %v2475
    %v2894 = vpop.f32.mrb[0].mxu0
    %v2895 = vadd.f32 %v2539, %v2894
    %v2896 = vpop.f32.mrb[0].mxu0
    %v2897 = vpop.f32.mrb[0].mxu0
    %v2898 = vpop.f32.mrb[0].mxu0
    %2899 = vdwg.mxu0
    %2900 = vmatprep.subr.bf16.mxu0 0
    %2901 = vmatpush1.bf16.xpose.msra.mxu0 %v2483
    %2902 = vmatprep.subr.bf16.mxu0 0
    %2903 = vmatpush1.bf16.xpose.msra.mxu0 %v2484
    %2904 = vmatprep.subr.bf16.mxu0 0
    %2905 = vmatpush1.bf16.xpose.msra.mxu0 %v2485
    %2906 = vmatprep.subr.bf16.mxu0 0
    %2907 = vmatpush1.bf16.xpose.msra.mxu0 %v2486
    %2908 = vmatprep.subr.bf16.mxu0 0
    %2909 = vmatpush1.bf16.xpose.msra.mxu0 %v2487
    %2910 = vmatprep.subr.bf16.mxu0 0
    %2911 = vmatpush1.bf16.xpose.msra.mxu0 %v2488
    %2912 = vmatprep.subr.bf16.mxu0 0
    %2913 = vmatpush1.bf16.xpose.msra.mxu0 %v2489
    %2914 = vmatprep.subr.bf16.mxu0 0
    %2915 = vmatpush1.bf16.xpose.msra.mxu0 %v2490
    %2916 = vmatprep.subr.bf16.mxu0 0
    %2917 = vmatpush1.bf16.xpose.msra.mxu0 0
    %2918 = vmatprep.subr.bf16.mxu0 0
    %2919 = vmatpush1.bf16.xpose.msra.mxu0 0
    %2920 = vmatprep.subr.bf16.mxu0 0
    %2921 = vmatpush1.bf16.xpose.msra.mxu0 0
    %2922 = vmatprep.subr.bf16.mxu0 0
    %2923 = vmatpush1.bf16.xpose.msra.mxu0 0
    %2924 = vmatprep.subr.bf16.mxu0 0
    %2925 = vmatpush1.bf16.xpose.msra.mxu0 0
    %2926 = vmatprep.subr.bf16.mxu0 0
    %2927 = vmatpush1.bf16.xpose.msra.mxu0 0
    %2928 = vmatprep.subr.bf16.mxu0 0
    %2929 = vmatpush1.bf16.xpose.msra.mxu0 0
    %2930 = vmatprep.subr.bf16.mxu0 0
    %2931 = vmatpush1.bf16.xpose.msra.mxu0 0
    %2932 = vmatprep.mubr.bf16.mxu0 0
    %2933 = vmatmul.mubr.bf16.gmra.mrb[0].mxu0 %v2483
    %v2934 = vpop.f32.mrb[0].mxu0
    %v2935 = vadd.f32 %v2539, %v2934
    %v2936 = vpop.f32.mrb[0].mxu0
    %v2937 = vpop.f32.mrb[0].mxu0
    %v2938 = vpop.f32.mrb[0].mxu0
    %2939 = vdwg.mxu0
    %2940 = vmatprep.subr.bf16.mxu0 0
    %2941 = vmatpush1.bf16.xpose.msra.mxu0 %v2491
    %2942 = vmatprep.subr.bf16.mxu0 0
    %2943 = vmatpush1.bf16.xpose.msra.mxu0 %v2492
    %2944 = vmatprep.subr.bf16.mxu0 0
    %2945 = vmatpush1.bf16.xpose.msra.mxu0 %v2493
    %2946 = vmatprep.subr.bf16.mxu0 0
    %2947 = vmatpush1.bf16.xpose.msra.mxu0 %v2494
    %2948 = vmatprep.subr.bf16.mxu0 0
    %2949 = vmatpush1.bf16.xpose.msra.mxu0 %v2495
    %2950 = vmatprep.subr.bf16.mxu0 0
    %2951 = vmatpush1.bf16.xpose.msra.mxu0 %v2496
    %2952 = vmatprep.subr.bf16.mxu0 0
    %2953 = vmatpush1.bf16.xpose.msra.mxu0 %v2497
    %2954 = vmatprep.subr.bf16.mxu0 0
    %2955 = vmatpush1.bf16.xpose.msra.mxu0 %v2498
    %2956 = vmatprep.subr.bf16.mxu0 0
    %2957 = vmatpush1.bf16.xpose.msra.mxu0 0
    %2958 = vmatprep.subr.bf16.mxu0 0
    %2959 = vmatpush1.bf16.xpose.msra.mxu0 0
    %2960 = vmatprep.subr.bf16.mxu0 0
    %2961 = vmatpush1.bf16.xpose.msra.mxu0 0
    %2962 = vmatprep.subr.bf16.mxu0 0
    %2963 = vmatpush1.bf16.xpose.msra.mxu0 0
    %2964 = vmatprep.subr.bf16.mxu0 0
    %2965 = vmatpush1.bf16.xpose.msra.mxu0 0
    %2966 = vmatprep.subr.bf16.mxu0 0
    %2967 = vmatpush1.bf16.xpose.msra.mxu0 0
    %2968 = vmatprep.subr.bf16.mxu0 0
    %2969 = vmatpush1.bf16.xpose.msra.mxu0 0
    %2970 = vmatprep.subr.bf16.mxu0 0
    %2971 = vmatpush1.bf16.xpose.msra.mxu0 0
    %2972 = vmatprep.mubr.bf16.mxu0 0
    %2973 = vmatmul.mubr.bf16.gmra.mrb[0].mxu0 %v2491
    %v2974 = vpop.f32.mrb[0].mxu0
    %v2975 = vadd.f32 %v2539, %v2974
    %v2976 = vpop.f32.mrb[0].mxu0
    %v2977 = vpop.f32.mrb[0].mxu0
    %v2978 = vpop.f32.mrb[0].mxu0
    %2979 = vdwg.mxu0
    %2980 = vmatprep.subr.bf16.mxu0 0
    %2981 = vmatpush1.bf16.xpose.msra.mxu0 %v2499
    %2982 = vmatprep.subr.bf16.mxu0 0
    %2983 = vmatpush1.bf16.xpose.msra.mxu0 %v2500
    %2984 = vmatprep.subr.bf16.mxu0 0
    %2985 = vmatpush1.bf16.xpose.msra.mxu0 %v2501
    %2986 = vmatprep.subr.bf16.mxu0 0
    %2987 = vmatpush1.bf16.xpose.msra.mxu0 %v2502
    %2988 = vmatprep.subr.bf16.mxu0 0
    %2989 = vmatpush1.bf16.xpose.msra.mxu0 %v2503
    %2990 = vmatprep.subr.bf16.mxu0 0
    %2991 = vmatpush1.bf16.xpose.msra.mxu0 %v2504
    %2992 = vmatprep.subr.bf16.mxu0 0
    %2993 = vmatpush1.bf16.xpose.msra.mxu0 %v2505
    %2994 = vmatprep.subr.bf16.mxu0 0
    %2995 = vmatpush1.bf16.xpose.msra.mxu0 %v2506
    %2996 = vmatprep.subr.bf16.mxu0 0
    %2997 = vmatpush1.bf16.xpose.msra.mxu0 0
    %2998 = vmatprep.subr.bf16.mxu0 0
    %2999 = vmatpush1.bf16.xpose.msra.mxu0 0
    %3000 = vmatprep.subr.bf16.mxu0 0
    %3001 = vmatpush1.bf16.xpose.msra.mxu0 0
    %3002 = vmatprep.subr.bf16.mxu0 0
    %3003 = vmatpush1.bf16.xpose.msra.mxu0 0
    %3004 = vmatprep.subr.bf16.mxu0 0
    %3005 = vmatpush1.bf16.xpose.msra.mxu0 0
    %3006 = vmatprep.subr.bf16.mxu0 0
    %3007 = vmatpush1.bf16.xpose.msra.mxu0 0
    %3008 = vmatprep.subr.bf16.mxu0 0
    %3009 = vmatpush1.bf16.xpose.msra.mxu0 0
    %3010 = vmatprep.subr.bf16.mxu0 0
    %3011 = vmatpush1.bf16.xpose.msra.mxu0 0
    %3012 = vmatprep.mubr.bf16.mxu0 0
    %3013 = vmatmul.mubr.bf16.gmra.mrb[0].mxu0 %v2499
    %v3014 = vpop.f32.mrb[0].mxu0
    %v3015 = vadd.f32 %v2539, %v3014
    %v3016 = vpop.f32.mrb[0].mxu0
    %v3017 = vpop.f32.mrb[0].mxu0
    %v3018 = vpop.f32.mrb[0].mxu0
    %3019 = vdwg.mxu0
    %3020 = vmatprep.subr.bf16.mxu0 0
    %3021 = vmatpush1.bf16.xpose.msra.mxu0 %v2507
    %3022 = vmatprep.subr.bf16.mxu0 0
    %3023 = vmatpush1.bf16.xpose.msra.mxu0 %v2508
    %3024 = vmatprep.subr.bf16.mxu0 0
    %3025 = vmatpush1.bf16.xpose.msra.mxu0 %v2509
    %3026 = vmatprep.subr.bf16.mxu0 0
    %3027 = vmatpush1.bf16.xpose.msra.mxu0 %v2510
    %3028 = vmatprep.subr.bf16.mxu0 0
    %3029 = vmatpush1.bf16.xpose.msra.mxu0 %v2511
    %3030 = vmatprep.subr.bf16.mxu0 0
    %3031 = vmatpush1.bf16.xpose.msra.mxu0 %v2512
    %3032 = vmatprep.subr.bf16.mxu0 0
    %3033 = vmatpush1.bf16.xpose.msra.mxu0 %v2513
    %3034 = vmatprep.subr.bf16.mxu0 0
    %3035 = vmatpush1.bf16.xpose.msra.mxu0 %v2514
    %3036 = vmatprep.subr.bf16.mxu0 0
    %3037 = vmatpush1.bf16.xpose.msra.mxu0 0
    %3038 = vmatprep.subr.bf16.mxu0 0
    %3039 = vmatpush1.bf16.xpose.msra.mxu0 0
    %3040 = vmatprep.subr.bf16.mxu0 0
    %3041 = vmatpush1.bf16.xpose.msra.mxu0 0
    %3042 = vmatprep.subr.bf16.mxu0 0
    %3043 = vmatpush1.bf16.xpose.msra.mxu0 0
    %3044 = vmatprep.subr.bf16.mxu0 0
    %3045 = vmatpush1.bf16.xpose.msra.mxu0 0
    %3046 = vmatprep.subr.bf16.mxu0 0
    %3047 = vmatpush1.bf16.xpose.msra.mxu0 0
    %3048 = vmatprep.subr.bf16.mxu0 0
    %3049 = vmatpush1.bf16.xpose.msra.mxu0 0
    %3050 = vmatprep.subr.bf16.mxu0 0
    %3051 = vmatpush1.bf16.xpose.msra.mxu0 0
    %3052 = vmatprep.mubr.bf16.mxu0 0
    %3053 = vmatmul.mubr.bf16.gmra.mrb[0].mxu0 %v2507
    %v3054 = vpop.f32.mrb[0].mxu0
    %v3055 = vadd.f32 %v2539, %v3054
    %v3056 = vpop.f32.mrb[0].mxu0
    %v3057 = vpop.f32.mrb[0].mxu0
    %v3058 = vpop.f32.mrb[0].mxu0
    %3059 = vdwg.mxu0
    %3060 = vmatprep.subr.bf16.mxu0 0
    %3061 = vmatpush1.bf16.xpose.msra.mxu0 %v2515
    %3062 = vmatprep.subr.bf16.mxu0 0
    %3063 = vmatpush1.bf16.xpose.msra.mxu0 %v2516
    %3064 = vmatprep.subr.bf16.mxu0 0
    %3065 = vmatpush1.bf16.xpose.msra.mxu0 %v2517
    %3066 = vmatprep.subr.bf16.mxu0 0
    %3067 = vmatpush1.bf16.xpose.msra.mxu0 %v2518
    %3068 = vmatprep.subr.bf16.mxu0 0
    %3069 = vmatpush1.bf16.xpose.msra.mxu0 %v2519
    %3070 = vmatprep.subr.bf16.mxu0 0
    %3071 = vmatpush1.bf16.xpose.msra.mxu0 %v2520
    %3072 = vmatprep.subr.bf16.mxu0 0
    %3073 = vmatpush1.bf16.xpose.msra.mxu0 %v2521
    %3074 = vmatprep.subr.bf16.mxu0 0
    %3075 = vmatpush1.bf16.xpose.msra.mxu0 %v2522
    %3076 = vmatprep.subr.bf16.mxu0 0
    %3077 = vmatpush1.bf16.xpose.msra.mxu0 0
    %3078 = vmatprep.subr.bf16.mxu0 0
    %3079 = vmatpush1.bf16.xpose.msra.mxu0 0
    %3080 = vmatprep.subr.bf16.mxu0 0
    %3081 = vmatpush1.bf16.xpose.msra.mxu0 0
    %3082 = vmatprep.subr.bf16.mxu0 0
    %3083 = vmatpush1.bf16.xpose.msra.mxu0 0
    %3084 = vmatprep.subr.bf16.mxu0 0
    %3085 = vmatpush1.bf16.xpose.msra.mxu0 0
    %3086 = vmatprep.subr.bf16.mxu0 0
    %3087 = vmatpush1.bf16.xpose.msra.mxu0 0
    %3088 = vmatprep.subr.bf16.mxu0 0
    %3089 = vmatpush1.bf16.xpose.msra.mxu0 0
    %3090 = vmatprep.subr.bf16.mxu0 0
    %3091 = vmatpush1.bf16.xpose.msra.mxu0 0
    %3092 = vmatprep.mubr.bf16.mxu0 0
    %3093 = vmatmul.mubr.bf16.gmra.mrb[0].mxu0 %v2515
    %v3094 = vpop.f32.mrb[0].mxu0
    %v3095 = vadd.f32 %v2539, %v3094
    %v3096 = vpop.f32.mrb[0].mxu0
    %v3097 = vpop.f32.mrb[0].mxu0
    %v3098 = vpop.f32.mrb[0].mxu0
    %3099 = vdwg.mxu0
    %3100 = vmatprep.subr.bf16.mxu0 0
    %3101 = vmatpush1.bf16.xpose.msra.mxu0 %v2523
    %3102 = vmatprep.subr.bf16.mxu0 0
    %3103 = vmatpush1.bf16.xpose.msra.mxu0 %v2524
    %3104 = vmatprep.subr.bf16.mxu0 0
    %3105 = vmatpush1.bf16.xpose.msra.mxu0 %v2525
    %3106 = vmatprep.subr.bf16.mxu0 0
    %3107 = vmatpush1.bf16.xpose.msra.mxu0 %v2526
    %3108 = vmatprep.subr.bf16.mxu0 0
    %3109 = vmatpush1.bf16.xpose.msra.mxu0 %v2527
    %3110 = vmatprep.subr.bf16.mxu0 0
    %3111 = vmatpush1.bf16.xpose.msra.mxu0 %v2528
    %3112 = vmatprep.subr.bf16.mxu0 0
    %3113 = vmatpush1.bf16.xpose.msra.mxu0 %v2529
    %3114 = vmatprep.subr.bf16.mxu0 0
    %3115 = vmatpush1.bf16.xpose.msra.mxu0 %v2530
    %3116 = vmatprep.subr.bf16.mxu0 0
    %3117 = vmatpush1.bf16.xpose.msra.mxu0 0
    %3118 = vmatprep.subr.bf16.mxu0 0
    %3119 = vmatpush1.bf16.xpose.msra.mxu0 0
    %3120 = vmatprep.subr.bf16.mxu0 0
    %3121 = vmatpush1.bf16.xpose.msra.mxu0 0
    %3122 = vmatprep.subr.bf16.mxu0 0
    %3123 = vmatpush1.bf16.xpose.msra.mxu0 0
    %3124 = vmatprep.subr.bf16.mxu0 0
    %3125 = vmatpush1.bf16.xpose.msra.mxu0 0
    %3126 = vmatprep.subr.bf16.mxu0 0
    %3127 = vmatpush1.bf16.xpose.msra.mxu0 0
    %3128 = vmatprep.subr.bf16.mxu0 0
    %3129 = vmatpush1.bf16.xpose.msra.mxu0 0
    %3130 = vmatprep.subr.bf16.mxu0 0
    %3131 = vmatpush1.bf16.xpose.msra.mxu0 0
    %3132 = vmatprep.mubr.bf16.mxu0 0
    %3133 = vmatmul.mubr.bf16.gmra.mrb[0].mxu0 %v2523
    %v3134 = vpop.f32.mrb[0].mxu0
    %v3135 = vadd.f32 %v2539, %v3134
    %v3136 = vpop.f32.mrb[0].mxu0
    %v3137 = vpop.f32.mrb[0].mxu0
    %v3138 = vpop.f32.mrb[0].mxu0
    %3139 = vdwg.mxu0
    %3140 = vmatprep.subr.bf16.mxu0 0
    %3141 = vmatpush1.bf16.xpose.msra.mxu0 %v2531
    %3142 = vmatprep.subr.bf16.mxu0 0
    %3143 = vmatpush1.bf16.xpose.msra.mxu0 %v2532
    %3144 = vmatprep.subr.bf16.mxu0 0
    %3145 = vmatpush1.bf16.xpose.msra.mxu0 %v2533
    %3146 = vmatprep.subr.bf16.mxu0 0
    %3147 = vmatpush1.bf16.xpose.msra.mxu0 %v2534
    %3148 = vmatprep.subr.bf16.mxu0 0
    %3149 = vmatpush1.bf16.xpose.msra.mxu0 %v2535
    %3150 = vmatprep.subr.bf16.mxu0 0
    %3151 = vmatpush1.bf16.xpose.msra.mxu0 %v2536
    %3152 = vmatprep.subr.bf16.mxu0 0
    %3153 = vmatpush1.bf16.xpose.msra.mxu0 %v2537
    %3154 = vmatprep.subr.bf16.mxu0 0
    %3155 = vmatpush1.bf16.xpose.msra.mxu0 %v2538
    %3156 = vmatprep.subr.bf16.mxu0 0
    %3157 = vmatpush1.bf16.xpose.msra.mxu0 0
    %3158 = vmatprep.subr.bf16.mxu0 0
    %3159 = vmatpush1.bf16.xpose.msra.mxu0 0
    %3160 = vmatprep.subr.bf16.mxu0 0
    %3161 = vmatpush1.bf16.xpose.msra.mxu0 0
    %3162 = vmatprep.subr.bf16.mxu0 0
    %3163 = vmatpush1.bf16.xpose.msra.mxu0 0
    %3164 = vmatprep.subr.bf16.mxu0 0
    %3165 = vmatpush1.bf16.xpose.msra.mxu0 0
    %3166 = vmatprep.subr.bf16.mxu0 0
    %3167 = vmatpush1.bf16.xpose.msra.mxu0 0
    %3168 = vmatprep.subr.bf16.mxu0 0
    %3169 = vmatpush1.bf16.xpose.msra.mxu0 0
    %3170 = vmatprep.subr.bf16.mxu0 0
    %3171 = vmatpush1.bf16.xpose.msra.mxu0 0
    %3172 = vmatprep.mubr.bf16.mxu0 0
    %3173 = vmatmul.mubr.bf16.gmra.mrb[0].mxu0 %v2531
    %v3174 = vpop.f32.mrb[0].mxu0
    %v3175 = vadd.f32 %v2539, %v3174
    %v3176 = vpop.f32.mrb[0].mxu0
    %v3177 = vpop.f32.mrb[0].mxu0
    %v3178 = vpop.f32.mrb[0].mxu0
    %3179 = vdwg.mxu0
    %v3180 = vand.u32 2147483647, %v2575
    %v3181 = vand.u32 2147483647, %v2615
    %v3182 = vand.u32 2147483647, %v2655
    %v3183 = vand.u32 2147483647, %v2695
    %v3184 = vand.u32 2147483647, %v2735
    %v3185 = vand.u32 2147483647, %v2775
    %v3186 = vand.u32 2147483647, %v2815
    %v3187 = vand.u32 2147483647, %v2855
    %v3188 = vand.u32 2147483647, %v2895
    %v3189 = vand.u32 2147483647, %v2935
    %v3190 = vand.u32 2147483647, %v2975
    %v3191 = vand.u32 2147483647, %v3015
    %v3192 = vand.u32 2147483647, %v3055
    %v3193 = vand.u32 2147483647, %v3095
    %v3194 = vand.u32 2147483647, %v3135
    %v3195 = vand.u32 2147483647, %v3175
    %vm3196 = vcmp.lt.f32.partialorder %v3180, 1e-05
    %vm3197 = vcmp.lt.f32.partialorder %v3181, 1e-05
    %vm3198 = vcmp.lt.f32.partialorder %v3182, 1e-05
    %vm3199 = vcmp.lt.f32.partialorder %v3183, 1e-05
    %vm3200 = vcmp.lt.f32.partialorder %v3184, 1e-05
    %vm3201 = vcmp.lt.f32.partialorder %v3185, 1e-05
    %vm3202 = vcmp.lt.f32.partialorder %v3186, 1e-05
    %vm3203 = vcmp.lt.f32.partialorder %v3187, 1e-05
    %vm3204 = vcmp.lt.f32.partialorder %v3188, 1e-05
    %vm3205 = vcmp.lt.f32.partialorder %v3189, 1e-05
    %vm3206 = vcmp.lt.f32.partialorder %v3190, 1e-05
    %vm3207 = vcmp.lt.f32.partialorder %v3191, 1e-05
    %vm3208 = vcmp.lt.f32.partialorder %v3192, 1e-05
    %vm3209 = vcmp.lt.f32.partialorder %v3193, 1e-05
    %vm3210 = vcmp.lt.f32.partialorder %v3194, 1e-05
    %vm3211 = vcmp.lt.f32.partialorder %v3195, 1e-05
    %v3212 = vsel %vm3196, 0.0, %v2575
    %v3213 = vsel %vm3197, 0.0, %v2615
    %v3214 = vsel %vm3198, 0.0, %v2655
    %v3215 = vsel %vm3199, 0.0, %v2695
    %v3216 = vsel %vm3200, 0.0, %v2735
    %v3217 = vsel %vm3201, 0.0, %v2775
    %v3218 = vsel %vm3202, 0.0, %v2815
    %v3219 = vsel %vm3203, 0.0, %v2855
    %v3220 = vsel %vm3204, 0.0, %v2895
    %v3221 = vsel %vm3205, 0.0, %v2935
    %v3222 = vsel %vm3206, 0.0, %v2975
    %v3223 = vsel %vm3207, 0.0, %v3015
    %v3224 = vsel %vm3208, 0.0, %v3055
    %v3225 = vsel %vm3209, 0.0, %v3095
    %v3226 = vsel %vm3210, 0.0, %v3135
    %v3227 = vsel %vm3211, 0.0, %v3175
    %3228 = vst [vmem:[%s14] sm:$0xff] %v3212
    %3229 = vst [vmem:[%s14 + $0x8] sm:$0xff] %v3213
    %3230 = vst [vmem:[%s14 + $0x10] sm:$0xff] %v3214
    %3231 = vst [vmem:[%s14 + $0x18] sm:$0xff] %v3215
    %3232 = vst [vmem:[%s14 + $0x20] sm:$0xff] %v3216
    %3233 = vst [vmem:[%s14 + $0x28] sm:$0xff] %v3217
    %3234 = vst [vmem:[%s14 + $0x30] sm:$0xff] %v3218
    %3235 = vst [vmem:[%s14 + $0x38] sm:$0xff] %v3219
    %3236 = vst [vmem:[%s14 + $0x40] sm:$0xff] %v3220
    %3237 = vst [vmem:[%s14 + $0x48] sm:$0xff] %v3221
    %3238 = vst [vmem:[%s14 + $0x50] sm:$0xff] %v3222
    %3239 = vst [vmem:[%s14 + $0x58] sm:$0xff] %v3223
    %3240 = vst [vmem:[%s14 + $0x60] sm:$0xff] %v3224
    %3241 = vst [vmem:[%s14 + $0x68] sm:$0xff] %v3225
    %3242 = vst [vmem:[%s14 + $0x70] sm:$0xff] %v3226
    %3243 = vst [vmem:[%s14 + $0x78] sm:$0xff] %v3227
    // Predicated region
    $region86: #{cholesky_fcn_forward.1} parent=1 // pred_check
      _
    $region87: #{cholesky_fcn_forward.1} parent=1 // pred_check_branch
      %3245 = sbr.rel (0) target = $region89
    $region88: #{cholesky_fcn_forward.1} parent=1 // pred_region
      _
    $region89: #{cholesky_fcn_forward.1} parent=1 // pred_fallthru
      _
    // Predicated region
    $region90: #{cholesky_fcn_forward.1} parent=1 // pred_check
      _
    $region91: #{cholesky_fcn_forward.1} parent=1 // pred_check_branch
      %3247 = sbr.rel (0) target = $region93
    $region92: #{cholesky_fcn_forward.1} parent=1 // pred_region
      _
    $region93: #{cholesky_fcn_forward.1} parent=1 // pred_fallthru
      _
    %3248 = vsyncpa [#allocation4], 1
    %3249 = vsyncpa [#allocation6], 1
    %3250 = vsyncpa [#allocation9], 1
    %3251 = vsyncpa [#allocation12], 1

</llo_original>
